<compile_context>
chip_gen: v6e
topology: v6e:2x2x1
jax: 0.10.0
libtpu: 0.0.40
codegen_flags: <defaults>
</compile_context>

<pallas_src>
import functools

import jax
import jax.numpy as jnp
from jax.experimental import pallas as pl
from jax.experimental.pallas import tpu as pltpu

PRELU_ALPHA = 0.25  # nn.PReLU() default init value (learnable in torch; init value here)


# ---------------------------------------------------------------------------
# Pallas kernel: all EGCN layers fused (node conv + edge-attr update per layer).
# ---------------------------------------------------------------------------
def ae_egcn_fused_kernel(alphas_ref,                        # SMEM (L, 2) f32 PReLU slopes
                         x0_ref, ea0_ref,                   # f32 node / edge features
                         gdstnT_ref, gavg_ref, anorm_ref,   # bf16 graph operands
                         w_ref, wm1_ref, wme2_ref, we1_ref, # bf16 stacked weights
                         bm_ref, bias_ref, be_ref,          # f32 stacked biases
                         enc_ref, dec_ref, eao_ref,         # f32 outputs
                         *, num_layers, enc_layer, dpad):
    # Graph operands: DMA'd into VMEM once, reused by every layer.
    gdstnT = gdstnT_ref[...]   # (Npad, Epad)  norm-folded scatter one-hot, pre-transposed
    gavg = gavg_ref[...]       # (Epad, Npad)  0.5*(onehot(src)+onehot(dst))
    anorm = anorm_ref[...]     # (Npad, Npad)  normalized adjacency A[dst, src]

    # Layer carries as values (bf16) — no scratch stores/reloads.
    x = x0_ref[...].astype(jnp.bfloat16)
    ea = ea0_ref[...].astype(jnp.bfloat16)

    for l in range(num_layers):  # static unroll; num_layers == 4 for AE_EGCN
        a_conv = alphas_ref[l, 0]
        a_edge = alphas_ref[l, 1]

        # Node transform p = x @ W and node-side message term pm = p @ Wm1.
        p = jnp.dot(x, w_ref[l], preferred_element_type=jnp.float32)
        pm = jnp.dot(p.astype(jnp.bfloat16), wm1_ref[l],
                     preferred_element_type=jnp.float32)

        # Fused edge-attr matmul: ec = ea @ [Wm2 | We2]  (single pass over ea).
        ec = jnp.dot(ea, wme2_ref[l], preferred_element_type=jnp.float32)
        em = ec[:, :dpad] + bm_ref[l]                      # edge-side message term

        # Aggregation with gather+scatter+norm reassociated into A_norm:
        #   aggr = A_norm @ (p @ Wm1) + gdstn^T @ (ea @ Wm2 + bm)
        aggr = (jnp.dot(anorm, pm.astype(jnp.bfloat16),
                        preferred_element_type=jnp.float32)
                + jnp.dot(gdstnT, em.astype(jnp.bfloat16),
                          preferred_element_type=jnp.float32))
        x_new = aggr + bias_ref[l]
        x_new = jnp.where(x_new > 0, x_new, a_conv * x_new)          # PReLU (conv)

        # Edge update: PReLU(Linear(cat[(x_i + x_j)/2, edge_attr])).
        h = jnp.dot(gavg, x_new.astype(jnp.bfloat16),
                    preferred_element_type=jnp.float32)
        e_new = (jnp.dot(h.astype(jnp.bfloat16), we1_ref[l],
                         preferred_element_type=jnp.float32)
                 + ec[:, dpad:] + be_ref[l])
        e_new = jnp.where(e_new > 0, e_new, a_edge * e_new)          # PReLU (edge MLP)

        if l == enc_layer:              # encoder output (latent code)
            enc_ref[...] = x_new
        if l == num_layers - 1:         # decoder outputs (reconstruction)
            dec_ref[...] = x_new
            eao_ref[...] = e_new
        if l + 1 < num_layers:
            x = x_new.astype(jnp.bfloat16)
            ea = e_new.astype(jnp.bfloat16)


# ---------------------------------------------------------------------------
# Padding / sizing helpers
# ---------------------------------------------------------------------------
def _round_up(v, m):
    return ((v + m - 1) // m) * m


def _pad2(a, rows, cols, dtype):
    out = jnp.zeros((rows, cols), dtype)
    return out.at[:a.shape[0], :a.shape[1]].set(a.astype(dtype))


def _pick_vmem_limit(resident_bytes):
    """Size vmem_limit_bytes from the detected chip (v5e/v6e 128 MiB, v7x 64 MiB)."""
    try:
        cap = int(pltpu.get_tpu_info().vmem_capacity_bytes)
        if cap <= 0:
            raise ValueError("bad vmem capacity")
    except Exception:
        cap = 64 * 1024 * 1024  # conservative: smallest per-core VMEM generation (v7x)
    want = max(32 * 1024 * 1024, 2 * int(resident_bytes) + (8 << 20))
    return int(min(want, (cap * 85) // 100))


# ---------------------------------------------------------------------------
# Parameter init (deterministic, torch.nn.Linear-style uniform bounds)
# ---------------------------------------------------------------------------
def _linear_init(key, fan_in, fan_out):
    k1, k2 = jax.random.split(key)
    bound = 1.0 / float(fan_in) ** 0.5
    w = jax.random.uniform(k1, (fan_in, fan_out), jnp.float32, -bound, bound)
    b = jax.random.uniform(k2, (1, fan_out), jnp.float32, -bound, bound)
    return w, b


def init_layer_params(key, din, dout, de_in, de_out):
    keys = jax.random.split(key, 3)
    w_node, _ = _linear_init(keys[0], din, dout)          # node weight (bias separate)
    w_msg, b_msg = _linear_init(keys[1], dout + de_in, dout)
    w_edge, b_edge = _linear_init(keys[2], dout + de_in, de_out)
    return dict(
        W=w_node,
        Wm1=w_msg[:dout], Wm2=w_msg[dout:], bm=b_msg,
        bias=jnp.zeros((1, dout), jnp.float32),
        We1=w_edge[:dout], We2=w_edge[dout:], be=b_edge,
    )


# ---------------------------------------------------------------------------
# AE_EGCN forward: encgc1 -> encgc2 -> decgc1 -> decgc2 (single fused kernel)
# ---------------------------------------------------------------------------
def ae_egcn_forward(params_list, x, edge_attr, edge_index, edge_weight, *,
                    num_nodes, prelu_alphas=None):
    n = num_nodes
    e = edge_index.shape[1]
    num_layers = len(params_list)
    enc_layer = max(num_layers // 2 - 1, 0)

    dims = [x.shape[1]] + [p["W"].shape[1] for p in params_list]
    dpad = _round_up(max(max(dims), 8), 128)   # lane-dense feature dim
    npad = _round_up(max(n, 8), 128)           # nodes: lanes of gavg / anorm
    epad = _round_up(max(e, 8), 128)           # edges: lanes of the pre-transposed scatter

    row = edge_index[0]   # message source
    col = edge_index[1]   # message target
    w = jnp.ones((e,), jnp.float32) if edge_weight is None else edge_weight.astype(jnp.float32)

    # GCN symmetric normalization (fp32 glue in the wrapper)
    deg = jnp.zeros((n,), jnp.float32).at[col].add(w)
    dinv = jnp.where(deg > 0, jax.lax.rsqrt(deg), 0.0)
    norm = dinv[row] * w * dinv[col]                                    # (E,)

    # pad edges with index -1 (matches no node) and norm 0 -> padded edges are inert
    pad_e = epad - e
    row_p = jnp.concatenate([row, -jnp.ones((pad_e,), row.dtype)])
    col_p = jnp.concatenate([col, -jnp.ones((pad_e,), col.dtype)])
    norm_p = jnp.concatenate([norm, jnp.zeros((pad_e,), jnp.float32)])

    node_ids = jnp.arange(npad)
    gsrc_f = (row_p[:, None] == node_ids[None, :]).astype(jnp.float32)   # (Epad, Npad)
    gdst_f = (col_p[:, None] == node_ids[None, :]).astype(jnp.float32)   # (Epad, Npad)
    gdstnT_f = gdst_f.T * norm_p[None, :]                                # (Npad, Epad)
    anorm_f = jnp.dot(gdstnT_f, gsrc_f)                                  # (Npad, Npad)

    gdstnT = gdstnT_f.astype(jnp.bfloat16)                  # pre-transposed, norm folded
    gavg = (0.5 * (gsrc_f + gdst_f)).astype(jnp.bfloat16)   # merged (x_i+x_j)/2 gather
    anorm = anorm_f.astype(jnp.bfloat16)                    # normalized adjacency

    x_p = _pad2(x, npad, dpad, jnp.float32)
    ea_p = _pad2(edge_attr, epad, dpad, jnp.float32)

    # stacked per-layer weights; Wm2 / We2 fused column-wise into one 2*dpad-wide operand
    W_s = jnp.stack([_pad2(p["W"], dpad, dpad, jnp.bfloat16) for p in params_list])
    Wm1_s = jnp.stack([_pad2(p["Wm1"], dpad, dpad, jnp.bfloat16) for p in params_list])
    We1_s = jnp.stack([_pad2(p["We1"], dpad, dpad, jnp.bfloat16) for p in params_list])
    Wme2_s = jnp.stack([
        jnp.concatenate([_pad2(p["Wm2"], dpad, dpad, jnp.bfloat16),
                         _pad2(p["We2"], dpad, dpad, jnp.bfloat16)], axis=1)
        for p in params_list])
    bm_s = jnp.stack([_pad2(p["bm"], 1, dpad, jnp.float32) for p in params_list])
    bias_s = jnp.stack([_pad2(p["bias"], 1, dpad, jnp.float32) for p in params_list])
    be_s = jnp.stack([_pad2(p["be"], 1, dpad, jnp.float32) for p in params_list])

    if prelu_alphas is None:
        prelu_alphas = jnp.full((num_layers, 2), PRELU_ALPHA, jnp.float32)
    alphas = prelu_alphas.astype(jnp.float32)

    inputs = (alphas, x_p, ea_p, gdstnT, gavg, anorm,
              W_s, Wm1_s, Wme2_s, We1_s, bm_s, bias_s, be_s)

    # advisory cost estimate for XLA scheduling around the custom call
    macs = (2 * npad * dpad * dpad          # x@W, p@Wm1
            + 3 * epad * dpad * dpad        # ea@[Wm2|We2] (2x wide) + h@We1
            + npad * npad * dpad            # A_norm @ pm
            + 2 * epad * npad * dpad)       # gdstn^T @ em, gavg @ x_new
    in_bytes = sum(int(a.size) * a.dtype.itemsize for a in inputs)
    out_bytes = (2 * npad * dpad + epad * dpad) * 4
    cost = pl.CostEstimate(flops=2 * num_layers * macs, transcendentals=0,
                           bytes_accessed=in_bytes + out_bytes)

    vmem = pl.BlockSpec(memory_space=pltpu.MemorySpace.VMEM)
    smem = pl.BlockSpec(memory_space=pltpu.MemorySpace.SMEM)
    enc_p, dec_p, eao_p = pl.pallas_call(
        functools.partial(ae_egcn_fused_kernel, num_layers=num_layers,
                          enc_layer=enc_layer, dpad=dpad),
        out_shape=(jax.ShapeDtypeStruct((npad, dpad), jnp.float32),   # enc (latent)
                   jax.ShapeDtypeStruct((npad, dpad), jnp.float32),   # dec (reconstruction)
                   jax.ShapeDtypeStruct((epad, dpad), jnp.float32)),  # dec edge attr
        in_specs=[smem] + [vmem] * (len(inputs) - 1),
        out_specs=(vmem, vmem, vmem),
        compiler_params=pltpu.CompilerParams(
            vmem_limit_bytes=_pick_vmem_limit(in_bytes + out_bytes)),
        cost_estimate=cost,
    )(*inputs)

    h2 = params_list[enc_layer]["W"].shape[1]
    f_out = params_list[-1]["W"].shape[1]
    de_out = params_list[-1]["We1"].shape[1]
    dec = dec_p[:n, :f_out]
    enc = enc_p[:n, :h2]
    dec_edge_attr = eao_p[:e, :de_out]
    return dec, enc, dec_edge_attr


if __name__ == "__main__":
    key = jax.random.PRNGKey(0)
    N, E, F, H1, H2 = 16, 32, 8, 16, 8

    k_x, k_e, k_idx, k_w, k_p = jax.random.split(key, 5)
    x = jax.random.normal(k_x, (N, F), jnp.float32)
    edge_features = jax.random.normal(k_e, (E, F), jnp.float32)
    edge_index = jax.random.randint(k_idx, (2, E), 0, N)
    edge_weight = jax.random.uniform(k_w, (E,), jnp.float32, 0.5, 1.5)

    pkeys = jax.random.split(k_p, 4)
    params = [
        init_layer_params(pkeys[0], F, H1, F, H1),    # encgc1
        init_layer_params(pkeys[1], H1, H2, H1, H2),  # encgc2
        init_layer_params(pkeys[2], H2, H1, H2, H1),  # decgc1
        init_layer_params(pkeys[3], H1, F, H1, F),    # decgc2
    ]

    fwd = jax.jit(functools.partial(ae_egcn_forward, num_nodes=N))
    dec, enc, dec_edge_attr = fwd(params, x, edge_features, edge_index, edge_weight)
    jax.block_until_ready((dec, enc, dec_edge_attr))

    assert dec.shape == (N, F)
    assert enc.shape == (N, H2)
    assert dec_edge_attr.shape == (E, F)
    assert bool(jnp.all(jnp.isfinite(dec)))
    assert bool(jnp.all(jnp.isfinite(enc)))
    assert bool(jnp.all(jnp.isfinite(dec_edge_attr)))
    print("KERNEL_OK")
</pallas_src>

<mosaic_0001>
module attributes {stable_mosaic.version = 11 : i64} {
  func.func private @main(%arg0: i32) attributes {dimension_semantics = [#tpu.dimension_semantics<core_parallel>], iteration_bounds = array<i64: 2>, tpu.core_type = #tpu.core_type<sc_scalar_subcore>, window_params = []} {
    return
  }
}

module attributes {stable_mosaic.version = 11 : i64} {
  func.func private @main(%arg0: i32) attributes {dimension_semantics = [#tpu.dimension_semantics<core_parallel>], iteration_bounds = array<i64: 2>, tpu.core_type = #tpu.core_type<sc_scalar_subcore>, window_params = []} {
    return
  }
}

module attributes {stable_mosaic.version = 11 : i64} {
  func.func @ae_egcn_fused_kernel(%arg0: memref<4x2xf32, #tpu.memory_space<smem>>, %arg1: memref<128x128xf32, #tpu.memory_space<vmem>>, %arg2: memref<128x128xf32, #tpu.memory_space<vmem>>, %arg3: memref<128x128xbf16, #tpu.memory_space<vmem>>, %arg4: memref<128x128xbf16, #tpu.memory_space<vmem>>, %arg5: memref<128x128xbf16, #tpu.memory_space<vmem>>, %arg6: memref<4x128x128xbf16, #tpu.memory_space<vmem>>, %arg7: memref<4x128x128xbf16, #tpu.memory_space<vmem>>, %arg8: memref<4x128x256xbf16, #tpu.memory_space<vmem>>, %arg9: memref<4x128x128xbf16, #tpu.memory_space<vmem>>, %arg10: memref<4x1x128xf32, #tpu.memory_space<vmem>>, %arg11: memref<4x1x128xf32, #tpu.memory_space<vmem>>, %arg12: memref<4x1x128xf32, #tpu.memory_space<vmem>>, %arg13: memref<128x128xf32, #tpu.memory_space<vmem>>, %arg14: memref<128x128xf32, #tpu.memory_space<vmem>>, %arg15: memref<128x128xf32, #tpu.memory_space<vmem>>) attributes {dimension_semantics = [], scalar_prefetch = 0 : i64, scratch_operands = 0 : i64, tpu.core_type = #tpu.core_type<tc>} {
    %c0 = arith.constant 0 : index
    %c0_0 = arith.constant 0 : index
    %0 = vector.load %arg3[%c0, %c0_0] : memref<128x128xbf16, #tpu.memory_space<vmem>>, vector<128x128xbf16>
    %c0_1 = arith.constant 0 : index
    %c0_2 = arith.constant 0 : index
    %1 = vector.load %arg4[%c0_1, %c0_2] : memref<128x128xbf16, #tpu.memory_space<vmem>>, vector<128x128xbf16>
    %c0_3 = arith.constant 0 : index
    %c0_4 = arith.constant 0 : index
    %2 = vector.load %arg5[%c0_3, %c0_4] : memref<128x128xbf16, #tpu.memory_space<vmem>>, vector<128x128xbf16>
    %c0_5 = arith.constant 0 : index
    %c0_6 = arith.constant 0 : index
    %3 = vector.load %arg1[%c0_5, %c0_6] : memref<128x128xf32, #tpu.memory_space<vmem>>, vector<128x128xf32>
    %4 = arith.truncf %3 : vector<128x128xf32> to vector<128x128xbf16>
    %c0_7 = arith.constant 0 : index
    %c0_8 = arith.constant 0 : index
    %5 = vector.load %arg2[%c0_7, %c0_8] : memref<128x128xf32, #tpu.memory_space<vmem>>, vector<128x128xf32>
    %6 = arith.truncf %5 : vector<128x128xf32> to vector<128x128xbf16>
    %c0_9 = arith.constant 0 : index
    %c0_10 = arith.constant 0 : index
    %7 = memref.load %arg0[%c0_9, %c0_10] : memref<4x2xf32, #tpu.memory_space<smem>>
    %c0_11 = arith.constant 0 : index
    %c1 = arith.constant 1 : index
    %8 = memref.load %arg0[%c0_11, %c1] : memref<4x2xf32, #tpu.memory_space<smem>>
    %c0_12 = arith.constant 0 : index
    %c0_13 = arith.constant 0 : index
    %c0_14 = arith.constant 0 : index
    %9 = vector.load %arg6[%c0_12, %c0_13, %c0_14] : memref<4x128x128xbf16, #tpu.memory_space<vmem>>, vector<1x128x128xbf16>
    %10 = vector.shape_cast %9 : vector<1x128x128xbf16> to vector<128x128xbf16>
    %cst = arith.constant dense<0.000000e+00> : vector<128x128xf32>
    %11 = tpu.matmul %4, %10, %cst {dimension_numbers = #tpu.dot_dimension_numbers<[1], [0], [0], [1], [0, 0, 1, 1], [], []>} : vector<128x128xbf16>, vector<128x128xbf16>, vector<128x128xf32> -> vector<128x128xf32>
    %12 = arith.truncf %11 : vector<128x128xf32> to vector<128x128xbf16>
    %c0_15 = arith.constant 0 : index
    %c0_16 = arith.constant 0 : index
    %c0_17 = arith.constant 0 : index
    %13 = vector.load %arg7[%c0_15, %c0_16, %c0_17] : memref<4x128x128xbf16, #tpu.memory_space<vmem>>, vector<1x128x128xbf16>
    %14 = vector.shape_cast %13 : vector<1x128x128xbf16> to vector<128x128xbf16>
    %cst_18 = arith.constant dense<0.000000e+00> : vector<128x128xf32>
    %15 = tpu.matmul %12, %14, %cst_18 {dimension_numbers = #tpu.dot_dimension_numbers<[1], [0], [0], [1], [0, 0, 1, 1], [], []>} : vector<128x128xbf16>, vector<128x128xbf16>, vector<128x128xf32> -> vector<128x128xf32>
    %c0_19 = arith.constant 0 : index
    %c0_20 = arith.constant 0 : index
    %c0_21 = arith.constant 0 : index
    %16 = vector.load %arg8[%c0_19, %c0_20, %c0_21] : memref<4x128x256xbf16, #tpu.memory_space<vmem>>, vector<1x128x256xbf16>
    %17 = vector.shape_cast %16 : vector<1x128x256xbf16> to vector<128x256xbf16>
    %cst_22 = arith.constant dense<0.000000e+00> : vector<128x256xf32>
    %18 = tpu.matmul %6, %17, %cst_22 {dimension_numbers = #tpu.dot_dimension_numbers<[1], [0], [0], [1], [0, 0, 1, 1], [], []>} : vector<128x128xbf16>, vector<128x256xbf16>, vector<128x256xf32> -> vector<128x256xf32>
    %19 = vector.extract_strided_slice %18 {offsets = [0, 0], sizes = [128, 128], strides = [1, 1]} : vector<128x256xf32> to vector<128x128xf32>
    %c0_23 = arith.constant 0 : index
    %c0_24 = arith.constant 0 : index
    %c0_25 = arith.constant 0 : index
    %20 = vector.load %arg10[%c0_23, %c0_24, %c0_25] : memref<4x1x128xf32, #tpu.memory_space<vmem>>, vector<1x1x128xf32>
    %21 = vector.shape_cast %20 : vector<1x1x128xf32> to vector<1x128xf32>
    %22 = vector.broadcast %21 : vector<1x128xf32> to vector<128x128xf32>
    %23 = arith.addf %19, %22 : vector<128x128xf32>
    %24 = arith.truncf %15 : vector<128x128xf32> to vector<128x128xbf16>
    %cst_26 = arith.constant dense<0.000000e+00> : vector<128x128xf32>
    %25 = tpu.matmul %2, %24, %cst_26 {dimension_numbers = #tpu.dot_dimension_numbers<[1], [0], [0], [1], [0, 0, 1, 1], [], []>} : vector<128x128xbf16>, vector<128x128xbf16>, vector<128x128xf32> -> vector<128x128xf32>
    %26 = arith.truncf %23 : vector<128x128xf32> to vector<128x128xbf16>
    %cst_27 = arith.constant dense<0.000000e+00> : vector<128x128xf32>
    %27 = tpu.matmul %0, %26, %cst_27 {dimension_numbers = #tpu.dot_dimension_numbers<[1], [0], [0], [1], [0, 0, 1, 1], [], []>} : vector<128x128xbf16>, vector<128x128xbf16>, vector<128x128xf32> -> vector<128x128xf32>
    %28 = arith.addf %25, %27 : vector<128x128xf32>
    %c0_28 = arith.constant 0 : index
    %c0_29 = arith.constant 0 : index
    %c0_30 = arith.constant 0 : index
    %29 = vector.load %arg11[%c0_28, %c0_29, %c0_30] : memref<4x1x128xf32, #tpu.memory_space<vmem>>, vector<1x1x128xf32>
    %30 = vector.shape_cast %29 : vector<1x1x128xf32> to vector<1x128xf32>
    %31 = vector.broadcast %30 : vector<1x128xf32> to vector<128x128xf32>
    %32 = arith.addf %28, %31 : vector<128x128xf32>
    %cst_31 = arith.constant 0.000000e+00 : f32
    %33 = vector.broadcast %cst_31 : f32 to vector<128x128xf32>
    %34 = arith.cmpf ogt, %32, %33 : vector<128x128xf32>
    %35 = vector.broadcast %7 : f32 to vector<128x128xf32>
    %36 = arith.mulf %35, %32 : vector<128x128xf32>
    %37 = arith.select %34, %32, %36 : vector<128x128xi1>, vector<128x128xf32>
    %38 = arith.truncf %37 : vector<128x128xf32> to vector<128x128xbf16>
    %cst_32 = arith.constant dense<0.000000e+00> : vector<128x128xf32>
    %39 = tpu.matmul %1, %38, %cst_32 {dimension_numbers = #tpu.dot_dimension_numbers<[1], [0], [0], [1], [0, 0, 1, 1], [], []>} : vector<128x128xbf16>, vector<128x128xbf16>, vector<128x128xf32> -> vector<128x128xf32>
    %40 = arith.truncf %39 : vector<128x128xf32> to vector<128x128xbf16>
    %c0_33 = arith.constant 0 : index
    %c0_34 = arith.constant 0 : index
    %c0_35 = arith.constant 0 : index
    %41 = vector.load %arg9[%c0_33, %c0_34, %c0_35] : memref<4x128x128xbf16, #tpu.memory_space<vmem>>, vector<1x128x128xbf16>
    %42 = vector.shape_cast %41 : vector<1x128x128xbf16> to vector<128x128xbf16>
    %cst_36 = arith.constant dense<0.000000e+00> : vector<128x128xf32>
    %43 = tpu.matmul %40, %42, %cst_36 {dimension_numbers = #tpu.dot_dimension_numbers<[1], [0], [0], [1], [0, 0, 1, 1], [], []>} : vector<128x128xbf16>, vector<128x128xbf16>, vector<128x128xf32> -> vector<128x128xf32>
    %44 = vector.extract_strided_slice %18 {offsets = [0, 128], sizes = [128, 128], strides = [1, 1]} : vector<128x256xf32> to vector<128x128xf32>
    %45 = arith.addf %43, %44 : vector<128x128xf32>
    %c0_37 = arith.constant 0 : index
    %c0_38 = arith.constant 0 : index
    %c0_39 = arith.constant 0 : index
    %46 = vector.load %arg12[%c0_37, %c0_38, %c0_39] : memref<4x1x128xf32, #tpu.memory_space<vmem>>, vector<1x1x128xf32>
    %47 = vector.shape_cast %46 : vector<1x1x128xf32> to vector<1x128xf32>
    %48 = vector.broadcast %47 : vector<1x128xf32> to vector<128x128xf32>
    %49 = arith.addf %45, %48 : vector<128x128xf32>
    %cst_40 = arith.constant 0.000000e+00 : f32
    %50 = vector.broadcast %cst_40 : f32 to vector<128x128xf32>
    %51 = arith.cmpf ogt, %49, %50 : vector<128x128xf32>
    %52 = vector.broadcast %8 : f32 to vector<128x128xf32>
    %53 = arith.mulf %52, %49 : vector<128x128xf32>
    %54 = arith.select %51, %49, %53 : vector<128x128xi1>, vector<128x128xf32>
    %55 = arith.truncf %37 : vector<128x128xf32> to vector<128x128xbf16>
    %56 = arith.truncf %54 : vector<128x128xf32> to vector<128x128xbf16>
    %c1_41 = arith.constant 1 : index
    %c0_42 = arith.constant 0 : index
    %57 = memref.load %arg0[%c1_41, %c0_42] : memref<4x2xf32, #tpu.memory_space<smem>>
    %c1_43 = arith.constant 1 : index
    %c1_44 = arith.constant 1 : index
    %58 = memref.load %arg0[%c1_43, %c1_44] : memref<4x2xf32, #tpu.memory_space<smem>>
    %c1_45 = arith.constant 1 : index
    %c0_46 = arith.constant 0 : index
    %c0_47 = arith.constant 0 : index
    %59 = vector.load %arg6[%c1_45, %c0_46, %c0_47] : memref<4x128x128xbf16, #tpu.memory_space<vmem>>, vector<1x128x128xbf16>
    %60 = vector.shape_cast %59 : vector<1x128x128xbf16> to vector<128x128xbf16>
    %cst_48 = arith.constant dense<0.000000e+00> : vector<128x128xf32>
    %61 = tpu.matmul %55, %60, %cst_48 {dimension_numbers = #tpu.dot_dimension_numbers<[1], [0], [0], [1], [0, 0, 1, 1], [], []>} : vector<128x128xbf16>, vector<128x128xbf16>, vector<128x128xf32> -> vector<128x128xf32>
    %62 = arith.truncf %61 : vector<128x128xf32> to vector<128x128xbf16>
    %c1_49 = arith.constant 1 : index
    %c0_50 = arith.constant 0 : index
    %c0_51 = arith.constant 0 : index
    %63 = vector.load %arg7[%c1_49, %c0_50, %c0_51] : memref<4x128x128xbf16, #tpu.memory_space<vmem>>, vector<1x128x128xbf16>
    %64 = vector.shape_cast %63 : vector<1x128x128xbf16> to vector<128x128xbf16>
    %cst_52 = arith.constant dense<0.000000e+00> : vector<128x128xf32>
    %65 = tpu.matmul %62, %64, %cst_52 {dimension_numbers = #tpu.dot_dimension_numbers<[1], [0], [0], [1], [0, 0, 1, 1], [], []>} : vector<128x128xbf16>, vector<128x128xbf16>, vector<128x128xf32> -> vector<128x128xf32>
    %c1_53 = arith.constant 1 : index
    %c0_54 = arith.constant 0 : index
    %c0_55 = arith.constant 0 : index
    %66 = vector.load %arg8[%c1_53, %c0_54, %c0_55] : memref<4x128x256xbf16, #tpu.memory_space<vmem>>, vector<1x128x256xbf16>
    %67 = vector.shape_cast %66 : vector<1x128x256xbf16> to vector<128x256xbf16>
    %cst_56 = arith.constant dense<0.000000e+00> : vector<128x256xf32>
    %68 = tpu.matmul %56, %67, %cst_56 {dimension_numbers = #tpu.dot_dimension_numbers<[1], [0], [0], [1], [0, 0, 1, 1], [], []>} : vector<128x128xbf16>, vector<128x256xbf16>, vector<128x256xf32> -> vector<128x256xf32>
    %69 = vector.extract_strided_slice %68 {offsets = [0, 0], sizes = [128, 128], strides = [1, 1]} : vector<128x256xf32> to vector<128x128xf32>
    %c1_57 = arith.constant 1 : index
    %c0_58 = arith.constant 0 : index
    %c0_59 = arith.constant 0 : index
    %70 = vector.load %arg10[%c1_57, %c0_58, %c0_59] : memref<4x1x128xf32, #tpu.memory_space<vmem>>, vector<1x1x128xf32>
    %71 = vector.shape_cast %70 : vector<1x1x128xf32> to vector<1x128xf32>
    %72 = vector.broadcast %71 : vector<1x128xf32> to vector<128x128xf32>
    %73 = arith.addf %69, %72 : vector<128x128xf32>
    %74 = arith.truncf %65 : vector<128x128xf32> to vector<128x128xbf16>
    %cst_60 = arith.constant dense<0.000000e+00> : vector<128x128xf32>
    %75 = tpu.matmul %2, %74, %cst_60 {dimension_numbers = #tpu.dot_dimension_numbers<[1], [0], [0], [1], [0, 0, 1, 1], [], []>} : vector<128x128xbf16>, vector<128x128xbf16>, vector<128x128xf32> -> vector<128x128xf32>
    %76 = arith.truncf %73 : vector<128x128xf32> to vector<128x128xbf16>
    %cst_61 = arith.constant dense<0.000000e+00> : vector<128x128xf32>
    %77 = tpu.matmul %0, %76, %cst_61 {dimension_numbers = #tpu.dot_dimension_numbers<[1], [0], [0], [1], [0, 0, 1, 1], [], []>} : vector<128x128xbf16>, vector<128x128xbf16>, vector<128x128xf32> -> vector<128x128xf32>
    %78 = arith.addf %75, %77 : vector<128x128xf32>
    %c1_62 = arith.constant 1 : index
    %c0_63 = arith.constant 0 : index
    %c0_64 = arith.constant 0 : index
    %79 = vector.load %arg11[%c1_62, %c0_63, %c0_64] : memref<4x1x128xf32, #tpu.memory_space<vmem>>, vector<1x1x128xf32>
    %80 = vector.shape_cast %79 : vector<1x1x128xf32> to vector<1x128xf32>
    %81 = vector.broadcast %80 : vector<1x128xf32> to vector<128x128xf32>
    %82 = arith.addf %78, %81 : vector<128x128xf32>
    %cst_65 = arith.constant 0.000000e+00 : f32
    %83 = vector.broadcast %cst_65 : f32 to vector<128x128xf32>
    %84 = arith.cmpf ogt, %82, %83 : vector<128x128xf32>
    %85 = vector.broadcast %57 : f32 to vector<128x128xf32>
    %86 = arith.mulf %85, %82 : vector<128x128xf32>
    %87 = arith.select %84, %82, %86 : vector<128x128xi1>, vector<128x128xf32>
    %88 = arith.truncf %87 : vector<128x128xf32> to vector<128x128xbf16>
    %cst_66 = arith.constant dense<0.000000e+00> : vector<128x128xf32>
    %89 = tpu.matmul %1, %88, %cst_66 {dimension_numbers = #tpu.dot_dimension_numbers<[1], [0], [0], [1], [0, 0, 1, 1], [], []>} : vector<128x128xbf16>, vector<128x128xbf16>, vector<128x128xf32> -> vector<128x128xf32>
    %90 = arith.truncf %89 : vector<128x128xf32> to vector<128x128xbf16>
    %c1_67 = arith.constant 1 : index
    %c0_68 = arith.constant 0 : index
    %c0_69 = arith.constant 0 : index
    %91 = vector.load %arg9[%c1_67, %c0_68, %c0_69] : memref<4x128x128xbf16, #tpu.memory_space<vmem>>, vector<1x128x128xbf16>
    %92 = vector.shape_cast %91 : vector<1x128x128xbf16> to vector<128x128xbf16>
    %cst_70 = arith.constant dense<0.000000e+00> : vector<128x128xf32>
    %93 = tpu.matmul %90, %92, %cst_70 {dimension_numbers = #tpu.dot_dimension_numbers<[1], [0], [0], [1], [0, 0, 1, 1], [], []>} : vector<128x128xbf16>, vector<128x128xbf16>, vector<128x128xf32> -> vector<128x128xf32>
    %94 = vector.extract_strided_slice %68 {offsets = [0, 128], sizes = [128, 128], strides = [1, 1]} : vector<128x256xf32> to vector<128x128xf32>
    %95 = arith.addf %93, %94 : vector<128x128xf32>
    %c1_71 = arith.constant 1 : index
    %c0_72 = arith.constant 0 : index
    %c0_73 = arith.constant 0 : index
    %96 = vector.load %arg12[%c1_71, %c0_72, %c0_73] : memref<4x1x128xf32, #tpu.memory_space<vmem>>, vector<1x1x128xf32>
    %97 = vector.shape_cast %96 : vector<1x1x128xf32> to vector<1x128xf32>
    %98 = vector.broadcast %97 : vector<1x128xf32> to vector<128x128xf32>
    %99 = arith.addf %95, %98 : vector<128x128xf32>
    %cst_74 = arith.constant 0.000000e+00 : f32
    %100 = vector.broadcast %cst_74 : f32 to vector<128x128xf32>
    %101 = arith.cmpf ogt, %99, %100 : vector<128x128xf32>
    %102 = vector.broadcast %58 : f32 to vector<128x128xf32>
    %103 = arith.mulf %102, %99 : vector<128x128xf32>
    %104 = arith.select %101, %99, %103 : vector<128x128xi1>, vector<128x128xf32>
    %c0_75 = arith.constant 0 : index
    %c0_76 = arith.constant 0 : index
    %105 = vector.load %arg13[%c0_75, %c0_76] : memref<128x128xf32, #tpu.memory_space<vmem>>, vector<128x128xf32>
    tpu.vector_store %arg13[%c0_75, %c0_76], %87 {strides = array<i32>} : memref<128x128xf32, #tpu.memory_space<vmem>>, vector<128x128xf32>,
    %106 = arith.truncf %87 : vector<128x128xf32> to vector<128x128xbf16>
    %107 = arith.truncf %104 : vector<128x128xf32> to vector<128x128xbf16>
    %c2 = arith.constant 2 : index
    %c0_77 = arith.constant 0 : index
    %108 = memref.load %arg0[%c2, %c0_77] : memref<4x2xf32, #tpu.memory_space<smem>>
    %c2_78 = arith.constant 2 : index
    %c1_79 = arith.constant 1 : index
    %109 = memref.load %arg0[%c2_78, %c1_79] : memref<4x2xf32, #tpu.memory_space<smem>>
    %c2_80 = arith.constant 2 : index
    %c0_81 = arith.constant 0 : index
    %c0_82 = arith.constant 0 : index
    %110 = vector.load %arg6[%c2_80, %c0_81, %c0_82] : memref<4x128x128xbf16, #tpu.memory_space<vmem>>, vector<1x128x128xbf16>
    %111 = vector.shape_cast %110 : vector<1x128x128xbf16> to vector<128x128xbf16>
    %cst_83 = arith.constant dense<0.000000e+00> : vector<128x128xf32>
    %112 = tpu.matmul %106, %111, %cst_83 {dimension_numbers = #tpu.dot_dimension_numbers<[1], [0], [0], [1], [0, 0, 1, 1], [], []>} : vector<128x128xbf16>, vector<128x128xbf16>, vector<128x128xf32> -> vector<128x128xf32>
    %113 = arith.truncf %112 : vector<128x128xf32> to vector<128x128xbf16>
    %c2_84 = arith.constant 2 : index
    %c0_85 = arith.constant 0 : index
    %c0_86 = arith.constant 0 : index
    %114 = vector.load %arg7[%c2_84, %c0_85, %c0_86] : memref<4x128x128xbf16, #tpu.memory_space<vmem>>, vector<1x128x128xbf16>
    %115 = vector.shape_cast %114 : vector<1x128x128xbf16> to vector<128x128xbf16>
    %cst_87 = arith.constant dense<0.000000e+00> : vector<128x128xf32>
    %116 = tpu.matmul %113, %115, %cst_87 {dimension_numbers = #tpu.dot_dimension_numbers<[1], [0], [0], [1], [0, 0, 1, 1], [], []>} : vector<128x128xbf16>, vector<128x128xbf16>, vector<128x128xf32> -> vector<128x128xf32>
    %c2_88 = arith.constant 2 : index
    %c0_89 = arith.constant 0 : index
    %c0_90 = arith.constant 0 : index
    %117 = vector.load %arg8[%c2_88, %c0_89, %c0_90] : memref<4x128x256xbf16, #tpu.memory_space<vmem>>, vector<1x128x256xbf16>
    %118 = vector.shape_cast %117 : vector<1x128x256xbf16> to vector<128x256xbf16>
    %cst_91 = arith.constant dense<0.000000e+00> : vector<128x256xf32>
    %119 = tpu.matmul %107, %118, %cst_91 {dimension_numbers = #tpu.dot_dimension_numbers<[1], [0], [0], [1], [0, 0, 1, 1], [], []>} : vector<128x128xbf16>, vector<128x256xbf16>, vector<128x256xf32> -> vector<128x256xf32>
    %120 = vector.extract_strided_slice %119 {offsets = [0, 0], sizes = [128, 128], strides = [1, 1]} : vector<128x256xf32> to vector<128x128xf32>
    %c2_92 = arith.constant 2 : index
    %c0_93 = arith.constant 0 : index
    %c0_94 = arith.constant 0 : index
    %121 = vector.load %arg10[%c2_92, %c0_93, %c0_94] : memref<4x1x128xf32, #tpu.memory_space<vmem>>, vector<1x1x128xf32>
    %122 = vector.shape_cast %121 : vector<1x1x128xf32> to vector<1x128xf32>
    %123 = vector.broadcast %122 : vector<1x128xf32> to vector<128x128xf32>
    %124 = arith.addf %120, %123 : vector<128x128xf32>
    %125 = arith.truncf %116 : vector<128x128xf32> to vector<128x128xbf16>
    %cst_95 = arith.constant dense<0.000000e+00> : vector<128x128xf32>
    %126 = tpu.matmul %2, %125, %cst_95 {dimension_numbers = #tpu.dot_dimension_numbers<[1], [0], [0], [1], [0, 0, 1, 1], [], []>} : vector<128x128xbf16>, vector<128x128xbf16>, vector<128x128xf32> -> vector<128x128xf32>
    %127 = arith.truncf %124 : vector<128x128xf32> to vector<128x128xbf16>
    %cst_96 = arith.constant dense<0.000000e+00> : vector<128x128xf32>
    %128 = tpu.matmul %0, %127, %cst_96 {dimension_numbers = #tpu.dot_dimension_numbers<[1], [0], [0], [1], [0, 0, 1, 1], [], []>} : vector<128x128xbf16>, vector<128x128xbf16>, vector<128x128xf32> -> vector<128x128xf32>
    %129 = arith.addf %126, %128 : vector<128x128xf32>
    %c2_97 = arith.constant 2 : index
    %c0_98 = arith.constant 0 : index
    %c0_99 = arith.constant 0 : index
    %130 = vector.load %arg11[%c2_97, %c0_98, %c0_99] : memref<4x1x128xf32, #tpu.memory_space<vmem>>, vector<1x1x128xf32>
    %131 = vector.shape_cast %130 : vector<1x1x128xf32> to vector<1x128xf32>
    %132 = vector.broadcast %131 : vector<1x128xf32> to vector<128x128xf32>
    %133 = arith.addf %129, %132 : vector<128x128xf32>
    %cst_100 = arith.constant 0.000000e+00 : f32
    %134 = vector.broadcast %cst_100 : f32 to vector<128x128xf32>
    %135 = arith.cmpf ogt, %133, %134 : vector<128x128xf32>
    %136 = vector.broadcast %108 : f32 to vector<128x128xf32>
    %137 = arith.mulf %136, %133 : vector<128x128xf32>
    %138 = arith.select %135, %133, %137 : vector<128x128xi1>, vector<128x128xf32>
    %139 = arith.truncf %138 : vector<128x128xf32> to vector<128x128xbf16>
    %cst_101 = arith.constant dense<0.000000e+00> : vector<128x128xf32>
    %140 = tpu.matmul %1, %139, %cst_101 {dimension_numbers = #tpu.dot_dimension_numbers<[1], [0], [0], [1], [0, 0, 1, 1], [], []>} : vector<128x128xbf16>, vector<128x128xbf16>, vector<128x128xf32> -> vector<128x128xf32>
    %141 = arith.truncf %140 : vector<128x128xf32> to vector<128x128xbf16>
    %c2_102 = arith.constant 2 : index
    %c0_103 = arith.constant 0 : index
    %c0_104 = arith.constant 0 : index
    %142 = vector.load %arg9[%c2_102, %c0_103, %c0_104] : memref<4x128x128xbf16, #tpu.memory_space<vmem>>, vector<1x128x128xbf16>
    %143 = vector.shape_cast %142 : vector<1x128x128xbf16> to vector<128x128xbf16>
    %cst_105 = arith.constant dense<0.000000e+00> : vector<128x128xf32>
    %144 = tpu.matmul %141, %143, %cst_105 {dimension_numbers = #tpu.dot_dimension_numbers<[1], [0], [0], [1], [0, 0, 1, 1], [], []>} : vector<128x128xbf16>, vector<128x128xbf16>, vector<128x128xf32> -> vector<128x128xf32>
    %145 = vector.extract_strided_slice %119 {offsets = [0, 128], sizes = [128, 128], strides = [1, 1]} : vector<128x256xf32> to vector<128x128xf32>
    %146 = arith.addf %144, %145 : vector<128x128xf32>
    %c2_106 = arith.constant 2 : index
    %c0_107 = arith.constant 0 : index
    %c0_108 = arith.constant 0 : index
    %147 = vector.load %arg12[%c2_106, %c0_107, %c0_108] : memref<4x1x128xf32, #tpu.memory_space<vmem>>, vector<1x1x128xf32>
    %148 = vector.shape_cast %147 : vector<1x1x128xf32> to vector<1x128xf32>
    %149 = vector.broadcast %148 : vector<1x128xf32> to vector<128x128xf32>
    %150 = arith.addf %146, %149 : vector<128x128xf32>
    %cst_109 = arith.constant 0.000000e+00 : f32
    %151 = vector.broadcast %cst_109 : f32 to vector<128x128xf32>
    %152 = arith.cmpf ogt, %150, %151 : vector<128x128xf32>
    %153 = vector.broadcast %109 : f32 to vector<128x128xf32>
    %154 = arith.mulf %153, %150 : vector<128x128xf32>
    %155 = arith.select %152, %150, %154 : vector<128x128xi1>, vector<128x128xf32>
    %156 = arith.truncf %138 : vector<128x128xf32> to vector<128x128xbf16>
    %157 = arith.truncf %155 : vector<128x128xf32> to vector<128x128xbf16>
    %c3 = arith.constant 3 : index
    %c0_110 = arith.constant 0 : index
    %158 = memref.load %arg0[%c3, %c0_110] : memref<4x2xf32, #tpu.memory_space<smem>>
    %c3_111 = arith.constant 3 : index
    %c1_112 = arith.constant 1 : index
    %159 = memref.load %arg0[%c3_111, %c1_112] : memref<4x2xf32, #tpu.memory_space<smem>>
    %c3_113 = arith.constant 3 : index
    %c0_114 = arith.constant 0 : index
    %c0_115 = arith.constant 0 : index
    %160 = vector.load %arg6[%c3_113, %c0_114, %c0_115] : memref<4x128x128xbf16, #tpu.memory_space<vmem>>, vector<1x128x128xbf16>
    %161 = vector.shape_cast %160 : vector<1x128x128xbf16> to vector<128x128xbf16>
    %cst_116 = arith.constant dense<0.000000e+00> : vector<128x128xf32>
    %162 = tpu.matmul %156, %161, %cst_116 {dimension_numbers = #tpu.dot_dimension_numbers<[1], [0], [0], [1], [0, 0, 1, 1], [], []>} : vector<128x128xbf16>, vector<128x128xbf16>, vector<128x128xf32> -> vector<128x128xf32>
    %163 = arith.truncf %162 : vector<128x128xf32> to vector<128x128xbf16>
    %c3_117 = arith.constant 3 : index
    %c0_118 = arith.constant 0 : index
    %c0_119 = arith.constant 0 : index
    %164 = vector.load %arg7[%c3_117, %c0_118, %c0_119] : memref<4x128x128xbf16, #tpu.memory_space<vmem>>, vector<1x128x128xbf16>
    %165 = vector.shape_cast %164 : vector<1x128x128xbf16> to vector<128x128xbf16>
    %cst_120 = arith.constant dense<0.000000e+00> : vector<128x128xf32>
    %166 = tpu.matmul %163, %165, %cst_120 {dimension_numbers = #tpu.dot_dimension_numbers<[1], [0], [0], [1], [0, 0, 1, 1], [], []>} : vector<128x128xbf16>, vector<128x128xbf16>, vector<128x128xf32> -> vector<128x128xf32>
    %c3_121 = arith.constant 3 : index
    %c0_122 = arith.constant 0 : index
    %c0_123 = arith.constant 0 : index
    %167 = vector.load %arg8[%c3_121, %c0_122, %c0_123] : memref<4x128x256xbf16, #tpu.memory_space<vmem>>, vector<1x128x256xbf16>
    %168 = vector.shape_cast %167 : vector<1x128x256xbf16> to vector<128x256xbf16>
    %cst_124 = arith.constant dense<0.000000e+00> : vector<128x256xf32>
    %169 = tpu.matmul %157, %168, %cst_124 {dimension_numbers = #tpu.dot_dimension_numbers<[1], [0], [0], [1], [0, 0, 1, 1], [], []>} : vector<128x128xbf16>, vector<128x256xbf16>, vector<128x256xf32> -> vector<128x256xf32>
    %170 = vector.extract_strided_slice %169 {offsets = [0, 0], sizes = [128, 128], strides = [1, 1]} : vector<128x256xf32> to vector<128x128xf32>
    %c3_125 = arith.constant 3 : index
    %c0_126 = arith.constant 0 : index
    %c0_127 = arith.constant 0 : index
    %171 = vector.load %arg10[%c3_125, %c0_126, %c0_127] : memref<4x1x128xf32, #tpu.memory_space<vmem>>, vector<1x1x128xf32>
    %172 = vector.shape_cast %171 : vector<1x1x128xf32> to vector<1x128xf32>
    %173 = vector.broadcast %172 : vector<1x128xf32> to vector<128x128xf32>
    %174 = arith.addf %170, %173 : vector<128x128xf32>
    %175 = arith.truncf %166 : vector<128x128xf32> to vector<128x128xbf16>
    %cst_128 = arith.constant dense<0.000000e+00> : vector<128x128xf32>
    %176 = tpu.matmul %2, %175, %cst_128 {dimension_numbers = #tpu.dot_dimension_numbers<[1], [0], [0], [1], [0, 0, 1, 1], [], []>} : vector<128x128xbf16>, vector<128x128xbf16>, vector<128x128xf32> -> vector<128x128xf32>
    %177 = arith.truncf %174 : vector<128x128xf32> to vector<128x128xbf16>
    %cst_129 = arith.constant dense<0.000000e+00> : vector<128x128xf32>
    %178 = tpu.matmul %0, %177, %cst_129 {dimension_numbers = #tpu.dot_dimension_numbers<[1], [0], [0], [1], [0, 0, 1, 1], [], []>} : vector<128x128xbf16>, vector<128x128xbf16>, vector<128x128xf32> -> vector<128x128xf32>
    %179 = arith.addf %176, %178 : vector<128x128xf32>
    %c3_130 = arith.constant 3 : index
    %c0_131 = arith.constant 0 : index
    %c0_132 = arith.constant 0 : index
    %180 = vector.load %arg11[%c3_130, %c0_131, %c0_132] : memref<4x1x128xf32, #tpu.memory_space<vmem>>, vector<1x1x128xf32>
    %181 = vector.shape_cast %180 : vector<1x1x128xf32> to vector<1x128xf32>
    %182 = vector.broadcast %181 : vector<1x128xf32> to vector<128x128xf32>
    %183 = arith.addf %179, %182 : vector<128x128xf32>
    %cst_133 = arith.constant 0.000000e+00 : f32
    %184 = vector.broadcast %cst_133 : f32 to vector<128x128xf32>
    %185 = arith.cmpf ogt, %183, %184 : vector<128x128xf32>
    %186 = vector.broadcast %158 : f32 to vector<128x128xf32>
    %187 = arith.mulf %186, %183 : vector<128x128xf32>
    %188 = arith.select %185, %183, %187 : vector<128x128xi1>, vector<128x128xf32>
    %189 = arith.truncf %188 : vector<128x128xf32> to vector<128x128xbf16>
    %cst_134 = arith.constant dense<0.000000e+00> : vector<128x128xf32>
    %190 = tpu.matmul %1, %189, %cst_134 {dimension_numbers = #tpu.dot_dimension_numbers<[1], [0], [0], [1], [0, 0, 1, 1], [], []>} : vector<128x128xbf16>, vector<128x128xbf16>, vector<128x128xf32> -> vector<128x128xf32>
    %191 = arith.truncf %190 : vector<128x128xf32> to vector<128x128xbf16>
    %c3_135 = arith.constant 3 : index
    %c0_136 = arith.constant 0 : index
    %c0_137 = arith.constant 0 : index
    %192 = vector.load %arg9[%c3_135, %c0_136, %c0_137] : memref<4x128x128xbf16, #tpu.memory_space<vmem>>, vector<1x128x128xbf16>
    %193 = vector.shape_cast %192 : vector<1x128x128xbf16> to vector<128x128xbf16>
    %cst_138 = arith.constant dense<0.000000e+00> : vector<128x128xf32>
    %194 = tpu.matmul %191, %193, %cst_138 {dimension_numbers = #tpu.dot_dimension_numbers<[1], [0], [0], [1], [0, 0, 1, 1], [], []>} : vector<128x128xbf16>, vector<128x128xbf16>, vector<128x128xf32> -> vector<128x128xf32>
    %195 = vector.extract_strided_slice %169 {offsets = [0, 128], sizes = [128, 128], strides = [1, 1]} : vector<128x256xf32> to vector<128x128xf32>
    %196 = arith.addf %194, %195 : vector<128x128xf32>
    %c3_139 = arith.constant 3 : index
    %c0_140 = arith.constant 0 : index
    %c0_141 = arith.constant 0 : index
    %197 = vector.load %arg12[%c3_139, %c0_140, %c0_141] : memref<4x1x128xf32, #tpu.memory_space<vmem>>, vector<1x1x128xf32>
    %198 = vector.shape_cast %197 : vector<1x1x128xf32> to vector<1x128xf32>
    %199 = vector.broadcast %198 : vector<1x128xf32> to vector<128x128xf32>
    %200 = arith.addf %196, %199 : vector<128x128xf32>
    %cst_142 = arith.constant 0.000000e+00 : f32
    %201 = vector.broadcast %cst_142 : f32 to vector<128x128xf32>
    %202 = arith.cmpf ogt, %200, %201 : vector<128x128xf32>
    %203 = vector.broadcast %159 : f32 to vector<128x128xf32>
    %204 = arith.mulf %203, %200 : vector<128x128xf32>
    %205 = arith.select %202, %200, %204 : vector<128x128xi1>, vector<128x128xf32>
    %c0_143 = arith.constant 0 : index
    %c0_144 = arith.constant 0 : index
    %206 = vector.load %arg14[%c0_143, %c0_144] : memref<128x128xf32, #tpu.memory_space<vmem>>, vector<128x128xf32>
    tpu.vector_store %arg14[%c0_143, %c0_144], %188 {strides = array<i32>} : memref<128x128xf32, #tpu.memory_space<vmem>>, vector<128x128xf32>,
    %c0_145 = arith.constant 0 : index
    %c0_146 = arith.constant 0 : index
    %207 = vector.load %arg15[%c0_145, %c0_146] : memref<128x128xf32, #tpu.memory_space<vmem>>, vector<128x128xf32>
    tpu.vector_store %arg15[%c0_145, %c0_146], %205 {strides = array<i32>} : memref<128x128xf32, #tpu.memory_space<vmem>>, vector<128x128xf32>,
    return
  }
}

</mosaic_0001>

<llo_original>
// kernel: ae_egcn_forward.1
$region0: #{ae_egcn_forward.1}
  #allocation0 [shape = 'u32[]', space=smem, size = 0x4, offset = 0x4, fixed_abs, tag = 'smem constant byte address 0x4 - core index']
  #allocation1 [shape = 'u32[144,128]{1,0:T(1,128)}', space=vmem, size = 0x12000, scoped, tag = 'internal scratch']
  %s0 = inlined_call_operand.vmem [shape: f32[4,2], index: 0, kind: input, shape index: {}]
  %s1 = inlined_call_operand.vmem [shape: f32[128,128], index: 1, kind: input, shape index: {}]
  %s2 = inlined_call_operand.vmem [shape: f32[128,128], index: 2, kind: input, shape index: {}]
  %s3 = inlined_call_operand.vmem [shape: bf16[128,128], index: 3, kind: input, shape index: {}]
  %s4 = inlined_call_operand.vmem [shape: bf16[128,128], index: 4, kind: input, shape index: {}]
  %s5 = inlined_call_operand.vmem [shape: bf16[128,128], index: 5, kind: input, shape index: {}]
  %s6 = inlined_call_operand.vmem [shape: bf16[4,128,128], index: 6, kind: input, shape index: {}]
  %s7 = inlined_call_operand.vmem [shape: bf16[4,128,128], index: 7, kind: input, shape index: {}]
  %s8 = inlined_call_operand.vmem [shape: bf16[4,128,256], index: 8, kind: input, shape index: {}]
  %s9 = inlined_call_operand.vmem [shape: bf16[4,128,128], index: 9, kind: input, shape index: {}]
  %s10 = inlined_call_operand.vmem [shape: f32[4,1,128], index: 10, kind: input, shape index: {}]
  %s11 = inlined_call_operand.vmem [shape: f32[4,1,128], index: 11, kind: input, shape index: {}]
  %s12 = inlined_call_operand.vmem [shape: f32[4,1,128], index: 12, kind: input, shape index: {}]
  %s13 = inlined_call_operand.vmem [shape: f32[128,128], index: 13, kind: output, shape index: {0}]
  %s14 = inlined_call_operand.vmem [shape: f32[128,128], index: 14, kind: output, shape index: {1}]
  %s15 = inlined_call_operand.vmem [shape: f32[128,128], index: 15, kind: output, shape index: {2}]
  %16 = xla_tuple %s13, %s14, %s15
  %s17 = sld [smem:[#allocation0]]
  $region82: #{ae_egcn_forward.1} parent=0
    _
  %s19 = ssub.s32 1, %s17
  %s20 = scalar_select 0, %s19, %s17
  $region1: #{ae_egcn_forward.1} parent=0
    #allocation2 [shape = 'u8[2048]{0}', space=smem, size = 0x800, scoped, tag = 'input window, operand 0, single buffered']
    #allocation3 [shape = 's32[1]{0}', space=sflag, size = 0x4, scoped, tag = 'scoped memory for ae_egcn_forward.1']
    %21 = vsyncpa [#allocation3], 0
    // Predicated region
    $region2: #{ae_egcn_forward.1} parent=1 // pred_check
      _
    $region3: #{ae_egcn_forward.1} parent=1 // pred_check_branch
      %23 = sbr.rel (0) target = $region5
    $region4: #{ae_egcn_forward.1} parent=1 // pred_region
      %s25 = ssub.s32 64, 64
      %26 = vsyncadd [#allocation3], %s25
      %s28 = sshll.u32 %s0, 4
      %s29 = int_to_ptr.vmem [resolvable:$true] %s28
      %31 = dma.vmem_to_smem %s29, 64, [#allocation2], [#allocation3]
    $region5: #{ae_egcn_forward.1} parent=1 // pred_fallthru
      _
    // Predicated region
    $region6: #{ae_egcn_forward.1} parent=1 // pred_check
      _
    $region7: #{ae_egcn_forward.1} parent=1 // pred_check_branch
      %33 = sbr.rel (0) target = $region9
    $region8: #{ae_egcn_forward.1} parent=1 // pred_region
      _
    $region9: #{ae_egcn_forward.1} parent=1 // pred_fallthru
      _
    // Predicated region
    $region10: #{ae_egcn_forward.1} parent=1 // pred_check
      _
    $region11: #{ae_egcn_forward.1} parent=1 // pred_check_branch
      %35 = sbr.rel (0) target = $region13
    $region12: #{ae_egcn_forward.1} parent=1 // pred_region
      _
    $region13: #{ae_egcn_forward.1} parent=1 // pred_fallthru
      _
    // Predicated region
    $region14: #{ae_egcn_forward.1} parent=1 // pred_check
      _
    $region15: #{ae_egcn_forward.1} parent=1 // pred_check_branch
      %37 = sbr.rel (0) target = $region17
    $region16: #{ae_egcn_forward.1} parent=1 // pred_region
      _
    $region17: #{ae_egcn_forward.1} parent=1 // pred_fallthru
      _
    // Predicated region
    $region18: #{ae_egcn_forward.1} parent=1 // pred_check
      _
    $region19: #{ae_egcn_forward.1} parent=1 // pred_check_branch
      %39 = sbr.rel (0) target = $region21
    $region20: #{ae_egcn_forward.1} parent=1 // pred_region
      _
    $region21: #{ae_egcn_forward.1} parent=1 // pred_fallthru
      _
    // Predicated region
    $region22: #{ae_egcn_forward.1} parent=1 // pred_check
      _
    $region23: #{ae_egcn_forward.1} parent=1 // pred_check_branch
      %41 = sbr.rel (0) target = $region25
    $region24: #{ae_egcn_forward.1} parent=1 // pred_region
      _
    $region25: #{ae_egcn_forward.1} parent=1 // pred_fallthru
      _
    // Predicated region
    $region26: #{ae_egcn_forward.1} parent=1 // pred_check
      _
    $region27: #{ae_egcn_forward.1} parent=1 // pred_check_branch
      %43 = sbr.rel (0) target = $region29
    $region28: #{ae_egcn_forward.1} parent=1 // pred_region
      _
    $region29: #{ae_egcn_forward.1} parent=1 // pred_fallthru
      _
    // Predicated region
    $region30: #{ae_egcn_forward.1} parent=1 // pred_check
      _
    $region31: #{ae_egcn_forward.1} parent=1 // pred_check_branch
      %45 = sbr.rel (0) target = $region33
    $region32: #{ae_egcn_forward.1} parent=1 // pred_region
      _
    $region33: #{ae_egcn_forward.1} parent=1 // pred_fallthru
      _
    // Predicated region
    $region34: #{ae_egcn_forward.1} parent=1 // pred_check
      _
    $region35: #{ae_egcn_forward.1} parent=1 // pred_check_branch
      %47 = sbr.rel (0) target = $region37
    $region36: #{ae_egcn_forward.1} parent=1 // pred_region
      _
    $region37: #{ae_egcn_forward.1} parent=1 // pred_fallthru
      _
    // Predicated region
    $region38: #{ae_egcn_forward.1} parent=1 // pred_check
      _
    $region39: #{ae_egcn_forward.1} parent=1 // pred_check_branch
      %49 = sbr.rel (0) target = $region41
    $region40: #{ae_egcn_forward.1} parent=1 // pred_region
      _
    $region41: #{ae_egcn_forward.1} parent=1 // pred_fallthru
      _
    // Predicated region
    $region42: #{ae_egcn_forward.1} parent=1 // pred_check
      _
    $region43: #{ae_egcn_forward.1} parent=1 // pred_check_branch
      %51 = sbr.rel (0) target = $region45
    $region44: #{ae_egcn_forward.1} parent=1 // pred_region
      _
    $region45: #{ae_egcn_forward.1} parent=1 // pred_fallthru
      _
    // Predicated region
    $region46: #{ae_egcn_forward.1} parent=1 // pred_check
      _
    $region47: #{ae_egcn_forward.1} parent=1 // pred_check_branch
      %53 = sbr.rel (0) target = $region49
    $region48: #{ae_egcn_forward.1} parent=1 // pred_region
      _
    $region49: #{ae_egcn_forward.1} parent=1 // pred_fallthru
      _
    // Predicated region
    $region50: #{ae_egcn_forward.1} parent=1 // pred_check
      _
    $region51: #{ae_egcn_forward.1} parent=1 // pred_check_branch
      %55 = sbr.rel (0) target = $region53
    $region52: #{ae_egcn_forward.1} parent=1 // pred_region
      _
    $region53: #{ae_egcn_forward.1} parent=1 // pred_fallthru
      _
    // Predicated region
    $region54: #{ae_egcn_forward.1} parent=1 // pred_check
      _
    $region55: #{ae_egcn_forward.1} parent=1 // pred_check_branch
      %57 = sbr.rel (0) target = $region57
    $region56: #{ae_egcn_forward.1} parent=1 // pred_region
      %58 = dma.done [#allocation3], 64
    $region57: #{ae_egcn_forward.1} parent=1 // pred_fallthru
      _
    %59 = sfence
    %v61 = vld [vmem:[%s3] sm:$0xf]
    %v62 = vld [vmem:[%s3 + $0x4] sm:$0xf]
    %v63 = vld [vmem:[%s3 + $0x8] sm:$0xf]
    %v64 = vld [vmem:[%s3 + $0xc] sm:$0xf]
    %v65 = vld [vmem:[%s3 + $0x10] sm:$0xf]
    %v66 = vld [vmem:[%s3 + $0x14] sm:$0xf]
    %v67 = vld [vmem:[%s3 + $0x18] sm:$0xf]
    %v68 = vld [vmem:[%s3 + $0x1c] sm:$0xf]
    %v69 = vld [vmem:[%s3 + $0x20] sm:$0xf]
    %v70 = vld [vmem:[%s3 + $0x24] sm:$0xf]
    %v71 = vld [vmem:[%s3 + $0x28] sm:$0xf]
    %v72 = vld [vmem:[%s3 + $0x2c] sm:$0xf]
    %v73 = vld [vmem:[%s3 + $0x30] sm:$0xf]
    %v74 = vld [vmem:[%s3 + $0x34] sm:$0xf]
    %v75 = vld [vmem:[%s3 + $0x38] sm:$0xf]
    %v76 = vld [vmem:[%s3 + $0x3c] sm:$0xf]
    %v77 = vld [vmem:[%s4] sm:$0xf]
    %v78 = vld [vmem:[%s4 + $0x4] sm:$0xf]
    %v79 = vld [vmem:[%s4 + $0x8] sm:$0xf]
    %v80 = vld [vmem:[%s4 + $0xc] sm:$0xf]
    %v81 = vld [vmem:[%s4 + $0x10] sm:$0xf]
    %v82 = vld [vmem:[%s4 + $0x14] sm:$0xf]
    %v83 = vld [vmem:[%s4 + $0x18] sm:$0xf]
    %v84 = vld [vmem:[%s4 + $0x1c] sm:$0xf]
    %v85 = vld [vmem:[%s4 + $0x20] sm:$0xf]
    %v86 = vld [vmem:[%s4 + $0x24] sm:$0xf]
    %v87 = vld [vmem:[%s4 + $0x28] sm:$0xf]
    %v88 = vld [vmem:[%s4 + $0x2c] sm:$0xf]
    %v89 = vld [vmem:[%s4 + $0x30] sm:$0xf]
    %v90 = vld [vmem:[%s4 + $0x34] sm:$0xf]
    %v91 = vld [vmem:[%s4 + $0x38] sm:$0xf]
    %v92 = vld [vmem:[%s4 + $0x3c] sm:$0xf]
    %v93 = vld [vmem:[%s5] sm:$0xf]
    %v94 = vld [vmem:[%s5 + $0x4] sm:$0xf]
    %v95 = vld [vmem:[%s5 + $0x8] sm:$0xf]
    %v96 = vld [vmem:[%s5 + $0xc] sm:$0xf]
    %v97 = vld [vmem:[%s5 + $0x10] sm:$0xf]
    %v98 = vld [vmem:[%s5 + $0x14] sm:$0xf]
    %v99 = vld [vmem:[%s5 + $0x18] sm:$0xf]
    %v100 = vld [vmem:[%s5 + $0x1c] sm:$0xf]
    %v101 = vld [vmem:[%s5 + $0x20] sm:$0xf]
    %v102 = vld [vmem:[%s5 + $0x24] sm:$0xf]
    %v103 = vld [vmem:[%s5 + $0x28] sm:$0xf]
    %v104 = vld [vmem:[%s5 + $0x2c] sm:$0xf]
    %v105 = vld [vmem:[%s5 + $0x30] sm:$0xf]
    %v106 = vld [vmem:[%s5 + $0x34] sm:$0xf]
    %v107 = vld [vmem:[%s5 + $0x38] sm:$0xf]
    %v108 = vld [vmem:[%s5 + $0x3c] sm:$0xf]
    %v109 = vld [vmem:[%s1] sm:$0xff]
    %v110 = vld [vmem:[%s1 + $0x8] sm:$0xff]
    %v111 = vld [vmem:[%s1 + $0x10] sm:$0xff]
    %v112 = vld [vmem:[%s1 + $0x18] sm:$0xff]
    %v113 = vld [vmem:[%s1 + $0x20] sm:$0xff]
    %v114 = vld [vmem:[%s1 + $0x28] sm:$0xff]
    %v115 = vld [vmem:[%s1 + $0x30] sm:$0xff]
    %v116 = vld [vmem:[%s1 + $0x38] sm:$0xff]
    %v117 = vld [vmem:[%s1 + $0x40] sm:$0xff]
    %v118 = vld [vmem:[%s1 + $0x48] sm:$0xff]
    %v119 = vld [vmem:[%s1 + $0x50] sm:$0xff]
    %v120 = vld [vmem:[%s1 + $0x58] sm:$0xff]
    %v121 = vld [vmem:[%s1 + $0x60] sm:$0xff]
    %v122 = vld [vmem:[%s1 + $0x68] sm:$0xff]
    %v123 = vld [vmem:[%s1 + $0x70] sm:$0xff]
    %v124 = vld [vmem:[%s1 + $0x78] sm:$0xff]
    %v125 = vpack.c.bf16 %v110, %v109
    %v126 = vpack.c.bf16 %v112, %v111
    %v127 = vpack.c.bf16 %v114, %v113
    %v128 = vpack.c.bf16 %v116, %v115
    %v129 = vpack.c.bf16 %v118, %v117
    %v130 = vpack.c.bf16 %v120, %v119
    %v131 = vpack.c.bf16 %v122, %v121
    %v132 = vpack.c.bf16 %v124, %v123
    %v133 = vld [vmem:[%s2] sm:$0xff]
    %v134 = vld [vmem:[%s2 + $0x8] sm:$0xff]
    %v135 = vld [vmem:[%s2 + $0x10] sm:$0xff]
    %v136 = vld [vmem:[%s2 + $0x18] sm:$0xff]
    %v137 = vld [vmem:[%s2 + $0x20] sm:$0xff]
    %v138 = vld [vmem:[%s2 + $0x28] sm:$0xff]
    %v139 = vld [vmem:[%s2 + $0x30] sm:$0xff]
    %v140 = vld [vmem:[%s2 + $0x38] sm:$0xff]
    %v141 = vld [vmem:[%s2 + $0x40] sm:$0xff]
    %v142 = vld [vmem:[%s2 + $0x48] sm:$0xff]
    %v143 = vld [vmem:[%s2 + $0x50] sm:$0xff]
    %v144 = vld [vmem:[%s2 + $0x58] sm:$0xff]
    %v145 = vld [vmem:[%s2 + $0x60] sm:$0xff]
    %v146 = vld [vmem:[%s2 + $0x68] sm:$0xff]
    %v147 = vld [vmem:[%s2 + $0x70] sm:$0xff]
    %v148 = vld [vmem:[%s2 + $0x78] sm:$0xff]
    %v149 = vpack.c.bf16 %v134, %v133
    %v150 = vpack.c.bf16 %v136, %v135
    %v151 = vpack.c.bf16 %v138, %v137
    %v152 = vpack.c.bf16 %v140, %v139
    %v153 = vpack.c.bf16 %v142, %v141
    %v154 = vpack.c.bf16 %v144, %v143
    %v155 = vpack.c.bf16 %v146, %v145
    %v156 = vpack.c.bf16 %v148, %v147
    %s157 = sld [smem:[#allocation2]]
    %s158 = sld [smem:[#allocation2 + $0x1]]
    %v159 = vld [vmem:[%s6] sm:$0xf]
    %v160 = vld [vmem:[%s6 + $0x4] sm:$0xf]
    %v161 = vld [vmem:[%s6 + $0x8] sm:$0xf]
    %v162 = vld [vmem:[%s6 + $0xc] sm:$0xf]
    %v163 = vld [vmem:[%s6 + $0x10] sm:$0xf]
    %v164 = vld [vmem:[%s6 + $0x14] sm:$0xf]
    %v165 = vld [vmem:[%s6 + $0x18] sm:$0xf]
    %v166 = vld [vmem:[%s6 + $0x1c] sm:$0xf]
    %v167 = vld [vmem:[%s6 + $0x20] sm:$0xf]
    %v168 = vld [vmem:[%s6 + $0x24] sm:$0xf]
    %v169 = vld [vmem:[%s6 + $0x28] sm:$0xf]
    %v170 = vld [vmem:[%s6 + $0x2c] sm:$0xf]
    %v171 = vld [vmem:[%s6 + $0x30] sm:$0xf]
    %v172 = vld [vmem:[%s6 + $0x34] sm:$0xf]
    %v173 = vld [vmem:[%s6 + $0x38] sm:$0xf]
    %v174 = vld [vmem:[%s6 + $0x3c] sm:$0xf]
    %v191 = vunpack.c.l.b16 %v159
    %v192 = vunpack.c.l.b16 %v160
    %v193 = vunpack.c.l.b16 %v161
    %v194 = vunpack.c.l.b16 %v162
    %v195 = vunpack.c.l.b16 %v163
    %v196 = vunpack.c.l.b16 %v164
    %v197 = vunpack.c.l.b16 %v165
    %v198 = vunpack.c.l.b16 %v166
    %v199 = vunpack.c.l.b16 %v167
    %v200 = vunpack.c.l.b16 %v168
    %v201 = vunpack.c.l.b16 %v169
    %v202 = vunpack.c.l.b16 %v170
    %v203 = vunpack.c.l.b16 %v171
    %v204 = vunpack.c.l.b16 %v172
    %v205 = vunpack.c.l.b16 %v173
    %v206 = vunpack.c.l.b16 %v174
    %v207 = vpack.c.b16 %v192, %v191
    %v208 = vpack.c.b16 %v194, %v193
    %v209 = vpack.c.b16 %v196, %v195
    %v210 = vpack.c.b16 %v198, %v197
    %v211 = vpack.c.b16 %v200, %v199
    %v212 = vpack.c.b16 %v202, %v201
    %v213 = vpack.c.b16 %v204, %v203
    %v214 = vpack.c.b16 %v206, %v205
    %223 = vmatprep.subr.bf16.mxu0 0
    %224 = vmatpush1.bf16.msra.mxu0 %v214
    %225 = vmatprep.subr.bf16.mxu0 0
    %226 = vmatpush1.bf16.msra.mxu0 %v213
    %227 = vmatprep.subr.bf16.mxu0 0
    %228 = vmatpush1.bf16.msra.mxu0 %v212
    %229 = vmatprep.subr.bf16.mxu0 0
    %230 = vmatpush1.bf16.msra.mxu0 %v211
    %231 = vmatprep.subr.bf16.mxu0 0
    %232 = vmatpush1.bf16.msra.mxu0 %v210
    %233 = vmatprep.subr.bf16.mxu0 0
    %234 = vmatpush1.bf16.msra.mxu0 %v209
    %235 = vmatprep.subr.bf16.mxu0 0
    %236 = vmatpush1.bf16.msra.mxu0 %v208
    %237 = vmatprep.subr.bf16.mxu0 0
    %238 = vmatpush1.bf16.msra.mxu0 %v207
    %239 = vmatprep.subr.bf16.mxu0 0
    %240 = vmatpush2.bf16.msra.mxu0 0
    %241 = vmatprep.subr.bf16.mxu0 0
    %242 = vmatpush2.bf16.msra.mxu0 0
    %243 = vmatprep.subr.bf16.mxu0 0
    %244 = vmatpush2.bf16.msra.mxu0 0
    %245 = vmatprep.subr.bf16.mxu0 0
    %246 = vmatpush2.bf16.msra.mxu0 0
    %247 = vmatprep.subr.bf16.mxu0 0
    %248 = vmatpush2.bf16.msra.mxu0 0
    %249 = vmatprep.subr.bf16.mxu0 0
    %250 = vmatpush2.bf16.msra.mxu0 0
    %251 = vmatprep.subr.bf16.mxu0 0
    %252 = vmatpush2.bf16.msra.mxu0 0
    %253 = vmatprep.subr.bf16.mxu0 0
    %254 = vmatpush2.bf16.msra.mxu0 0
    %255 = vmatprep.mubr.bf16.mxu0 0
    %256 = vmatmul.mubr.bf16.gmra.mxu0 %v125
    %v257 = vpop.f32.mrf.mxu0
    %v258 = vadd.f32 0.0, %v257
    %v259 = vpop.f32.mrf.mxu0
    %v260 = vpop.f32.mrf.mxu0
    %v261 = vadd.f32 0.0, %v260
    %v262 = vpop.f32.mrf.mxu0
    %263 = vmatprep.mubr.bf16.mxu0 0
    %264 = vmatmul.mubr.bf16.gmra.mxu0 %v126
    %v265 = vpop.f32.mrf.mxu0
    %v266 = vadd.f32 0.0, %v265
    %v267 = vpop.f32.mrf.mxu0
    %v268 = vpop.f32.mrf.mxu0
    %v269 = vadd.f32 0.0, %v268
    %v270 = vpop.f32.mrf.mxu0
    %271 = vmatprep.mubr.bf16.mxu0 0
    %272 = vmatmul.mubr.bf16.gmra.mxu0 %v127
    %v273 = vpop.f32.mrf.mxu0
    %v274 = vadd.f32 0.0, %v273
    %v275 = vpop.f32.mrf.mxu0
    %v276 = vpop.f32.mrf.mxu0
    %v277 = vadd.f32 0.0, %v276
    %v278 = vpop.f32.mrf.mxu0
    %279 = vmatprep.mubr.bf16.mxu0 0
    %280 = vmatmul.mubr.bf16.gmra.mxu0 %v128
    %v281 = vpop.f32.mrf.mxu0
    %v282 = vadd.f32 0.0, %v281
    %v283 = vpop.f32.mrf.mxu0
    %v284 = vpop.f32.mrf.mxu0
    %v285 = vadd.f32 0.0, %v284
    %v286 = vpop.f32.mrf.mxu0
    %287 = vmatprep.mubr.bf16.mxu0 0
    %288 = vmatmul.mubr.bf16.gmra.mxu0 %v129
    %v289 = vpop.f32.mrf.mxu0
    %v290 = vadd.f32 0.0, %v289
    %v291 = vpop.f32.mrf.mxu0
    %v292 = vpop.f32.mrf.mxu0
    %v293 = vadd.f32 0.0, %v292
    %v294 = vpop.f32.mrf.mxu0
    %295 = vmatprep.mubr.bf16.mxu0 0
    %296 = vmatmul.mubr.bf16.gmra.mxu0 %v130
    %v297 = vpop.f32.mrf.mxu0
    %v298 = vadd.f32 0.0, %v297
    %v299 = vpop.f32.mrf.mxu0
    %v300 = vpop.f32.mrf.mxu0
    %v301 = vadd.f32 0.0, %v300
    %v302 = vpop.f32.mrf.mxu0
    %303 = vmatprep.mubr.bf16.mxu0 0
    %304 = vmatmul.mubr.bf16.gmra.mxu0 %v131
    %v305 = vpop.f32.mrf.mxu0
    %v306 = vadd.f32 0.0, %v305
    %v307 = vpop.f32.mrf.mxu0
    %v308 = vpop.f32.mrf.mxu0
    %v309 = vadd.f32 0.0, %v308
    %v310 = vpop.f32.mrf.mxu0
    %311 = vmatprep.mubr.bf16.mxu0 0
    %312 = vmatmul.mubr.bf16.gmra.mxu0 %v132
    %v313 = vpop.f32.mrf.mxu0
    %v314 = vadd.f32 0.0, %v313
    %v315 = vpop.f32.mrf.mxu0
    %v316 = vpop.f32.mrf.mxu0
    %v317 = vadd.f32 0.0, %v316
    %v318 = vpop.f32.mrf.mxu0
    %319 = vdwg.mxu0
    %v320 = vpack.c.bf16 %v261, %v258
    %v321 = vpack.c.bf16 %v269, %v266
    %v322 = vpack.c.bf16 %v277, %v274
    %v323 = vpack.c.bf16 %v285, %v282
    %v324 = vpack.c.bf16 %v293, %v290
    %v325 = vpack.c.bf16 %v301, %v298
    %v326 = vpack.c.bf16 %v309, %v306
    %v327 = vpack.c.bf16 %v317, %v314
    %v328 = vld [vmem:[%s7] sm:$0xf]
    %v329 = vld [vmem:[%s7 + $0x4] sm:$0xf]
    %v330 = vld [vmem:[%s7 + $0x8] sm:$0xf]
    %v331 = vld [vmem:[%s7 + $0xc] sm:$0xf]
    %v332 = vld [vmem:[%s7 + $0x10] sm:$0xf]
    %v333 = vld [vmem:[%s7 + $0x14] sm:$0xf]
    %v334 = vld [vmem:[%s7 + $0x18] sm:$0xf]
    %v335 = vld [vmem:[%s7 + $0x1c] sm:$0xf]
    %v336 = vld [vmem:[%s7 + $0x20] sm:$0xf]
    %v337 = vld [vmem:[%s7 + $0x24] sm:$0xf]
    %v338 = vld [vmem:[%s7 + $0x28] sm:$0xf]
    %v339 = vld [vmem:[%s7 + $0x2c] sm:$0xf]
    %v340 = vld [vmem:[%s7 + $0x30] sm:$0xf]
    %v341 = vld [vmem:[%s7 + $0x34] sm:$0xf]
    %v342 = vld [vmem:[%s7 + $0x38] sm:$0xf]
    %v343 = vld [vmem:[%s7 + $0x3c] sm:$0xf]
    %v360 = vunpack.c.l.b16 %v328
    %v361 = vunpack.c.l.b16 %v329
    %v362 = vunpack.c.l.b16 %v330
    %v363 = vunpack.c.l.b16 %v331
    %v364 = vunpack.c.l.b16 %v332
    %v365 = vunpack.c.l.b16 %v333
    %v366 = vunpack.c.l.b16 %v334
    %v367 = vunpack.c.l.b16 %v335
    %v368 = vunpack.c.l.b16 %v336
    %v369 = vunpack.c.l.b16 %v337
    %v370 = vunpack.c.l.b16 %v338
    %v371 = vunpack.c.l.b16 %v339
    %v372 = vunpack.c.l.b16 %v340
    %v373 = vunpack.c.l.b16 %v341
    %v374 = vunpack.c.l.b16 %v342
    %v375 = vunpack.c.l.b16 %v343
    %v376 = vpack.c.b16 %v361, %v360
    %v377 = vpack.c.b16 %v363, %v362
    %v378 = vpack.c.b16 %v365, %v364
    %v379 = vpack.c.b16 %v367, %v366
    %v380 = vpack.c.b16 %v369, %v368
    %v381 = vpack.c.b16 %v371, %v370
    %v382 = vpack.c.b16 %v373, %v372
    %v383 = vpack.c.b16 %v375, %v374
    %392 = vmatprep.subr.bf16.mxu0 0
    %393 = vmatpush1.bf16.msra.mxu0 %v383
    %394 = vmatprep.subr.bf16.mxu0 0
    %395 = vmatpush1.bf16.msra.mxu0 %v382
    %396 = vmatprep.subr.bf16.mxu0 0
    %397 = vmatpush1.bf16.msra.mxu0 %v381
    %398 = vmatprep.subr.bf16.mxu0 0
    %399 = vmatpush1.bf16.msra.mxu0 %v380
    %400 = vmatprep.subr.bf16.mxu0 0
    %401 = vmatpush1.bf16.msra.mxu0 %v379
    %402 = vmatprep.subr.bf16.mxu0 0
    %403 = vmatpush1.bf16.msra.mxu0 %v378
    %404 = vmatprep.subr.bf16.mxu0 0
    %405 = vmatpush1.bf16.msra.mxu0 %v377
    %406 = vmatprep.subr.bf16.mxu0 0
    %407 = vmatpush1.bf16.msra.mxu0 %v376
    %408 = vmatprep.subr.bf16.mxu0 0
    %409 = vmatpush2.bf16.msra.mxu0 0
    %410 = vmatprep.subr.bf16.mxu0 0
    %411 = vmatpush2.bf16.msra.mxu0 0
    %412 = vmatprep.subr.bf16.mxu0 0
    %413 = vmatpush2.bf16.msra.mxu0 0
    %414 = vmatprep.subr.bf16.mxu0 0
    %415 = vmatpush2.bf16.msra.mxu0 0
    %416 = vmatprep.subr.bf16.mxu0 0
    %417 = vmatpush2.bf16.msra.mxu0 0
    %418 = vmatprep.subr.bf16.mxu0 0
    %419 = vmatpush2.bf16.msra.mxu0 0
    %420 = vmatprep.subr.bf16.mxu0 0
    %421 = vmatpush2.bf16.msra.mxu0 0
    %422 = vmatprep.subr.bf16.mxu0 0
    %423 = vmatpush2.bf16.msra.mxu0 0
    %424 = vmatprep.mubr.bf16.mxu0 0
    %425 = vmatmul.mubr.bf16.gmra.mxu0 %v320
    %v426 = vpop.f32.mrf.mxu0
    %v427 = vadd.f32 0.0, %v426
    %v428 = vpop.f32.mrf.mxu0
    %v429 = vpop.f32.mrf.mxu0
    %v430 = vadd.f32 0.0, %v429
    %v431 = vpop.f32.mrf.mxu0
    %432 = vmatprep.mubr.bf16.mxu0 0
    %433 = vmatmul.mubr.bf16.gmra.mxu0 %v321
    %v434 = vpop.f32.mrf.mxu0
    %v435 = vadd.f32 0.0, %v434
    %v436 = vpop.f32.mrf.mxu0
    %v437 = vpop.f32.mrf.mxu0
    %v438 = vadd.f32 0.0, %v437
    %v439 = vpop.f32.mrf.mxu0
    %440 = vmatprep.mubr.bf16.mxu0 0
    %441 = vmatmul.mubr.bf16.gmra.mxu0 %v322
    %v442 = vpop.f32.mrf.mxu0
    %v443 = vadd.f32 0.0, %v442
    %v444 = vpop.f32.mrf.mxu0
    %v445 = vpop.f32.mrf.mxu0
    %v446 = vadd.f32 0.0, %v445
    %v447 = vpop.f32.mrf.mxu0
    %448 = vmatprep.mubr.bf16.mxu0 0
    %449 = vmatmul.mubr.bf16.gmra.mxu0 %v323
    %v450 = vpop.f32.mrf.mxu0
    %v451 = vadd.f32 0.0, %v450
    %v452 = vpop.f32.mrf.mxu0
    %v453 = vpop.f32.mrf.mxu0
    %v454 = vadd.f32 0.0, %v453
    %v455 = vpop.f32.mrf.mxu0
    %456 = vmatprep.mubr.bf16.mxu0 0
    %457 = vmatmul.mubr.bf16.gmra.mxu0 %v324
    %v458 = vpop.f32.mrf.mxu0
    %v459 = vadd.f32 0.0, %v458
    %v460 = vpop.f32.mrf.mxu0
    %v461 = vpop.f32.mrf.mxu0
    %v462 = vadd.f32 0.0, %v461
    %v463 = vpop.f32.mrf.mxu0
    %464 = vmatprep.mubr.bf16.mxu0 0
    %465 = vmatmul.mubr.bf16.gmra.mxu0 %v325
    %v466 = vpop.f32.mrf.mxu0
    %v467 = vadd.f32 0.0, %v466
    %v468 = vpop.f32.mrf.mxu0
    %v469 = vpop.f32.mrf.mxu0
    %v470 = vadd.f32 0.0, %v469
    %v471 = vpop.f32.mrf.mxu0
    %472 = vmatprep.mubr.bf16.mxu0 0
    %473 = vmatmul.mubr.bf16.gmra.mxu0 %v326
    %v474 = vpop.f32.mrf.mxu0
    %v475 = vadd.f32 0.0, %v474
    %v476 = vpop.f32.mrf.mxu0
    %v477 = vpop.f32.mrf.mxu0
    %v478 = vadd.f32 0.0, %v477
    %v479 = vpop.f32.mrf.mxu0
    %480 = vmatprep.mubr.bf16.mxu0 0
    %481 = vmatmul.mubr.bf16.gmra.mxu0 %v327
    %v482 = vpop.f32.mrf.mxu0
    %v483 = vadd.f32 0.0, %v482
    %v484 = vpop.f32.mrf.mxu0
    %v485 = vpop.f32.mrf.mxu0
    %v486 = vadd.f32 0.0, %v485
    %v487 = vpop.f32.mrf.mxu0
    %488 = vdwg.mxu0
    %v489 = vld [vmem:[%s8] sm:$0xff]
    %v490 = vld [vmem:[%s8 + $0x8] sm:$0xff]
    %v491 = vld [vmem:[%s8 + $0x10] sm:$0xff]
    %v492 = vld [vmem:[%s8 + $0x18] sm:$0xff]
    %v493 = vld [vmem:[%s8 + $0x20] sm:$0xff]
    %v494 = vld [vmem:[%s8 + $0x28] sm:$0xff]
    %v495 = vld [vmem:[%s8 + $0x30] sm:$0xff]
    %v496 = vld [vmem:[%s8 + $0x38] sm:$0xff]
    %v497 = vld [vmem:[%s8 + $0x40] sm:$0xff]
    %v498 = vld [vmem:[%s8 + $0x48] sm:$0xff]
    %v499 = vld [vmem:[%s8 + $0x50] sm:$0xff]
    %v500 = vld [vmem:[%s8 + $0x58] sm:$0xff]
    %v501 = vld [vmem:[%s8 + $0x60] sm:$0xff]
    %v502 = vld [vmem:[%s8 + $0x68] sm:$0xff]
    %v503 = vld [vmem:[%s8 + $0x70] sm:$0xff]
    %v504 = vld [vmem:[%s8 + $0x78] sm:$0xff]
    %v521 = vunpack.c.l.b16 %v489
    %v522 = vunpack.c.h.b16 %v489
    %v523 = vunpack.c.l.b16 %v490
    %v524 = vunpack.c.h.b16 %v490
    %v525 = vunpack.c.l.b16 %v491
    %v526 = vunpack.c.h.b16 %v491
    %v527 = vunpack.c.l.b16 %v492
    %v528 = vunpack.c.h.b16 %v492
    %v529 = vunpack.c.l.b16 %v493
    %v530 = vunpack.c.h.b16 %v493
    %v531 = vunpack.c.l.b16 %v494
    %v532 = vunpack.c.h.b16 %v494
    %v533 = vunpack.c.l.b16 %v495
    %v534 = vunpack.c.h.b16 %v495
    %v535 = vunpack.c.l.b16 %v496
    %v536 = vunpack.c.h.b16 %v496
    %v537 = vunpack.c.l.b16 %v497
    %v538 = vunpack.c.h.b16 %v497
    %v539 = vunpack.c.l.b16 %v498
    %v540 = vunpack.c.h.b16 %v498
    %v541 = vunpack.c.l.b16 %v499
    %v542 = vunpack.c.h.b16 %v499
    %v543 = vunpack.c.l.b16 %v500
    %v544 = vunpack.c.h.b16 %v500
    %v545 = vunpack.c.l.b16 %v501
    %v546 = vunpack.c.h.b16 %v501
    %v547 = vunpack.c.l.b16 %v502
    %v548 = vunpack.c.h.b16 %v502
    %v549 = vunpack.c.l.b16 %v503
    %v550 = vunpack.c.h.b16 %v503
    %v551 = vunpack.c.l.b16 %v504
    %v552 = vunpack.c.h.b16 %v504
    %v553 = vpack.c.b16 %v523, %v521
    %v554 = vpack.c.b16 %v524, %v522
    %v555 = vpack.c.b16 %v527, %v525
    %v556 = vpack.c.b16 %v528, %v526
    %v557 = vpack.c.b16 %v531, %v529
    %v558 = vpack.c.b16 %v532, %v530
    %v559 = vpack.c.b16 %v535, %v533
    %v560 = vpack.c.b16 %v536, %v534
    %v561 = vpack.c.b16 %v539, %v537
    %v562 = vpack.c.b16 %v540, %v538
    %v563 = vpack.c.b16 %v543, %v541
    %v564 = vpack.c.b16 %v544, %v542
    %v565 = vpack.c.b16 %v547, %v545
    %v566 = vpack.c.b16 %v548, %v546
    %v567 = vpack.c.b16 %v551, %v549
    %v568 = vpack.c.b16 %v552, %v550
    %585 = vmatprep.subr.bf16.mxu0 %v568
    %586 = vmatpush1.bf16.msra.mxu0 %v567
    %587 = vmatprep.subr.bf16.mxu0 %v566
    %588 = vmatpush1.bf16.msra.mxu0 %v565
    %589 = vmatprep.subr.bf16.mxu0 %v564
    %590 = vmatpush1.bf16.msra.mxu0 %v563
    %591 = vmatprep.subr.bf16.mxu0 %v562
    %592 = vmatpush1.bf16.msra.mxu0 %v561
    %593 = vmatprep.subr.bf16.mxu0 %v560
    %594 = vmatpush1.bf16.msra.mxu0 %v559
    %595 = vmatprep.subr.bf16.mxu0 %v558
    %596 = vmatpush1.bf16.msra.mxu0 %v557
    %597 = vmatprep.subr.bf16.mxu0 %v556
    %598 = vmatpush1.bf16.msra.mxu0 %v555
    %599 = vmatprep.subr.bf16.mxu0 %v554
    %600 = vmatpush1.bf16.msra.mxu0 %v553
    %601 = vmatprep.subr.bf16.mxu0 0
    %602 = vmatpush2.bf16.msra.mxu0 0
    %603 = vmatprep.subr.bf16.mxu0 0
    %604 = vmatpush2.bf16.msra.mxu0 0
    %605 = vmatprep.subr.bf16.mxu0 0
    %606 = vmatpush2.bf16.msra.mxu0 0
    %607 = vmatprep.subr.bf16.mxu0 0
    %608 = vmatpush2.bf16.msra.mxu0 0
    %609 = vmatprep.subr.bf16.mxu0 0
    %610 = vmatpush2.bf16.msra.mxu0 0
    %611 = vmatprep.subr.bf16.mxu0 0
    %612 = vmatpush2.bf16.msra.mxu0 0
    %613 = vmatprep.subr.bf16.mxu0 0
    %614 = vmatpush2.bf16.msra.mxu0 0
    %615 = vmatprep.subr.bf16.mxu0 0
    %616 = vmatpush2.bf16.msra.mxu0 0
    %617 = vmatprep.mubr.bf16.mxu0 0
    %618 = vmatmul.mubr.bf16.gmra.mxu0 %v149
    %v619 = vpop.f32.mrf.mxu0
    %v620 = vadd.f32 0.0, %v619
    %v621 = vpop.f32.mrf.mxu0
    %v622 = vadd.f32 0.0, %v621
    %v623 = vpop.f32.mrf.mxu0
    %v624 = vadd.f32 0.0, %v623
    %v625 = vpop.f32.mrf.mxu0
    %v626 = vadd.f32 0.0, %v625
    %627 = vmatprep.mubr.bf16.mxu0 0
    %628 = vmatmul.mubr.bf16.gmra.mxu0 %v150
    %v629 = vpop.f32.mrf.mxu0
    %v630 = vadd.f32 0.0, %v629
    %v631 = vpop.f32.mrf.mxu0
    %v632 = vadd.f32 0.0, %v631
    %v633 = vpop.f32.mrf.mxu0
    %v634 = vadd.f32 0.0, %v633
    %v635 = vpop.f32.mrf.mxu0
    %v636 = vadd.f32 0.0, %v635
    %637 = vmatprep.mubr.bf16.mxu0 0
    %638 = vmatmul.mubr.bf16.gmra.mxu0 %v151
    %v639 = vpop.f32.mrf.mxu0
    %v640 = vadd.f32 0.0, %v639
    %v641 = vpop.f32.mrf.mxu0
    %v642 = vadd.f32 0.0, %v641
    %v643 = vpop.f32.mrf.mxu0
    %v644 = vadd.f32 0.0, %v643
    %v645 = vpop.f32.mrf.mxu0
    %v646 = vadd.f32 0.0, %v645
    %647 = vmatprep.mubr.bf16.mxu0 0
    %648 = vmatmul.mubr.bf16.gmra.mxu0 %v152
    %v649 = vpop.f32.mrf.mxu0
    %v650 = vadd.f32 0.0, %v649
    %v651 = vpop.f32.mrf.mxu0
    %v652 = vadd.f32 0.0, %v651
    %v653 = vpop.f32.mrf.mxu0
    %v654 = vadd.f32 0.0, %v653
    %v655 = vpop.f32.mrf.mxu0
    %v656 = vadd.f32 0.0, %v655
    %657 = vmatprep.mubr.bf16.mxu0 0
    %658 = vmatmul.mubr.bf16.gmra.mxu0 %v153
    %v659 = vpop.f32.mrf.mxu0
    %v660 = vadd.f32 0.0, %v659
    %v661 = vpop.f32.mrf.mxu0
    %v662 = vadd.f32 0.0, %v661
    %v663 = vpop.f32.mrf.mxu0
    %v664 = vadd.f32 0.0, %v663
    %v665 = vpop.f32.mrf.mxu0
    %v666 = vadd.f32 0.0, %v665
    %667 = vmatprep.mubr.bf16.mxu0 0
    %668 = vmatmul.mubr.bf16.gmra.mxu0 %v154
    %v669 = vpop.f32.mrf.mxu0
    %v670 = vadd.f32 0.0, %v669
    %v671 = vpop.f32.mrf.mxu0
    %v672 = vadd.f32 0.0, %v671
    %v673 = vpop.f32.mrf.mxu0
    %v674 = vadd.f32 0.0, %v673
    %v675 = vpop.f32.mrf.mxu0
    %v676 = vadd.f32 0.0, %v675
    %677 = vmatprep.mubr.bf16.mxu0 0
    %678 = vmatmul.mubr.bf16.gmra.mxu0 %v155
    %v679 = vpop.f32.mrf.mxu0
    %v680 = vadd.f32 0.0, %v679
    %v681 = vpop.f32.mrf.mxu0
    %v682 = vadd.f32 0.0, %v681
    %v683 = vpop.f32.mrf.mxu0
    %v684 = vadd.f32 0.0, %v683
    %v685 = vpop.f32.mrf.mxu0
    %v686 = vadd.f32 0.0, %v685
    %687 = vmatprep.mubr.bf16.mxu0 0
    %688 = vmatmul.mubr.bf16.gmra.mxu0 %v156
    %v689 = vpop.f32.mrf.mxu0
    %v690 = vadd.f32 0.0, %v689
    %v691 = vpop.f32.mrf.mxu0
    %v692 = vadd.f32 0.0, %v691
    %v693 = vpop.f32.mrf.mxu0
    %v694 = vadd.f32 0.0, %v693
    %v695 = vpop.f32.mrf.mxu0
    %v696 = vadd.f32 0.0, %v695
    %697 = vdwg.mxu0
    %v698 = vld [vmem:[%s10] sm:$0x1]
    %v700 = vlaneseq
    %v701 = vshrl.u32 %v700, 7
    %v702 = vsub.s32 0, %v701
    %v703 = vrot.slane %v698, %v702
    %v705 = vadd.f32 %v620, %v703
    %v706 = vadd.f32 %v624, %v703
    %v707 = vadd.f32 %v630, %v703
    %v708 = vadd.f32 %v634, %v703
    %v709 = vadd.f32 %v640, %v703
    %v710 = vadd.f32 %v644, %v703
    %v711 = vadd.f32 %v650, %v703
    %v712 = vadd.f32 %v654, %v703
    %v713 = vadd.f32 %v660, %v703
    %v714 = vadd.f32 %v664, %v703
    %v715 = vadd.f32 %v670, %v703
    %v716 = vadd.f32 %v674, %v703
    %v717 = vadd.f32 %v680, %v703
    %v718 = vadd.f32 %v684, %v703
    %v719 = vadd.f32 %v690, %v703
    %v720 = vadd.f32 %v694, %v703
    %v721 = vpack.c.bf16 %v430, %v427
    %v722 = vpack.c.bf16 %v438, %v435
    %v723 = vpack.c.bf16 %v446, %v443
    %v724 = vpack.c.bf16 %v454, %v451
    %v725 = vpack.c.bf16 %v462, %v459
    %v726 = vpack.c.bf16 %v470, %v467
    %v727 = vpack.c.bf16 %v478, %v475
    %v728 = vpack.c.bf16 %v486, %v483
    %v729 = vpack.c.bf16 %v706, %v705
    %v730 = vpack.c.bf16 %v708, %v707
    %v731 = vpack.c.bf16 %v710, %v709
    %v732 = vpack.c.bf16 %v712, %v711
    %v733 = vpack.c.bf16 %v714, %v713
    %v734 = vpack.c.bf16 %v716, %v715
    %v735 = vpack.c.bf16 %v718, %v717
    %v736 = vpack.c.bf16 %v720, %v719
    %v753 = vunpack.c.l.b16 %v61
    %v754 = vunpack.c.l.b16 %v62
    %v755 = vunpack.c.l.b16 %v63
    %v756 = vunpack.c.l.b16 %v64
    %v757 = vunpack.c.l.b16 %v65
    %v758 = vunpack.c.l.b16 %v66
    %v759 = vunpack.c.l.b16 %v67
    %v760 = vunpack.c.l.b16 %v68
    %v761 = vunpack.c.l.b16 %v69
    %v762 = vunpack.c.l.b16 %v70
    %v763 = vunpack.c.l.b16 %v71
    %v764 = vunpack.c.l.b16 %v72
    %v765 = vunpack.c.l.b16 %v73
    %v766 = vunpack.c.l.b16 %v74
    %v767 = vunpack.c.l.b16 %v75
    %v768 = vunpack.c.l.b16 %v76
    %v769 = vpack.c.b16 %v754, %v753
    %v770 = vpack.c.b16 %v756, %v755
    %v771 = vpack.c.b16 %v758, %v757
    %v772 = vpack.c.b16 %v760, %v759
    %v773 = vpack.c.b16 %v762, %v761
    %v774 = vpack.c.b16 %v764, %v763
    %v775 = vpack.c.b16 %v766, %v765
    %v776 = vpack.c.b16 %v768, %v767
    %785 = vmatprep.subr.bf16.mxu0 0
    %786 = vmatpush1.bf16.msra.mxu0 %v736
    %787 = vmatprep.subr.bf16.mxu0 0
    %788 = vmatpush1.bf16.msra.mxu0 %v735
    %789 = vmatprep.subr.bf16.mxu0 0
    %790 = vmatpush1.bf16.msra.mxu0 %v734
    %791 = vmatprep.subr.bf16.mxu0 0
    %792 = vmatpush1.bf16.msra.mxu0 %v733
    %793 = vmatprep.subr.bf16.mxu0 0
    %794 = vmatpush1.bf16.msra.mxu0 %v732
    %795 = vmatprep.subr.bf16.mxu0 0
    %796 = vmatpush1.bf16.msra.mxu0 %v731
    %797 = vmatprep.subr.bf16.mxu0 0
    %798 = vmatpush1.bf16.msra.mxu0 %v730
    %799 = vmatprep.subr.bf16.mxu0 0
    %800 = vmatpush1.bf16.msra.mxu0 %v729
    %801 = vmatprep.subr.bf16.mxu0 0
    %802 = vmatpush2.bf16.msra.mxu0 0
    %803 = vmatprep.subr.bf16.mxu0 0
    %804 = vmatpush2.bf16.msra.mxu0 0
    %805 = vmatprep.subr.bf16.mxu0 0
    %806 = vmatpush2.bf16.msra.mxu0 0
    %807 = vmatprep.subr.bf16.mxu0 0
    %808 = vmatpush2.bf16.msra.mxu0 0
    %809 = vmatprep.subr.bf16.mxu0 0
    %810 = vmatpush2.bf16.msra.mxu0 0
    %811 = vmatprep.subr.bf16.mxu0 0
    %812 = vmatpush2.bf16.msra.mxu0 0
    %813 = vmatprep.subr.bf16.mxu0 0
    %814 = vmatpush2.bf16.msra.mxu0 0
    %815 = vmatprep.subr.bf16.mxu0 0
    %816 = vmatpush2.bf16.msra.mxu0 0
    %817 = vmatprep.mubr.bf16.mxu0 0
    %818 = vmatmul.mubr.bf16.gmra.mxu0 %v769
    %v819 = vpop.f32.mrf.mxu0
    %v820 = vadd.f32 0.0, %v819
    %v821 = vpop.f32.mrf.mxu0
    %v822 = vpop.f32.mrf.mxu0
    %v823 = vadd.f32 0.0, %v822
    %v824 = vpop.f32.mrf.mxu0
    %825 = vmatprep.mubr.bf16.mxu0 0
    %826 = vmatmul.mubr.bf16.gmra.mxu0 %v770
    %v827 = vpop.f32.mrf.mxu0
    %v828 = vadd.f32 0.0, %v827
    %v829 = vpop.f32.mrf.mxu0
    %v830 = vpop.f32.mrf.mxu0
    %v831 = vadd.f32 0.0, %v830
    %v832 = vpop.f32.mrf.mxu0
    %833 = vmatprep.mubr.bf16.mxu0 0
    %834 = vmatmul.mubr.bf16.gmra.mxu0 %v771
    %v835 = vpop.f32.mrf.mxu0
    %v836 = vadd.f32 0.0, %v835
    %v837 = vpop.f32.mrf.mxu0
    %v838 = vpop.f32.mrf.mxu0
    %v839 = vadd.f32 0.0, %v838
    %v840 = vpop.f32.mrf.mxu0
    %841 = vmatprep.mubr.bf16.mxu0 0
    %842 = vmatmul.mubr.bf16.gmra.mxu0 %v772
    %v843 = vpop.f32.mrf.mxu0
    %v844 = vadd.f32 0.0, %v843
    %v845 = vpop.f32.mrf.mxu0
    %v846 = vpop.f32.mrf.mxu0
    %v847 = vadd.f32 0.0, %v846
    %v848 = vpop.f32.mrf.mxu0
    %849 = vmatprep.mubr.bf16.mxu0 0
    %850 = vmatmul.mubr.bf16.gmra.mxu0 %v773
    %v851 = vpop.f32.mrf.mxu0
    %v852 = vadd.f32 0.0, %v851
    %v853 = vpop.f32.mrf.mxu0
    %v854 = vpop.f32.mrf.mxu0
    %v855 = vadd.f32 0.0, %v854
    %v856 = vpop.f32.mrf.mxu0
    %857 = vmatprep.mubr.bf16.mxu0 0
    %858 = vmatmul.mubr.bf16.gmra.mxu0 %v774
    %v859 = vpop.f32.mrf.mxu0
    %v860 = vadd.f32 0.0, %v859
    %v861 = vpop.f32.mrf.mxu0
    %v862 = vpop.f32.mrf.mxu0
    %v863 = vadd.f32 0.0, %v862
    %v864 = vpop.f32.mrf.mxu0
    %865 = vmatprep.mubr.bf16.mxu0 0
    %866 = vmatmul.mubr.bf16.gmra.mxu0 %v775
    %v867 = vpop.f32.mrf.mxu0
    %v868 = vadd.f32 0.0, %v867
    %v869 = vpop.f32.mrf.mxu0
    %v870 = vpop.f32.mrf.mxu0
    %v871 = vadd.f32 0.0, %v870
    %v872 = vpop.f32.mrf.mxu0
    %873 = vmatprep.mubr.bf16.mxu0 0
    %874 = vmatmul.mubr.bf16.gmra.mxu0 %v776
    %v875 = vpop.f32.mrf.mxu0
    %v876 = vadd.f32 0.0, %v875
    %v877 = vpop.f32.mrf.mxu0
    %v878 = vpop.f32.mrf.mxu0
    %v879 = vadd.f32 0.0, %v878
    %v880 = vpop.f32.mrf.mxu0
    %881 = vdwg.mxu0
    %v898 = vunpack.c.l.b16 %v93
    %v899 = vunpack.c.l.b16 %v94
    %v900 = vunpack.c.l.b16 %v95
    %v901 = vunpack.c.l.b16 %v96
    %v902 = vunpack.c.l.b16 %v97
    %v903 = vunpack.c.l.b16 %v98
    %v904 = vunpack.c.l.b16 %v99
    %v905 = vunpack.c.l.b16 %v100
    %v906 = vunpack.c.l.b16 %v101
    %v907 = vunpack.c.l.b16 %v102
    %v908 = vunpack.c.l.b16 %v103
    %v909 = vunpack.c.l.b16 %v104
    %v910 = vunpack.c.l.b16 %v105
    %v911 = vunpack.c.l.b16 %v106
    %v912 = vunpack.c.l.b16 %v107
    %v913 = vunpack.c.l.b16 %v108
    %v914 = vpack.c.b16 %v899, %v898
    %v915 = vpack.c.b16 %v901, %v900
    %v916 = vpack.c.b16 %v903, %v902
    %v917 = vpack.c.b16 %v905, %v904
    %v918 = vpack.c.b16 %v907, %v906
    %v919 = vpack.c.b16 %v909, %v908
    %v920 = vpack.c.b16 %v911, %v910
    %v921 = vpack.c.b16 %v913, %v912
    %930 = vmatprep.subr.bf16.mxu0 0
    %931 = vmatpush1.bf16.msra.mxu0 %v728
    %932 = vmatprep.subr.bf16.mxu0 0
    %933 = vmatpush1.bf16.msra.mxu0 %v727
    %934 = vmatprep.subr.bf16.mxu0 0
    %935 = vmatpush1.bf16.msra.mxu0 %v726
    %936 = vmatprep.subr.bf16.mxu0 0
    %937 = vmatpush1.bf16.msra.mxu0 %v725
    %938 = vmatprep.subr.bf16.mxu0 0
    %939 = vmatpush1.bf16.msra.mxu0 %v724
    %940 = vmatprep.subr.bf16.mxu0 0
    %941 = vmatpush1.bf16.msra.mxu0 %v723
    %942 = vmatprep.subr.bf16.mxu0 0
    %943 = vmatpush1.bf16.msra.mxu0 %v722
    %944 = vmatprep.subr.bf16.mxu0 0
    %945 = vmatpush1.bf16.msra.mxu0 %v721
    %946 = vmatprep.subr.bf16.mxu0 0
    %947 = vmatpush2.bf16.msra.mxu0 0
    %948 = vmatprep.subr.bf16.mxu0 0
    %949 = vmatpush2.bf16.msra.mxu0 0
    %950 = vmatprep.subr.bf16.mxu0 0
    %951 = vmatpush2.bf16.msra.mxu0 0
    %952 = vmatprep.subr.bf16.mxu0 0
    %953 = vmatpush2.bf16.msra.mxu0 0
    %954 = vmatprep.subr.bf16.mxu0 0
    %955 = vmatpush2.bf16.msra.mxu0 0
    %956 = vmatprep.subr.bf16.mxu0 0
    %957 = vmatpush2.bf16.msra.mxu0 0
    %958 = vmatprep.subr.bf16.mxu0 0
    %959 = vmatpush2.bf16.msra.mxu0 0
    %960 = vmatprep.subr.bf16.mxu0 0
    %961 = vmatpush2.bf16.msra.mxu0 0
    %962 = vmatprep.mubr.bf16.mxu0 0
    %963 = vmatmul.mubr.bf16.gmra.mxu0 %v914
    %v964 = vpop.f32.mrf.mxu0
    %v965 = vadd.f32 %v820, %v964
    %v966 = vpop.f32.mrf.mxu0
    %v967 = vpop.f32.mrf.mxu0
    %v968 = vadd.f32 %v823, %v967
    %v969 = vpop.f32.mrf.mxu0
    %970 = vmatprep.mubr.bf16.mxu0 0
    %971 = vmatmul.mubr.bf16.gmra.mxu0 %v915
    %v972 = vpop.f32.mrf.mxu0
    %v973 = vadd.f32 %v828, %v972
    %v974 = vpop.f32.mrf.mxu0
    %v975 = vpop.f32.mrf.mxu0
    %v976 = vadd.f32 %v831, %v975
    %v977 = vpop.f32.mrf.mxu0
    %978 = vmatprep.mubr.bf16.mxu0 0
    %979 = vmatmul.mubr.bf16.gmra.mxu0 %v916
    %v980 = vpop.f32.mrf.mxu0
    %v981 = vadd.f32 %v836, %v980
    %v982 = vpop.f32.mrf.mxu0
    %v983 = vpop.f32.mrf.mxu0
    %v984 = vadd.f32 %v839, %v983
    %v985 = vpop.f32.mrf.mxu0
    %986 = vmatprep.mubr.bf16.mxu0 0
    %987 = vmatmul.mubr.bf16.gmra.mxu0 %v917
    %v988 = vpop.f32.mrf.mxu0
    %v989 = vadd.f32 %v844, %v988
    %v990 = vpop.f32.mrf.mxu0
    %v991 = vpop.f32.mrf.mxu0
    %v992 = vadd.f32 %v847, %v991
    %v993 = vpop.f32.mrf.mxu0
    %994 = vmatprep.mubr.bf16.mxu0 0
    %995 = vmatmul.mubr.bf16.gmra.mxu0 %v918
    %v996 = vpop.f32.mrf.mxu0
    %v997 = vadd.f32 %v852, %v996
    %v998 = vpop.f32.mrf.mxu0
    %v999 = vpop.f32.mrf.mxu0
    %v1000 = vadd.f32 %v855, %v999
    %v1001 = vpop.f32.mrf.mxu0
    %1002 = vmatprep.mubr.bf16.mxu0 0
    %1003 = vmatmul.mubr.bf16.gmra.mxu0 %v919
    %v1004 = vpop.f32.mrf.mxu0
    %v1005 = vadd.f32 %v860, %v1004
    %v1006 = vpop.f32.mrf.mxu0
    %v1007 = vpop.f32.mrf.mxu0
    %v1008 = vadd.f32 %v863, %v1007
    %v1009 = vpop.f32.mrf.mxu0
    %1010 = vmatprep.mubr.bf16.mxu0 0
    %1011 = vmatmul.mubr.bf16.gmra.mxu0 %v920
    %v1012 = vpop.f32.mrf.mxu0
    %v1013 = vadd.f32 %v868, %v1012
    %v1014 = vpop.f32.mrf.mxu0
    %v1015 = vpop.f32.mrf.mxu0
    %v1016 = vadd.f32 %v871, %v1015
    %v1017 = vpop.f32.mrf.mxu0
    %1018 = vmatprep.mubr.bf16.mxu0 0
    %1019 = vmatmul.mubr.bf16.gmra.mxu0 %v921
    %v1020 = vpop.f32.mrf.mxu0
    %v1021 = vadd.f32 %v876, %v1020
    %v1022 = vpop.f32.mrf.mxu0
    %v1023 = vpop.f32.mrf.mxu0
    %v1024 = vadd.f32 %v879, %v1023
    %v1025 = vpop.f32.mrf.mxu0
    %1026 = vdwg.mxu0
    %v1027 = vld [vmem:[%s11] sm:$0x1]
    %v1029 = vlaneseq
    %v1030 = vshrl.u32 %v1029, 7
    %v1031 = vsub.s32 0, %v1030
    %v1032 = vrot.slane %v1027, %v1031
    %v1034 = vadd.f32 %v965, %v1032
    %v1035 = vadd.f32 %v968, %v1032
    %v1036 = vadd.f32 %v973, %v1032
    %v1037 = vadd.f32 %v976, %v1032
    %v1038 = vadd.f32 %v981, %v1032
    %v1039 = vadd.f32 %v984, %v1032
    %v1040 = vadd.f32 %v989, %v1032
    %v1041 = vadd.f32 %v992, %v1032
    %v1042 = vadd.f32 %v997, %v1032
    %v1043 = vadd.f32 %v1000, %v1032
    %v1044 = vadd.f32 %v1005, %v1032
    %v1045 = vadd.f32 %v1008, %v1032
    %v1046 = vadd.f32 %v1013, %v1032
    %v1047 = vadd.f32 %v1016, %v1032
    %v1048 = vadd.f32 %v1021, %v1032
    %v1049 = vadd.f32 %v1024, %v1032
    %vm1050 = vcmp.gt.f32.partialorder %v1034, 0.0
    %vm1051 = vcmp.gt.f32.partialorder %v1035, 0.0
    %vm1052 = vcmp.gt.f32.partialorder %v1036, 0.0
    %vm1053 = vcmp.gt.f32.partialorder %v1037, 0.0
    %vm1054 = vcmp.gt.f32.partialorder %v1038, 0.0
    %vm1055 = vcmp.gt.f32.partialorder %v1039, 0.0
    %vm1056 = vcmp.gt.f32.partialorder %v1040, 0.0
    %vm1057 = vcmp.gt.f32.partialorder %v1041, 0.0
    %vm1058 = vcmp.gt.f32.partialorder %v1042, 0.0
    %vm1059 = vcmp.gt.f32.partialorder %v1043, 0.0
    %vm1060 = vcmp.gt.f32.partialorder %v1044, 0.0
    %vm1061 = vcmp.gt.f32.partialorder %v1045, 0.0
    %vm1062 = vcmp.gt.f32.partialorder %v1046, 0.0
    %vm1063 = vcmp.gt.f32.partialorder %v1047, 0.0
    %vm1064 = vcmp.gt.f32.partialorder %v1048, 0.0
    %vm1065 = vcmp.gt.f32.partialorder %v1049, 0.0
    %v1066 = vstv %s157
    %v1067 = vmul.f32 %v1066, %v1034
    %v1068 = vmul.f32 %v1066, %v1035
    %v1069 = vmul.f32 %v1066, %v1036
    %v1070 = vmul.f32 %v1066, %v1037
    %v1071 = vmul.f32 %v1066, %v1038
    %v1072 = vmul.f32 %v1066, %v1039
    %v1073 = vmul.f32 %v1066, %v1040
    %v1074 = vmul.f32 %v1066, %v1041
    %v1075 = vmul.f32 %v1066, %v1042
    %v1076 = vmul.f32 %v1066, %v1043
    %v1077 = vmul.f32 %v1066, %v1044
    %v1078 = vmul.f32 %v1066, %v1045
    %v1079 = vmul.f32 %v1066, %v1046
    %v1080 = vmul.f32 %v1066, %v1047
    %v1081 = vmul.f32 %v1066, %v1048
    %v1082 = vmul.f32 %v1066, %v1049
    %v1083 = vsel %vm1050, %v1034, %v1067
    %v1084 = vsel %vm1051, %v1035, %v1068
    %v1085 = vsel %vm1052, %v1036, %v1069
    %v1086 = vsel %vm1053, %v1037, %v1070
    %v1087 = vsel %vm1054, %v1038, %v1071
    %v1088 = vsel %vm1055, %v1039, %v1072
    %v1089 = vsel %vm1056, %v1040, %v1073
    %v1090 = vsel %vm1057, %v1041, %v1074
    %v1091 = vsel %vm1058, %v1042, %v1075
    %v1092 = vsel %vm1059, %v1043, %v1076
    %v1093 = vsel %vm1060, %v1044, %v1077
    %v1094 = vsel %vm1061, %v1045, %v1078
    %v1095 = vsel %vm1062, %v1046, %v1079
    %v1096 = vsel %vm1063, %v1047, %v1080
    %v1097 = vsel %vm1064, %v1048, %v1081
    %v1098 = vsel %vm1065, %v1049, %v1082
    %v1099 = vpack.c.bf16 %v1084, %v1083
    %v1100 = vpack.c.bf16 %v1086, %v1085
    %v1101 = vpack.c.bf16 %v1088, %v1087
    %v1102 = vpack.c.bf16 %v1090, %v1089
    %v1103 = vpack.c.bf16 %v1092, %v1091
    %v1104 = vpack.c.bf16 %v1094, %v1093
    %v1105 = vpack.c.bf16 %v1096, %v1095
    %v1106 = vpack.c.bf16 %v1098, %v1097
    %v1123 = vunpack.c.l.b16 %v77
    %v1124 = vunpack.c.l.b16 %v78
    %v1125 = vunpack.c.l.b16 %v79
    %v1126 = vunpack.c.l.b16 %v80
    %v1127 = vunpack.c.l.b16 %v81
    %v1128 = vunpack.c.l.b16 %v82
    %v1129 = vunpack.c.l.b16 %v83
    %v1130 = vunpack.c.l.b16 %v84
    %v1131 = vunpack.c.l.b16 %v85
    %v1132 = vunpack.c.l.b16 %v86
    %v1133 = vunpack.c.l.b16 %v87
    %v1134 = vunpack.c.l.b16 %v88
    %v1135 = vunpack.c.l.b16 %v89
    %v1136 = vunpack.c.l.b16 %v90
    %v1137 = vunpack.c.l.b16 %v91
    %v1138 = vunpack.c.l.b16 %v92
    %v1139 = vpack.c.b16 %v1124, %v1123
    %v1140 = vpack.c.b16 %v1126, %v1125
    %v1141 = vpack.c.b16 %v1128, %v1127
    %v1142 = vpack.c.b16 %v1130, %v1129
    %v1143 = vpack.c.b16 %v1132, %v1131
    %v1144 = vpack.c.b16 %v1134, %v1133
    %v1145 = vpack.c.b16 %v1136, %v1135
    %v1146 = vpack.c.b16 %v1138, %v1137
    %1155 = vmatprep.subr.bf16.mxu0 0
    %1156 = vmatpush1.bf16.msra.mxu0 %v1106
    %1157 = vmatprep.subr.bf16.mxu0 0
    %1158 = vmatpush1.bf16.msra.mxu0 %v1105
    %1159 = vmatprep.subr.bf16.mxu0 0
    %1160 = vmatpush1.bf16.msra.mxu0 %v1104
    %1161 = vmatprep.subr.bf16.mxu0 0
    %1162 = vmatpush1.bf16.msra.mxu0 %v1103
    %1163 = vmatprep.subr.bf16.mxu0 0
    %1164 = vmatpush1.bf16.msra.mxu0 %v1102
    %1165 = vmatprep.subr.bf16.mxu0 0
    %1166 = vmatpush1.bf16.msra.mxu0 %v1101
    %1167 = vmatprep.subr.bf16.mxu0 0
    %1168 = vmatpush1.bf16.msra.mxu0 %v1100
    %1169 = vmatprep.subr.bf16.mxu0 0
    %1170 = vmatpush1.bf16.msra.mxu0 %v1099
    %1171 = vmatprep.subr.bf16.mxu0 0
    %1172 = vmatpush2.bf16.msra.mxu0 0
    %1173 = vmatprep.subr.bf16.mxu0 0
    %1174 = vmatpush2.bf16.msra.mxu0 0
    %1175 = vmatprep.subr.bf16.mxu0 0
    %1176 = vmatpush2.bf16.msra.mxu0 0
    %1177 = vmatprep.subr.bf16.mxu0 0
    %1178 = vmatpush2.bf16.msra.mxu0 0
    %1179 = vmatprep.subr.bf16.mxu0 0
    %1180 = vmatpush2.bf16.msra.mxu0 0
    %1181 = vmatprep.subr.bf16.mxu0 0
    %1182 = vmatpush2.bf16.msra.mxu0 0
    %1183 = vmatprep.subr.bf16.mxu0 0
    %1184 = vmatpush2.bf16.msra.mxu0 0
    %1185 = vmatprep.subr.bf16.mxu0 0
    %1186 = vmatpush2.bf16.msra.mxu0 0
    %1187 = vmatprep.mubr.bf16.mxu0 0
    %1188 = vmatmul.mubr.bf16.gmra.mxu0 %v1139
    %v1189 = vpop.f32.mrf.mxu0
    %v1190 = vadd.f32 0.0, %v1189
    %v1191 = vpop.f32.mrf.mxu0
    %v1192 = vpop.f32.mrf.mxu0
    %v1193 = vadd.f32 0.0, %v1192
    %v1194 = vpop.f32.mrf.mxu0
    %1195 = vmatprep.mubr.bf16.mxu0 0
    %1196 = vmatmul.mubr.bf16.gmra.mxu0 %v1140
    %v1197 = vpop.f32.mrf.mxu0
    %v1198 = vadd.f32 0.0, %v1197
    %v1199 = vpop.f32.mrf.mxu0
    %v1200 = vpop.f32.mrf.mxu0
    %v1201 = vadd.f32 0.0, %v1200
    %v1202 = vpop.f32.mrf.mxu0
    %1203 = vmatprep.mubr.bf16.mxu0 0
    %1204 = vmatmul.mubr.bf16.gmra.mxu0 %v1141
    %v1205 = vpop.f32.mrf.mxu0
    %v1206 = vadd.f32 0.0, %v1205
    %v1207 = vpop.f32.mrf.mxu0
    %v1208 = vpop.f32.mrf.mxu0
    %v1209 = vadd.f32 0.0, %v1208
    %v1210 = vpop.f32.mrf.mxu0
    %1211 = vmatprep.mubr.bf16.mxu0 0
    %1212 = vmatmul.mubr.bf16.gmra.mxu0 %v1142
    %v1213 = vpop.f32.mrf.mxu0
    %v1214 = vadd.f32 0.0, %v1213
    %v1215 = vpop.f32.mrf.mxu0
    %v1216 = vpop.f32.mrf.mxu0
    %v1217 = vadd.f32 0.0, %v1216
    %v1218 = vpop.f32.mrf.mxu0
    %1219 = vmatprep.mubr.bf16.mxu0 0
    %1220 = vmatmul.mubr.bf16.gmra.mxu0 %v1143
    %v1221 = vpop.f32.mrf.mxu0
    %v1222 = vadd.f32 0.0, %v1221
    %v1223 = vpop.f32.mrf.mxu0
    %v1224 = vpop.f32.mrf.mxu0
    %v1225 = vadd.f32 0.0, %v1224
    %v1226 = vpop.f32.mrf.mxu0
    %1227 = vmatprep.mubr.bf16.mxu0 0
    %1228 = vmatmul.mubr.bf16.gmra.mxu0 %v1144
    %v1229 = vpop.f32.mrf.mxu0
    %v1230 = vadd.f32 0.0, %v1229
    %v1231 = vpop.f32.mrf.mxu0
    %v1232 = vpop.f32.mrf.mxu0
    %v1233 = vadd.f32 0.0, %v1232
    %v1234 = vpop.f32.mrf.mxu0
    %1235 = vmatprep.mubr.bf16.mxu0 0
    %1236 = vmatmul.mubr.bf16.gmra.mxu0 %v1145
    %v1237 = vpop.f32.mrf.mxu0
    %v1238 = vadd.f32 0.0, %v1237
    %v1239 = vpop.f32.mrf.mxu0
    %v1240 = vpop.f32.mrf.mxu0
    %v1241 = vadd.f32 0.0, %v1240
    %v1242 = vpop.f32.mrf.mxu0
    %1243 = vmatprep.mubr.bf16.mxu0 0
    %1244 = vmatmul.mubr.bf16.gmra.mxu0 %v1146
    %v1245 = vpop.f32.mrf.mxu0
    %v1246 = vadd.f32 0.0, %v1245
    %v1247 = vpop.f32.mrf.mxu0
    %v1248 = vpop.f32.mrf.mxu0
    %v1249 = vadd.f32 0.0, %v1248
    %v1250 = vpop.f32.mrf.mxu0
    %1251 = vdwg.mxu0
    %v1252 = vpack.c.bf16 %v1193, %v1190
    %v1253 = vpack.c.bf16 %v1201, %v1198
    %v1254 = vpack.c.bf16 %v1209, %v1206
    %v1255 = vpack.c.bf16 %v1217, %v1214
    %v1256 = vpack.c.bf16 %v1225, %v1222
    %v1257 = vpack.c.bf16 %v1233, %v1230
    %v1258 = vpack.c.bf16 %v1241, %v1238
    %v1259 = vpack.c.bf16 %v1249, %v1246
    %v1260 = vld [vmem:[%s9] sm:$0xf]
    %v1261 = vld [vmem:[%s9 + $0x4] sm:$0xf]
    %v1262 = vld [vmem:[%s9 + $0x8] sm:$0xf]
    %v1263 = vld [vmem:[%s9 + $0xc] sm:$0xf]
    %v1264 = vld [vmem:[%s9 + $0x10] sm:$0xf]
    %v1265 = vld [vmem:[%s9 + $0x14] sm:$0xf]
    %v1266 = vld [vmem:[%s9 + $0x18] sm:$0xf]
    %v1267 = vld [vmem:[%s9 + $0x1c] sm:$0xf]
    %v1268 = vld [vmem:[%s9 + $0x20] sm:$0xf]
    %v1269 = vld [vmem:[%s9 + $0x24] sm:$0xf]
    %v1270 = vld [vmem:[%s9 + $0x28] sm:$0xf]
    %v1271 = vld [vmem:[%s9 + $0x2c] sm:$0xf]
    %v1272 = vld [vmem:[%s9 + $0x30] sm:$0xf]
    %v1273 = vld [vmem:[%s9 + $0x34] sm:$0xf]
    %v1274 = vld [vmem:[%s9 + $0x38] sm:$0xf]
    %v1275 = vld [vmem:[%s9 + $0x3c] sm:$0xf]
    %v1292 = vunpack.c.l.b16 %v1260
    %v1293 = vunpack.c.l.b16 %v1261
    %v1294 = vunpack.c.l.b16 %v1262
    %v1295 = vunpack.c.l.b16 %v1263
    %v1296 = vunpack.c.l.b16 %v1264
    %v1297 = vunpack.c.l.b16 %v1265
    %v1298 = vunpack.c.l.b16 %v1266
    %v1299 = vunpack.c.l.b16 %v1267
    %v1300 = vunpack.c.l.b16 %v1268
    %v1301 = vunpack.c.l.b16 %v1269
    %v1302 = vunpack.c.l.b16 %v1270
    %v1303 = vunpack.c.l.b16 %v1271
    %v1304 = vunpack.c.l.b16 %v1272
    %v1305 = vunpack.c.l.b16 %v1273
    %v1306 = vunpack.c.l.b16 %v1274
    %v1307 = vunpack.c.l.b16 %v1275
    %v1308 = vpack.c.b16 %v1293, %v1292
    %v1309 = vpack.c.b16 %v1295, %v1294
    %v1310 = vpack.c.b16 %v1297, %v1296
    %v1311 = vpack.c.b16 %v1299, %v1298
    %v1312 = vpack.c.b16 %v1301, %v1300
    %v1313 = vpack.c.b16 %v1303, %v1302
    %v1314 = vpack.c.b16 %v1305, %v1304
    %v1315 = vpack.c.b16 %v1307, %v1306
    %1324 = vmatprep.subr.bf16.mxu0 0
    %1325 = vmatpush1.bf16.msra.mxu0 %v1315
    %1326 = vmatprep.subr.bf16.mxu0 0
    %1327 = vmatpush1.bf16.msra.mxu0 %v1314
    %1328 = vmatprep.subr.bf16.mxu0 0
    %1329 = vmatpush1.bf16.msra.mxu0 %v1313
    %1330 = vmatprep.subr.bf16.mxu0 0
    %1331 = vmatpush1.bf16.msra.mxu0 %v1312
    %1332 = vmatprep.subr.bf16.mxu0 0
    %1333 = vmatpush1.bf16.msra.mxu0 %v1311
    %1334 = vmatprep.subr.bf16.mxu0 0
    %1335 = vmatpush1.bf16.msra.mxu0 %v1310
    %1336 = vmatprep.subr.bf16.mxu0 0
    %1337 = vmatpush1.bf16.msra.mxu0 %v1309
    %1338 = vmatprep.subr.bf16.mxu0 0
    %1339 = vmatpush1.bf16.msra.mxu0 %v1308
    %1340 = vmatprep.subr.bf16.mxu0 0
    %1341 = vmatpush2.bf16.msra.mxu0 0
    %1342 = vmatprep.subr.bf16.mxu0 0
    %1343 = vmatpush2.bf16.msra.mxu0 0
    %1344 = vmatprep.subr.bf16.mxu0 0
    %1345 = vmatpush2.bf16.msra.mxu0 0
    %1346 = vmatprep.subr.bf16.mxu0 0
    %1347 = vmatpush2.bf16.msra.mxu0 0
    %1348 = vmatprep.subr.bf16.mxu0 0
    %1349 = vmatpush2.bf16.msra.mxu0 0
    %1350 = vmatprep.subr.bf16.mxu0 0
    %1351 = vmatpush2.bf16.msra.mxu0 0
    %1352 = vmatprep.subr.bf16.mxu0 0
    %1353 = vmatpush2.bf16.msra.mxu0 0
    %1354 = vmatprep.subr.bf16.mxu0 0
    %1355 = vmatpush2.bf16.msra.mxu0 0
    %1356 = vmatprep.mubr.bf16.mxu0 0
    %1357 = vmatmul.mubr.bf16.gmra.mxu0 %v1252
    %v1358 = vpop.f32.mrf.mxu0
    %v1359 = vadd.f32 %v622, %v1358
    %v1360 = vpop.f32.mrf.mxu0
    %v1361 = vpop.f32.mrf.mxu0
    %v1362 = vadd.f32 %v626, %v1361
    %v1363 = vpop.f32.mrf.mxu0
    %1364 = vmatprep.mubr.bf16.mxu0 0
    %1365 = vmatmul.mubr.bf16.gmra.mxu0 %v1253
    %v1366 = vpop.f32.mrf.mxu0
    %v1367 = vadd.f32 %v632, %v1366
    %v1368 = vpop.f32.mrf.mxu0
    %v1369 = vpop.f32.mrf.mxu0
    %v1370 = vadd.f32 %v636, %v1369
    %v1371 = vpop.f32.mrf.mxu0
    %1372 = vmatprep.mubr.bf16.mxu0 0
    %1373 = vmatmul.mubr.bf16.gmra.mxu0 %v1254
    %v1374 = vpop.f32.mrf.mxu0
    %v1375 = vadd.f32 %v642, %v1374
    %v1376 = vpop.f32.mrf.mxu0
    %v1377 = vpop.f32.mrf.mxu0
    %v1378 = vadd.f32 %v646, %v1377
    %v1379 = vpop.f32.mrf.mxu0
    %1380 = vmatprep.mubr.bf16.mxu0 0
    %1381 = vmatmul.mubr.bf16.gmra.mxu0 %v1255
    %v1382 = vpop.f32.mrf.mxu0
    %v1383 = vadd.f32 %v652, %v1382
    %v1384 = vpop.f32.mrf.mxu0
    %v1385 = vpop.f32.mrf.mxu0
    %v1386 = vadd.f32 %v656, %v1385
    %v1387 = vpop.f32.mrf.mxu0
    %1388 = vmatprep.mubr.bf16.mxu0 0
    %1389 = vmatmul.mubr.bf16.gmra.mxu0 %v1256
    %v1390 = vpop.f32.mrf.mxu0
    %v1391 = vadd.f32 %v662, %v1390
    %v1392 = vpop.f32.mrf.mxu0
    %v1393 = vpop.f32.mrf.mxu0
    %v1394 = vadd.f32 %v666, %v1393
    %v1395 = vpop.f32.mrf.mxu0
    %1396 = vmatprep.mubr.bf16.mxu0 0
    %1397 = vmatmul.mubr.bf16.gmra.mxu0 %v1257
    %v1398 = vpop.f32.mrf.mxu0
    %v1399 = vadd.f32 %v672, %v1398
    %v1400 = vpop.f32.mrf.mxu0
    %v1401 = vpop.f32.mrf.mxu0
    %v1402 = vadd.f32 %v676, %v1401
    %v1403 = vpop.f32.mrf.mxu0
    %1404 = vmatprep.mubr.bf16.mxu0 0
    %1405 = vmatmul.mubr.bf16.gmra.mxu0 %v1258
    %v1406 = vpop.f32.mrf.mxu0
    %v1407 = vadd.f32 %v682, %v1406
    %v1408 = vpop.f32.mrf.mxu0
    %v1409 = vpop.f32.mrf.mxu0
    %v1410 = vadd.f32 %v686, %v1409
    %v1411 = vpop.f32.mrf.mxu0
    %1412 = vmatprep.mubr.bf16.mxu0 0
    %1413 = vmatmul.mubr.bf16.gmra.mxu0 %v1259
    %v1414 = vpop.f32.mrf.mxu0
    %v1415 = vadd.f32 %v692, %v1414
    %v1416 = vpop.f32.mrf.mxu0
    %v1417 = vpop.f32.mrf.mxu0
    %v1418 = vadd.f32 %v696, %v1417
    %v1419 = vpop.f32.mrf.mxu0
    %1420 = vdwg.mxu0
    %v1421 = vld [vmem:[%s12] sm:$0x1]
    %v1423 = vlaneseq
    %v1424 = vshrl.u32 %v1423, 7
    %v1425 = vsub.s32 0, %v1424
    %v1426 = vrot.slane %v1421, %v1425
    %v1428 = vadd.f32 %v1359, %v1426
    %v1429 = vadd.f32 %v1362, %v1426
    %v1430 = vadd.f32 %v1367, %v1426
    %v1431 = vadd.f32 %v1370, %v1426
    %v1432 = vadd.f32 %v1375, %v1426
    %v1433 = vadd.f32 %v1378, %v1426
    %v1434 = vadd.f32 %v1383, %v1426
    %v1435 = vadd.f32 %v1386, %v1426
    %v1436 = vadd.f32 %v1391, %v1426
    %v1437 = vadd.f32 %v1394, %v1426
    %v1438 = vadd.f32 %v1399, %v1426
    %v1439 = vadd.f32 %v1402, %v1426
    %v1440 = vadd.f32 %v1407, %v1426
    %v1441 = vadd.f32 %v1410, %v1426
    %v1442 = vadd.f32 %v1415, %v1426
    %v1443 = vadd.f32 %v1418, %v1426
    %vm1444 = vcmp.gt.f32.partialorder %v1428, 0.0
    %vm1445 = vcmp.gt.f32.partialorder %v1429, 0.0
    %vm1446 = vcmp.gt.f32.partialorder %v1430, 0.0
    %vm1447 = vcmp.gt.f32.partialorder %v1431, 0.0
    %vm1448 = vcmp.gt.f32.partialorder %v1432, 0.0
    %vm1449 = vcmp.gt.f32.partialorder %v1433, 0.0
    %vm1450 = vcmp.gt.f32.partialorder %v1434, 0.0
    %vm1451 = vcmp.gt.f32.partialorder %v1435, 0.0
    %vm1452 = vcmp.gt.f32.partialorder %v1436, 0.0
    %vm1453 = vcmp.gt.f32.partialorder %v1437, 0.0
    %vm1454 = vcmp.gt.f32.partialorder %v1438, 0.0
    %vm1455 = vcmp.gt.f32.partialorder %v1439, 0.0
    %vm1456 = vcmp.gt.f32.partialorder %v1440, 0.0
    %vm1457 = vcmp.gt.f32.partialorder %v1441, 0.0
    %vm1458 = vcmp.gt.f32.partialorder %v1442, 0.0
    %vm1459 = vcmp.gt.f32.partialorder %v1443, 0.0
    %v1460 = vstv %s158
    %v1461 = vmul.f32 %v1460, %v1428
    %v1462 = vmul.f32 %v1460, %v1429
    %v1463 = vmul.f32 %v1460, %v1430
    %v1464 = vmul.f32 %v1460, %v1431
    %v1465 = vmul.f32 %v1460, %v1432
    %v1466 = vmul.f32 %v1460, %v1433
    %v1467 = vmul.f32 %v1460, %v1434
    %v1468 = vmul.f32 %v1460, %v1435
    %v1469 = vmul.f32 %v1460, %v1436
    %v1470 = vmul.f32 %v1460, %v1437
    %v1471 = vmul.f32 %v1460, %v1438
    %v1472 = vmul.f32 %v1460, %v1439
    %v1473 = vmul.f32 %v1460, %v1440
    %v1474 = vmul.f32 %v1460, %v1441
    %v1475 = vmul.f32 %v1460, %v1442
    %v1476 = vmul.f32 %v1460, %v1443
    %v1477 = vsel %vm1444, %v1428, %v1461
    %v1478 = vsel %vm1445, %v1429, %v1462
    %v1479 = vsel %vm1446, %v1430, %v1463
    %v1480 = vsel %vm1447, %v1431, %v1464
    %v1481 = vsel %vm1448, %v1432, %v1465
    %v1482 = vsel %vm1449, %v1433, %v1466
    %v1483 = vsel %vm1450, %v1434, %v1467
    %v1484 = vsel %vm1451, %v1435, %v1468
    %v1485 = vsel %vm1452, %v1436, %v1469
    %v1486 = vsel %vm1453, %v1437, %v1470
    %v1487 = vsel %vm1454, %v1438, %v1471
    %v1488 = vsel %vm1455, %v1439, %v1472
    %v1489 = vsel %vm1456, %v1440, %v1473
    %v1490 = vsel %vm1457, %v1441, %v1474
    %v1491 = vsel %vm1458, %v1442, %v1475
    %v1492 = vsel %vm1459, %v1443, %v1476
    %v1493 = vpack.c.bf16 %v1478, %v1477
    %v1494 = vpack.c.bf16 %v1480, %v1479
    %v1495 = vpack.c.bf16 %v1482, %v1481
    %v1496 = vpack.c.bf16 %v1484, %v1483
    %v1497 = vpack.c.bf16 %v1486, %v1485
    %v1498 = vpack.c.bf16 %v1488, %v1487
    %v1499 = vpack.c.bf16 %v1490, %v1489
    %v1500 = vpack.c.bf16 %v1492, %v1491
    %s1501 = sld [smem:[#allocation2 + $0x80]]
    %s1502 = sld [smem:[#allocation2 + $0x81]]
    %s1503 = scalar_lea.vmem %s6, 64
    %v1504 = vld [vmem:[%s1503] sm:$0xf]
    %v1505 = vld [vmem:[%s1503 + $0x4] sm:$0xf]
    %v1506 = vld [vmem:[%s1503 + $0x8] sm:$0xf]
    %v1507 = vld [vmem:[%s1503 + $0xc] sm:$0xf]
    %v1508 = vld [vmem:[%s1503 + $0x10] sm:$0xf]
    %v1509 = vld [vmem:[%s1503 + $0x14] sm:$0xf]
    %v1510 = vld [vmem:[%s1503 + $0x18] sm:$0xf]
    %v1511 = vld [vmem:[%s1503 + $0x1c] sm:$0xf]
    %v1512 = vld [vmem:[%s1503 + $0x20] sm:$0xf]
    %v1513 = vld [vmem:[%s1503 + $0x24] sm:$0xf]
    %v1514 = vld [vmem:[%s1503 + $0x28] sm:$0xf]
    %v1515 = vld [vmem:[%s1503 + $0x2c] sm:$0xf]
    %v1516 = vld [vmem:[%s1503 + $0x30] sm:$0xf]
    %v1517 = vld [vmem:[%s1503 + $0x34] sm:$0xf]
    %v1518 = vld [vmem:[%s1503 + $0x38] sm:$0xf]
    %v1519 = vld [vmem:[%s1503 + $0x3c] sm:$0xf]
    %v1536 = vunpack.c.l.b16 %v1504
    %v1537 = vunpack.c.l.b16 %v1505
    %v1538 = vunpack.c.l.b16 %v1506
    %v1539 = vunpack.c.l.b16 %v1507
    %v1540 = vunpack.c.l.b16 %v1508
    %v1541 = vunpack.c.l.b16 %v1509
    %v1542 = vunpack.c.l.b16 %v1510
    %v1543 = vunpack.c.l.b16 %v1511
    %v1544 = vunpack.c.l.b16 %v1512
    %v1545 = vunpack.c.l.b16 %v1513
    %v1546 = vunpack.c.l.b16 %v1514
    %v1547 = vunpack.c.l.b16 %v1515
    %v1548 = vunpack.c.l.b16 %v1516
    %v1549 = vunpack.c.l.b16 %v1517
    %v1550 = vunpack.c.l.b16 %v1518
    %v1551 = vunpack.c.l.b16 %v1519
    %v1552 = vpack.c.b16 %v1537, %v1536
    %v1553 = vpack.c.b16 %v1539, %v1538
    %v1554 = vpack.c.b16 %v1541, %v1540
    %v1555 = vpack.c.b16 %v1543, %v1542
    %v1556 = vpack.c.b16 %v1545, %v1544
    %v1557 = vpack.c.b16 %v1547, %v1546
    %v1558 = vpack.c.b16 %v1549, %v1548
    %v1559 = vpack.c.b16 %v1551, %v1550
    %1568 = vmatprep.subr.bf16.mxu0 0
    %1569 = vmatpush1.bf16.msra.mxu0 %v1559
    %1570 = vmatprep.subr.bf16.mxu0 0
    %1571 = vmatpush1.bf16.msra.mxu0 %v1558
    %1572 = vmatprep.subr.bf16.mxu0 0
    %1573 = vmatpush1.bf16.msra.mxu0 %v1557
    %1574 = vmatprep.subr.bf16.mxu0 0
    %1575 = vmatpush1.bf16.msra.mxu0 %v1556
    %1576 = vmatprep.subr.bf16.mxu0 0
    %1577 = vmatpush1.bf16.msra.mxu0 %v1555
    %1578 = vmatprep.subr.bf16.mxu0 0
    %1579 = vmatpush1.bf16.msra.mxu0 %v1554
    %1580 = vmatprep.subr.bf16.mxu0 0
    %1581 = vmatpush1.bf16.msra.mxu0 %v1553
    %1582 = vmatprep.subr.bf16.mxu0 0
    %1583 = vmatpush1.bf16.msra.mxu0 %v1552
    %1584 = vmatprep.subr.bf16.mxu0 0
    %1585 = vmatpush2.bf16.msra.mxu0 0
    %1586 = vmatprep.subr.bf16.mxu0 0
    %1587 = vmatpush2.bf16.msra.mxu0 0
    %1588 = vmatprep.subr.bf16.mxu0 0
    %1589 = vmatpush2.bf16.msra.mxu0 0
    %1590 = vmatprep.subr.bf16.mxu0 0
    %1591 = vmatpush2.bf16.msra.mxu0 0
    %1592 = vmatprep.subr.bf16.mxu0 0
    %1593 = vmatpush2.bf16.msra.mxu0 0
    %1594 = vmatprep.subr.bf16.mxu0 0
    %1595 = vmatpush2.bf16.msra.mxu0 0
    %1596 = vmatprep.subr.bf16.mxu0 0
    %1597 = vmatpush2.bf16.msra.mxu0 0
    %1598 = vmatprep.subr.bf16.mxu0 0
    %1599 = vmatpush2.bf16.msra.mxu0 0
    %1600 = vmatprep.mubr.bf16.mxu0 0
    %1601 = vmatmul.mubr.bf16.gmra.mxu0 %v1099
    %v1602 = vpop.f32.mrf.mxu0
    %v1603 = vadd.f32 0.0, %v1602
    %v1604 = vpop.f32.mrf.mxu0
    %v1605 = vpop.f32.mrf.mxu0
    %v1606 = vadd.f32 0.0, %v1605
    %v1607 = vpop.f32.mrf.mxu0
    %1608 = vmatprep.mubr.bf16.mxu0 0
    %1609 = vmatmul.mubr.bf16.gmra.mxu0 %v1100
    %v1610 = vpop.f32.mrf.mxu0
    %v1611 = vadd.f32 0.0, %v1610
    %v1612 = vpop.f32.mrf.mxu0
    %v1613 = vpop.f32.mrf.mxu0
    %v1614 = vadd.f32 0.0, %v1613
    %v1615 = vpop.f32.mrf.mxu0
    %1616 = vmatprep.mubr.bf16.mxu0 0
    %1617 = vmatmul.mubr.bf16.gmra.mxu0 %v1101
    %v1618 = vpop.f32.mrf.mxu0
    %v1619 = vadd.f32 0.0, %v1618
    %v1620 = vpop.f32.mrf.mxu0
    %v1621 = vpop.f32.mrf.mxu0
    %v1622 = vadd.f32 0.0, %v1621
    %v1623 = vpop.f32.mrf.mxu0
    %1624 = vmatprep.mubr.bf16.mxu0 0
    %1625 = vmatmul.mubr.bf16.gmra.mxu0 %v1102
    %v1626 = vpop.f32.mrf.mxu0
    %v1627 = vadd.f32 0.0, %v1626
    %v1628 = vpop.f32.mrf.mxu0
    %v1629 = vpop.f32.mrf.mxu0
    %v1630 = vadd.f32 0.0, %v1629
    %v1631 = vpop.f32.mrf.mxu0
    %1632 = vmatprep.mubr.bf16.mxu0 0
    %1633 = vmatmul.mubr.bf16.gmra.mxu0 %v1103
    %v1634 = vpop.f32.mrf.mxu0
    %v1635 = vadd.f32 0.0, %v1634
    %v1636 = vpop.f32.mrf.mxu0
    %v1637 = vpop.f32.mrf.mxu0
    %v1638 = vadd.f32 0.0, %v1637
    %v1639 = vpop.f32.mrf.mxu0
    %1640 = vmatprep.mubr.bf16.mxu0 0
    %1641 = vmatmul.mubr.bf16.gmra.mxu0 %v1104
    %v1642 = vpop.f32.mrf.mxu0
    %v1643 = vadd.f32 0.0, %v1642
    %v1644 = vpop.f32.mrf.mxu0
    %v1645 = vpop.f32.mrf.mxu0
    %v1646 = vadd.f32 0.0, %v1645
    %v1647 = vpop.f32.mrf.mxu0
    %1648 = vmatprep.mubr.bf16.mxu0 0
    %1649 = vmatmul.mubr.bf16.gmra.mxu0 %v1105
    %v1650 = vpop.f32.mrf.mxu0
    %v1651 = vadd.f32 0.0, %v1650
    %v1652 = vpop.f32.mrf.mxu0
    %v1653 = vpop.f32.mrf.mxu0
    %v1654 = vadd.f32 0.0, %v1653
    %v1655 = vpop.f32.mrf.mxu0
    %1656 = vmatprep.mubr.bf16.mxu0 0
    %1657 = vmatmul.mubr.bf16.gmra.mxu0 %v1106
    %v1658 = vpop.f32.mrf.mxu0
    %v1659 = vadd.f32 0.0, %v1658
    %v1660 = vpop.f32.mrf.mxu0
    %v1661 = vpop.f32.mrf.mxu0
    %v1662 = vadd.f32 0.0, %v1661
    %v1663 = vpop.f32.mrf.mxu0
    %1664 = vdwg.mxu0
    %v1665 = vpack.c.bf16 %v1606, %v1603
    %v1666 = vpack.c.bf16 %v1614, %v1611
    %v1667 = vpack.c.bf16 %v1622, %v1619
    %v1668 = vpack.c.bf16 %v1630, %v1627
    %v1669 = vpack.c.bf16 %v1638, %v1635
    %v1670 = vpack.c.bf16 %v1646, %v1643
    %v1671 = vpack.c.bf16 %v1654, %v1651
    %v1672 = vpack.c.bf16 %v1662, %v1659
    %s1673 = scalar_lea.vmem %s7, 64
    %v1674 = vld [vmem:[%s1673] sm:$0xf]
    %v1675 = vld [vmem:[%s1673 + $0x4] sm:$0xf]
    %v1676 = vld [vmem:[%s1673 + $0x8] sm:$0xf]
    %v1677 = vld [vmem:[%s1673 + $0xc] sm:$0xf]
    %v1678 = vld [vmem:[%s1673 + $0x10] sm:$0xf]
    %v1679 = vld [vmem:[%s1673 + $0x14] sm:$0xf]
    %v1680 = vld [vmem:[%s1673 + $0x18] sm:$0xf]
    %v1681 = vld [vmem:[%s1673 + $0x1c] sm:$0xf]
    %v1682 = vld [vmem:[%s1673 + $0x20] sm:$0xf]
    %v1683 = vld [vmem:[%s1673 + $0x24] sm:$0xf]
    %v1684 = vld [vmem:[%s1673 + $0x28] sm:$0xf]
    %v1685 = vld [vmem:[%s1673 + $0x2c] sm:$0xf]
    %v1686 = vld [vmem:[%s1673 + $0x30] sm:$0xf]
    %v1687 = vld [vmem:[%s1673 + $0x34] sm:$0xf]
    %v1688 = vld [vmem:[%s1673 + $0x38] sm:$0xf]
    %v1689 = vld [vmem:[%s1673 + $0x3c] sm:$0xf]
    %v1706 = vunpack.c.l.b16 %v1674
    %v1707 = vunpack.c.l.b16 %v1675
    %v1708 = vunpack.c.l.b16 %v1676
    %v1709 = vunpack.c.l.b16 %v1677
    %v1710 = vunpack.c.l.b16 %v1678
    %v1711 = vunpack.c.l.b16 %v1679
    %v1712 = vunpack.c.l.b16 %v1680
    %v1713 = vunpack.c.l.b16 %v1681
    %v1714 = vunpack.c.l.b16 %v1682
    %v1715 = vunpack.c.l.b16 %v1683
    %v1716 = vunpack.c.l.b16 %v1684
    %v1717 = vunpack.c.l.b16 %v1685
    %v1718 = vunpack.c.l.b16 %v1686
    %v1719 = vunpack.c.l.b16 %v1687
    %v1720 = vunpack.c.l.b16 %v1688
    %v1721 = vunpack.c.l.b16 %v1689
    %v1722 = vpack.c.b16 %v1707, %v1706
    %v1723 = vpack.c.b16 %v1709, %v1708
    %v1724 = vpack.c.b16 %v1711, %v1710
    %v1725 = vpack.c.b16 %v1713, %v1712
    %v1726 = vpack.c.b16 %v1715, %v1714
    %v1727 = vpack.c.b16 %v1717, %v1716
    %v1728 = vpack.c.b16 %v1719, %v1718
    %v1729 = vpack.c.b16 %v1721, %v1720
    %1738 = vmatprep.subr.bf16.mxu0 0
    %1739 = vmatpush1.bf16.msra.mxu0 %v1729
    %1740 = vmatprep.subr.bf16.mxu0 0
    %1741 = vmatpush1.bf16.msra.mxu0 %v1728
    %1742 = vmatprep.subr.bf16.mxu0 0
    %1743 = vmatpush1.bf16.msra.mxu0 %v1727
    %1744 = vmatprep.subr.bf16.mxu0 0
    %1745 = vmatpush1.bf16.msra.mxu0 %v1726
    %1746 = vmatprep.subr.bf16.mxu0 0
    %1747 = vmatpush1.bf16.msra.mxu0 %v1725
    %1748 = vmatprep.subr.bf16.mxu0 0
    %1749 = vmatpush1.bf16.msra.mxu0 %v1724
    %1750 = vmatprep.subr.bf16.mxu0 0
    %1751 = vmatpush1.bf16.msra.mxu0 %v1723
    %1752 = vmatprep.subr.bf16.mxu0 0
    %1753 = vmatpush1.bf16.msra.mxu0 %v1722
    %1754 = vmatprep.subr.bf16.mxu0 0
    %1755 = vmatpush2.bf16.msra.mxu0 0
    %1756 = vmatprep.subr.bf16.mxu0 0
    %1757 = vmatpush2.bf16.msra.mxu0 0
    %1758 = vmatprep.subr.bf16.mxu0 0
    %1759 = vmatpush2.bf16.msra.mxu0 0
    %1760 = vmatprep.subr.bf16.mxu0 0
    %1761 = vmatpush2.bf16.msra.mxu0 0
    %1762 = vmatprep.subr.bf16.mxu0 0
    %1763 = vmatpush2.bf16.msra.mxu0 0
    %1764 = vmatprep.subr.bf16.mxu0 0
    %1765 = vmatpush2.bf16.msra.mxu0 0
    %1766 = vmatprep.subr.bf16.mxu0 0
    %1767 = vmatpush2.bf16.msra.mxu0 0
    %1768 = vmatprep.subr.bf16.mxu0 0
    %1769 = vmatpush2.bf16.msra.mxu0 0
    %1770 = vmatprep.mubr.bf16.mxu0 0
    %1771 = vmatmul.mubr.bf16.gmra.mxu0 %v1665
    %v1772 = vpop.f32.mrf.mxu0
    %v1773 = vadd.f32 0.0, %v1772
    %v1774 = vpop.f32.mrf.mxu0
    %v1775 = vpop.f32.mrf.mxu0
    %v1776 = vadd.f32 0.0, %v1775
    %v1777 = vpop.f32.mrf.mxu0
    %1778 = vmatprep.mubr.bf16.mxu0 0
    %1779 = vmatmul.mubr.bf16.gmra.mxu0 %v1666
    %v1780 = vpop.f32.mrf.mxu0
    %v1781 = vadd.f32 0.0, %v1780
    %v1782 = vpop.f32.mrf.mxu0
    %v1783 = vpop.f32.mrf.mxu0
    %v1784 = vadd.f32 0.0, %v1783
    %v1785 = vpop.f32.mrf.mxu0
    %1786 = vmatprep.mubr.bf16.mxu0 0
    %1787 = vmatmul.mubr.bf16.gmra.mxu0 %v1667
    %v1788 = vpop.f32.mrf.mxu0
    %v1789 = vadd.f32 0.0, %v1788
    %v1790 = vpop.f32.mrf.mxu0
    %v1791 = vpop.f32.mrf.mxu0
    %v1792 = vadd.f32 0.0, %v1791
    %v1793 = vpop.f32.mrf.mxu0
    %1794 = vmatprep.mubr.bf16.mxu0 0
    %1795 = vmatmul.mubr.bf16.gmra.mxu0 %v1668
    %v1796 = vpop.f32.mrf.mxu0
    %v1797 = vadd.f32 0.0, %v1796
    %v1798 = vpop.f32.mrf.mxu0
    %v1799 = vpop.f32.mrf.mxu0
    %v1800 = vadd.f32 0.0, %v1799
    %v1801 = vpop.f32.mrf.mxu0
    %1802 = vmatprep.mubr.bf16.mxu0 0
    %1803 = vmatmul.mubr.bf16.gmra.mxu0 %v1669
    %v1804 = vpop.f32.mrf.mxu0
    %v1805 = vadd.f32 0.0, %v1804
    %v1806 = vpop.f32.mrf.mxu0
    %v1807 = vpop.f32.mrf.mxu0
    %v1808 = vadd.f32 0.0, %v1807
    %v1809 = vpop.f32.mrf.mxu0
    %1810 = vmatprep.mubr.bf16.mxu0 0
    %1811 = vmatmul.mubr.bf16.gmra.mxu0 %v1670
    %v1812 = vpop.f32.mrf.mxu0
    %v1813 = vadd.f32 0.0, %v1812
    %v1814 = vpop.f32.mrf.mxu0
    %v1815 = vpop.f32.mrf.mxu0
    %v1816 = vadd.f32 0.0, %v1815
    %v1817 = vpop.f32.mrf.mxu0
    %1818 = vmatprep.mubr.bf16.mxu0 0
    %1819 = vmatmul.mubr.bf16.gmra.mxu0 %v1671
    %v1820 = vpop.f32.mrf.mxu0
    %v1821 = vadd.f32 0.0, %v1820
    %v1822 = vpop.f32.mrf.mxu0
    %v1823 = vpop.f32.mrf.mxu0
    %v1824 = vadd.f32 0.0, %v1823
    %v1825 = vpop.f32.mrf.mxu0
    %1826 = vmatprep.mubr.bf16.mxu0 0
    %1827 = vmatmul.mubr.bf16.gmra.mxu0 %v1672
    %v1828 = vpop.f32.mrf.mxu0
    %v1829 = vadd.f32 0.0, %v1828
    %v1830 = vpop.f32.mrf.mxu0
    %v1831 = vpop.f32.mrf.mxu0
    %v1832 = vadd.f32 0.0, %v1831
    %v1833 = vpop.f32.mrf.mxu0
    %1834 = vdwg.mxu0
    %s1835 = scalar_lea.vmem %s8, 128
    %v1836 = vld [vmem:[%s1835] sm:$0xff]
    %v1837 = vld [vmem:[%s1835 + $0x8] sm:$0xff]
    %v1838 = vld [vmem:[%s1835 + $0x10] sm:$0xff]
    %v1839 = vld [vmem:[%s1835 + $0x18] sm:$0xff]
    %v1840 = vld [vmem:[%s1835 + $0x20] sm:$0xff]
    %v1841 = vld [vmem:[%s1835 + $0x28] sm:$0xff]
    %v1842 = vld [vmem:[%s1835 + $0x30] sm:$0xff]
    %v1843 = vld [vmem:[%s1835 + $0x38] sm:$0xff]
    %v1844 = vld [vmem:[%s1835 + $0x40] sm:$0xff]
    %v1845 = vld [vmem:[%s1835 + $0x48] sm:$0xff]
    %v1846 = vld [vmem:[%s1835 + $0x50] sm:$0xff]
    %v1847 = vld [vmem:[%s1835 + $0x58] sm:$0xff]
    %v1848 = vld [vmem:[%s1835 + $0x60] sm:$0xff]
    %v1849 = vld [vmem:[%s1835 + $0x68] sm:$0xff]
    %v1850 = vld [vmem:[%s1835 + $0x70] sm:$0xff]
    %v1851 = vld [vmem:[%s1835 + $0x78] sm:$0xff]
    %v1868 = vunpack.c.l.b16 %v1836
    %v1869 = vunpack.c.h.b16 %v1836
    %v1870 = vunpack.c.l.b16 %v1837
    %v1871 = vunpack.c.h.b16 %v1837
    %v1872 = vunpack.c.l.b16 %v1838
    %v1873 = vunpack.c.h.b16 %v1838
    %v1874 = vunpack.c.l.b16 %v1839
    %v1875 = vunpack.c.h.b16 %v1839
    %v1876 = vunpack.c.l.b16 %v1840
    %v1877 = vunpack.c.h.b16 %v1840
    %v1878 = vunpack.c.l.b16 %v1841
    %v1879 = vunpack.c.h.b16 %v1841
    %v1880 = vunpack.c.l.b16 %v1842
    %v1881 = vunpack.c.h.b16 %v1842
    %v1882 = vunpack.c.l.b16 %v1843
    %v1883 = vunpack.c.h.b16 %v1843
    %v1884 = vunpack.c.l.b16 %v1844
    %v1885 = vunpack.c.h.b16 %v1844
    %v1886 = vunpack.c.l.b16 %v1845
    %v1887 = vunpack.c.h.b16 %v1845
    %v1888 = vunpack.c.l.b16 %v1846
    %v1889 = vunpack.c.h.b16 %v1846
    %v1890 = vunpack.c.l.b16 %v1847
    %v1891 = vunpack.c.h.b16 %v1847
    %v1892 = vunpack.c.l.b16 %v1848
    %v1893 = vunpack.c.h.b16 %v1848
    %v1894 = vunpack.c.l.b16 %v1849
    %v1895 = vunpack.c.h.b16 %v1849
    %v1896 = vunpack.c.l.b16 %v1850
    %v1897 = vunpack.c.h.b16 %v1850
    %v1898 = vunpack.c.l.b16 %v1851
    %v1899 = vunpack.c.h.b16 %v1851
    %v1900 = vpack.c.b16 %v1870, %v1868
    %v1901 = vpack.c.b16 %v1871, %v1869
    %v1902 = vpack.c.b16 %v1874, %v1872
    %v1903 = vpack.c.b16 %v1875, %v1873
    %v1904 = vpack.c.b16 %v1878, %v1876
    %v1905 = vpack.c.b16 %v1879, %v1877
    %v1906 = vpack.c.b16 %v1882, %v1880
    %v1907 = vpack.c.b16 %v1883, %v1881
    %v1908 = vpack.c.b16 %v1886, %v1884
    %v1909 = vpack.c.b16 %v1887, %v1885
    %v1910 = vpack.c.b16 %v1890, %v1888
    %v1911 = vpack.c.b16 %v1891, %v1889
    %v1912 = vpack.c.b16 %v1894, %v1892
    %v1913 = vpack.c.b16 %v1895, %v1893
    %v1914 = vpack.c.b16 %v1898, %v1896
    %v1915 = vpack.c.b16 %v1899, %v1897
    %1932 = vmatprep.subr.bf16.mxu0 %v1915
    %1933 = vmatpush1.bf16.msra.mxu0 %v1914
    %1934 = vmatprep.subr.bf16.mxu0 %v1913
    %1935 = vmatpush1.bf16.msra.mxu0 %v1912
    %1936 = vmatprep.subr.bf16.mxu0 %v1911
    %1937 = vmatpush1.bf16.msra.mxu0 %v1910
    %1938 = vmatprep.subr.bf16.mxu0 %v1909
    %1939 = vmatpush1.bf16.msra.mxu0 %v1908
    %1940 = vmatprep.subr.bf16.mxu0 %v1907
    %1941 = vmatpush1.bf16.msra.mxu0 %v1906
    %1942 = vmatprep.subr.bf16.mxu0 %v1905
    %1943 = vmatpush1.bf16.msra.mxu0 %v1904
    %1944 = vmatprep.subr.bf16.mxu0 %v1903
    %1945 = vmatpush1.bf16.msra.mxu0 %v1902
    %1946 = vmatprep.subr.bf16.mxu0 %v1901
    %1947 = vmatpush1.bf16.msra.mxu0 %v1900
    %1948 = vmatprep.subr.bf16.mxu0 0
    %1949 = vmatpush2.bf16.msra.mxu0 0
    %1950 = vmatprep.subr.bf16.mxu0 0
    %1951 = vmatpush2.bf16.msra.mxu0 0
    %1952 = vmatprep.subr.bf16.mxu0 0
    %1953 = vmatpush2.bf16.msra.mxu0 0
    %1954 = vmatprep.subr.bf16.mxu0 0
    %1955 = vmatpush2.bf16.msra.mxu0 0
    %1956 = vmatprep.subr.bf16.mxu0 0
    %1957 = vmatpush2.bf16.msra.mxu0 0
    %1958 = vmatprep.subr.bf16.mxu0 0
    %1959 = vmatpush2.bf16.msra.mxu0 0
    %1960 = vmatprep.subr.bf16.mxu0 0
    %1961 = vmatpush2.bf16.msra.mxu0 0
    %1962 = vmatprep.subr.bf16.mxu0 0
    %1963 = vmatpush2.bf16.msra.mxu0 0
    %1964 = vmatprep.mubr.bf16.mxu0 0
    %1965 = vmatmul.mubr.bf16.gmra.mxu0 %v1493
    %v1966 = vpop.f32.mrf.mxu0
    %v1967 = vadd.f32 0.0, %v1966
    %v1968 = vpop.f32.mrf.mxu0
    %v1969 = vadd.f32 0.0, %v1968
    %v1970 = vpop.f32.mrf.mxu0
    %v1971 = vadd.f32 0.0, %v1970
    %v1972 = vpop.f32.mrf.mxu0
    %v1973 = vadd.f32 0.0, %v1972
    %1974 = vmatprep.mubr.bf16.mxu0 0
    %1975 = vmatmul.mubr.bf16.gmra.mxu0 %v1494
    %v1976 = vpop.f32.mrf.mxu0
    %v1977 = vadd.f32 0.0, %v1976
    %v1978 = vpop.f32.mrf.mxu0
    %v1979 = vadd.f32 0.0, %v1978
    %v1980 = vpop.f32.mrf.mxu0
    %v1981 = vadd.f32 0.0, %v1980
    %v1982 = vpop.f32.mrf.mxu0
    %v1983 = vadd.f32 0.0, %v1982
    %1984 = vmatprep.mubr.bf16.mxu0 0
    %1985 = vmatmul.mubr.bf16.gmra.mxu0 %v1495
    %v1986 = vpop.f32.mrf.mxu0
    %v1987 = vadd.f32 0.0, %v1986
    %v1988 = vpop.f32.mrf.mxu0
    %v1989 = vadd.f32 0.0, %v1988
    %v1990 = vpop.f32.mrf.mxu0
    %v1991 = vadd.f32 0.0, %v1990
    %v1992 = vpop.f32.mrf.mxu0
    %v1993 = vadd.f32 0.0, %v1992
    %1994 = vmatprep.mubr.bf16.mxu0 0
    %1995 = vmatmul.mubr.bf16.gmra.mxu0 %v1496
    %v1996 = vpop.f32.mrf.mxu0
    %v1997 = vadd.f32 0.0, %v1996
    %v1998 = vpop.f32.mrf.mxu0
    %v1999 = vadd.f32 0.0, %v1998
    %v2000 = vpop.f32.mrf.mxu0
    %v2001 = vadd.f32 0.0, %v2000
    %v2002 = vpop.f32.mrf.mxu0
    %v2003 = vadd.f32 0.0, %v2002
    %2004 = vmatprep.mubr.bf16.mxu0 0
    %2005 = vmatmul.mubr.bf16.gmra.mxu0 %v1497
    %v2006 = vpop.f32.mrf.mxu0
    %v2007 = vadd.f32 0.0, %v2006
    %v2008 = vpop.f32.mrf.mxu0
    %v2009 = vadd.f32 0.0, %v2008
    %v2010 = vpop.f32.mrf.mxu0
    %v2011 = vadd.f32 0.0, %v2010
    %v2012 = vpop.f32.mrf.mxu0
    %v2013 = vadd.f32 0.0, %v2012
    %2014 = vmatprep.mubr.bf16.mxu0 0
    %2015 = vmatmul.mubr.bf16.gmra.mxu0 %v1498
    %v2016 = vpop.f32.mrf.mxu0
    %v2017 = vadd.f32 0.0, %v2016
    %v2018 = vpop.f32.mrf.mxu0
    %v2019 = vadd.f32 0.0, %v2018
    %v2020 = vpop.f32.mrf.mxu0
    %v2021 = vadd.f32 0.0, %v2020
    %v2022 = vpop.f32.mrf.mxu0
    %v2023 = vadd.f32 0.0, %v2022
    %2024 = vmatprep.mubr.bf16.mxu0 0
    %2025 = vmatmul.mubr.bf16.gmra.mxu0 %v1499
    %v2026 = vpop.f32.mrf.mxu0
    %v2027 = vadd.f32 0.0, %v2026
    %v2028 = vpop.f32.mrf.mxu0
    %v2029 = vadd.f32 0.0, %v2028
    %v2030 = vpop.f32.mrf.mxu0
    %v2031 = vadd.f32 0.0, %v2030
    %v2032 = vpop.f32.mrf.mxu0
    %v2033 = vadd.f32 0.0, %v2032
    %2034 = vmatprep.mubr.bf16.mxu0 0
    %2035 = vmatmul.mubr.bf16.gmra.mxu0 %v1500
    %v2036 = vpop.f32.mrf.mxu0
    %v2037 = vadd.f32 0.0, %v2036
    %v2038 = vpop.f32.mrf.mxu0
    %v2039 = vadd.f32 0.0, %v2038
    %v2040 = vpop.f32.mrf.mxu0
    %v2041 = vadd.f32 0.0, %v2040
    %v2042 = vpop.f32.mrf.mxu0
    %v2043 = vadd.f32 0.0, %v2042
    %2044 = vdwg.mxu0
    %s2045 = scalar_lea.vmem %s10, 1
    %v2046 = vld [vmem:[%s2045] sm:$0x1]
    %v2048 = vlaneseq
    %v2049 = vshrl.u32 %v2048, 7
    %v2050 = vsub.s32 0, %v2049
    %v2051 = vrot.slane %v2046, %v2050
    %v2053 = vadd.f32 %v1967, %v2051
    %v2054 = vadd.f32 %v1971, %v2051
    %v2055 = vadd.f32 %v1977, %v2051
    %v2056 = vadd.f32 %v1981, %v2051
    %v2057 = vadd.f32 %v1987, %v2051
    %v2058 = vadd.f32 %v1991, %v2051
    %v2059 = vadd.f32 %v1997, %v2051
    %v2060 = vadd.f32 %v2001, %v2051
    %v2061 = vadd.f32 %v2007, %v2051
    %v2062 = vadd.f32 %v2011, %v2051
    %v2063 = vadd.f32 %v2017, %v2051
    %v2064 = vadd.f32 %v2021, %v2051
    %v2065 = vadd.f32 %v2027, %v2051
    %v2066 = vadd.f32 %v2031, %v2051
    %v2067 = vadd.f32 %v2037, %v2051
    %v2068 = vadd.f32 %v2041, %v2051
    %v2069 = vpack.c.bf16 %v1776, %v1773
    %v2070 = vpack.c.bf16 %v1784, %v1781
    %v2071 = vpack.c.bf16 %v1792, %v1789
    %v2072 = vpack.c.bf16 %v1800, %v1797
    %v2073 = vpack.c.bf16 %v1808, %v1805
    %v2074 = vpack.c.bf16 %v1816, %v1813
    %v2075 = vpack.c.bf16 %v1824, %v1821
    %v2076 = vpack.c.bf16 %v1832, %v1829
    %v2077 = vpack.c.bf16 %v2054, %v2053
    %v2078 = vpack.c.bf16 %v2056, %v2055
    %v2079 = vpack.c.bf16 %v2058, %v2057
    %v2080 = vpack.c.bf16 %v2060, %v2059
    %v2081 = vpack.c.bf16 %v2062, %v2061
    %v2082 = vpack.c.bf16 %v2064, %v2063
    %v2083 = vpack.c.bf16 %v2066, %v2065
    %v2084 = vpack.c.bf16 %v2068, %v2067
    %2085 = vmatprep.subr.bf16.mxu0 0
    %2086 = vmatpush1.bf16.msra.mxu0 %v2084
    %2087 = vmatprep.subr.bf16.mxu0 0
    %2088 = vmatpush1.bf16.msra.mxu0 %v2083
    %2089 = vmatprep.subr.bf16.mxu0 0
    %2090 = vmatpush1.bf16.msra.mxu0 %v2082
    %2091 = vmatprep.subr.bf16.mxu0 0
    %2092 = vmatpush1.bf16.msra.mxu0 %v2081
    %2093 = vmatprep.subr.bf16.mxu0 0
    %2094 = vmatpush1.bf16.msra.mxu0 %v2080
    %2095 = vmatprep.subr.bf16.mxu0 0
    %2096 = vmatpush1.bf16.msra.mxu0 %v2079
    %2097 = vmatprep.subr.bf16.mxu0 0
    %2098 = vmatpush1.bf16.msra.mxu0 %v2078
    %2099 = vmatprep.subr.bf16.mxu0 0
    %2100 = vmatpush1.bf16.msra.mxu0 %v2077
    %2101 = vmatprep.subr.bf16.mxu0 0
    %2102 = vmatpush2.bf16.msra.mxu0 0
    %2103 = vmatprep.subr.bf16.mxu0 0
    %2104 = vmatpush2.bf16.msra.mxu0 0
    %2105 = vmatprep.subr.bf16.mxu0 0
    %2106 = vmatpush2.bf16.msra.mxu0 0
    %2107 = vmatprep.subr.bf16.mxu0 0
    %2108 = vmatpush2.bf16.msra.mxu0 0
    %2109 = vmatprep.subr.bf16.mxu0 0
    %2110 = vmatpush2.bf16.msra.mxu0 0
    %2111 = vmatprep.subr.bf16.mxu0 0
    %2112 = vmatpush2.bf16.msra.mxu0 0
    %2113 = vmatprep.subr.bf16.mxu0 0
    %2114 = vmatpush2.bf16.msra.mxu0 0
    %2115 = vmatprep.subr.bf16.mxu0 0
    %2116 = vmatpush2.bf16.msra.mxu0 0
    %2117 = vmatprep.mubr.bf16.mxu0 0
    %2118 = vmatmul.mubr.bf16.gmra.mxu0 %v769
    %v2119 = vpop.f32.mrf.mxu0
    %v2120 = vadd.f32 0.0, %v2119
    %v2121 = vpop.f32.mrf.mxu0
    %v2122 = vpop.f32.mrf.mxu0
    %v2123 = vadd.f32 0.0, %v2122
    %v2124 = vpop.f32.mrf.mxu0
    %2125 = vmatprep.mubr.bf16.mxu0 0
    %2126 = vmatmul.mubr.bf16.gmra.mxu0 %v770
    %v2127 = vpop.f32.mrf.mxu0
    %v2128 = vadd.f32 0.0, %v2127
    %v2129 = vpop.f32.mrf.mxu0
    %v2130 = vpop.f32.mrf.mxu0
    %v2131 = vadd.f32 0.0, %v2130
    %v2132 = vpop.f32.mrf.mxu0
    %2133 = vmatprep.mubr.bf16.mxu0 0
    %2134 = vmatmul.mubr.bf16.gmra.mxu0 %v771
    %v2135 = vpop.f32.mrf.mxu0
    %v2136 = vadd.f32 0.0, %v2135
    %v2137 = vpop.f32.mrf.mxu0
    %v2138 = vpop.f32.mrf.mxu0
    %v2139 = vadd.f32 0.0, %v2138
    %v2140 = vpop.f32.mrf.mxu0
    %2141 = vmatprep.mubr.bf16.mxu0 0
    %2142 = vmatmul.mubr.bf16.gmra.mxu0 %v772
    %v2143 = vpop.f32.mrf.mxu0
    %v2144 = vadd.f32 0.0, %v2143
    %v2145 = vpop.f32.mrf.mxu0
    %v2146 = vpop.f32.mrf.mxu0
    %v2147 = vadd.f32 0.0, %v2146
    %v2148 = vpop.f32.mrf.mxu0
    %2149 = vmatprep.mubr.bf16.mxu0 0
    %2150 = vmatmul.mubr.bf16.gmra.mxu0 %v773
    %v2151 = vpop.f32.mrf.mxu0
    %v2152 = vadd.f32 0.0, %v2151
    %v2153 = vpop.f32.mrf.mxu0
    %v2154 = vpop.f32.mrf.mxu0
    %v2155 = vadd.f32 0.0, %v2154
    %v2156 = vpop.f32.mrf.mxu0
    %2157 = vmatprep.mubr.bf16.mxu0 0
    %2158 = vmatmul.mubr.bf16.gmra.mxu0 %v774
    %v2159 = vpop.f32.mrf.mxu0
    %v2160 = vadd.f32 0.0, %v2159
    %v2161 = vpop.f32.mrf.mxu0
    %v2162 = vpop.f32.mrf.mxu0
    %v2163 = vadd.f32 0.0, %v2162
    %v2164 = vpop.f32.mrf.mxu0
    %2165 = vmatprep.mubr.bf16.mxu0 0
    %2166 = vmatmul.mubr.bf16.gmra.mxu0 %v775
    %v2167 = vpop.f32.mrf.mxu0
    %v2168 = vadd.f32 0.0, %v2167
    %v2169 = vpop.f32.mrf.mxu0
    %v2170 = vpop.f32.mrf.mxu0
    %v2171 = vadd.f32 0.0, %v2170
    %v2172 = vpop.f32.mrf.mxu0
    %2173 = vmatprep.mubr.bf16.mxu0 0
    %2174 = vmatmul.mubr.bf16.gmra.mxu0 %v776
    %v2175 = vpop.f32.mrf.mxu0
    %v2176 = vadd.f32 0.0, %v2175
    %v2177 = vpop.f32.mrf.mxu0
    %v2178 = vpop.f32.mrf.mxu0
    %v2179 = vadd.f32 0.0, %v2178
    %v2180 = vpop.f32.mrf.mxu0
    %2181 = vdwg.mxu0
    %2182 = vmatprep.subr.bf16.mxu0 0
    %2183 = vmatpush1.bf16.msra.mxu0 %v2076
    %2184 = vmatprep.subr.bf16.mxu0 0
    %2185 = vmatpush1.bf16.msra.mxu0 %v2075
    %2186 = vmatprep.subr.bf16.mxu0 0
    %2187 = vmatpush1.bf16.msra.mxu0 %v2074
    %2188 = vmatprep.subr.bf16.mxu0 0
    %2189 = vmatpush1.bf16.msra.mxu0 %v2073
    %2190 = vmatprep.subr.bf16.mxu0 0
    %2191 = vmatpush1.bf16.msra.mxu0 %v2072
    %2192 = vmatprep.subr.bf16.mxu0 0
    %2193 = vmatpush1.bf16.msra.mxu0 %v2071
    %2194 = vmatprep.subr.bf16.mxu0 0
    %2195 = vmatpush1.bf16.msra.mxu0 %v2070
    %2196 = vmatprep.subr.bf16.mxu0 0
    %2197 = vmatpush1.bf16.msra.mxu0 %v2069
    %2198 = vmatprep.subr.bf16.mxu0 0
    %2199 = vmatpush2.bf16.msra.mxu0 0
    %2200 = vmatprep.subr.bf16.mxu0 0
    %2201 = vmatpush2.bf16.msra.mxu0 0
    %2202 = vmatprep.subr.bf16.mxu0 0
    %2203 = vmatpush2.bf16.msra.mxu0 0
    %2204 = vmatprep.subr.bf16.mxu0 0
    %2205 = vmatpush2.bf16.msra.mxu0 0
    %2206 = vmatprep.subr.bf16.mxu0 0
    %2207 = vmatpush2.bf16.msra.mxu0 0
    %2208 = vmatprep.subr.bf16.mxu0 0
    %2209 = vmatpush2.bf16.msra.mxu0 0
    %2210 = vmatprep.subr.bf16.mxu0 0
    %2211 = vmatpush2.bf16.msra.mxu0 0
    %2212 = vmatprep.subr.bf16.mxu0 0
    %2213 = vmatpush2.bf16.msra.mxu0 0
    %2214 = vmatprep.mubr.bf16.mxu0 0
    %2215 = vmatmul.mubr.bf16.gmra.mxu0 %v914
    %v2216 = vpop.f32.mrf.mxu0
    %v2217 = vadd.f32 %v2120, %v2216
    %v2218 = vpop.f32.mrf.mxu0
    %v2219 = vpop.f32.mrf.mxu0
    %v2220 = vadd.f32 %v2123, %v2219
    %v2221 = vpop.f32.mrf.mxu0
    %2222 = vmatprep.mubr.bf16.mxu0 0
    %2223 = vmatmul.mubr.bf16.gmra.mxu0 %v915
    %v2224 = vpop.f32.mrf.mxu0
    %v2225 = vadd.f32 %v2128, %v2224
    %v2226 = vpop.f32.mrf.mxu0
    %v2227 = vpop.f32.mrf.mxu0
    %v2228 = vadd.f32 %v2131, %v2227
    %v2229 = vpop.f32.mrf.mxu0
    %2230 = vmatprep.mubr.bf16.mxu0 0
    %2231 = vmatmul.mubr.bf16.gmra.mxu0 %v916
    %v2232 = vpop.f32.mrf.mxu0
    %v2233 = vadd.f32 %v2136, %v2232
    %v2234 = vpop.f32.mrf.mxu0
    %v2235 = vpop.f32.mrf.mxu0
    %v2236 = vadd.f32 %v2139, %v2235
    %v2237 = vpop.f32.mrf.mxu0
    %2238 = vmatprep.mubr.bf16.mxu0 0
    %2239 = vmatmul.mubr.bf16.gmra.mxu0 %v917
    %v2240 = vpop.f32.mrf.mxu0
    %v2241 = vadd.f32 %v2144, %v2240
    %v2242 = vpop.f32.mrf.mxu0
    %v2243 = vpop.f32.mrf.mxu0
    %v2244 = vadd.f32 %v2147, %v2243
    %v2245 = vpop.f32.mrf.mxu0
    %2246 = vmatprep.mubr.bf16.mxu0 0
    %2247 = vmatmul.mubr.bf16.gmra.mxu0 %v918
    %v2248 = vpop.f32.mrf.mxu0
    %v2249 = vadd.f32 %v2152, %v2248
    %v2250 = vpop.f32.mrf.mxu0
    %v2251 = vpop.f32.mrf.mxu0
    %v2252 = vadd.f32 %v2155, %v2251
    %v2253 = vpop.f32.mrf.mxu0
    %2254 = vmatprep.mubr.bf16.mxu0 0
    %2255 = vmatmul.mubr.bf16.gmra.mxu0 %v919
    %v2256 = vpop.f32.mrf.mxu0
    %v2257 = vadd.f32 %v2160, %v2256
    %v2258 = vpop.f32.mrf.mxu0
    %v2259 = vpop.f32.mrf.mxu0
    %v2260 = vadd.f32 %v2163, %v2259
    %v2261 = vpop.f32.mrf.mxu0
    %2262 = vmatprep.mubr.bf16.mxu0 0
    %2263 = vmatmul.mubr.bf16.gmra.mxu0 %v920
    %v2264 = vpop.f32.mrf.mxu0
    %v2265 = vadd.f32 %v2168, %v2264
    %v2266 = vpop.f32.mrf.mxu0
    %v2267 = vpop.f32.mrf.mxu0
    %v2268 = vadd.f32 %v2171, %v2267
    %v2269 = vpop.f32.mrf.mxu0
    %2270 = vmatprep.mubr.bf16.mxu0 0
    %2271 = vmatmul.mubr.bf16.gmra.mxu0 %v921
    %v2272 = vpop.f32.mrf.mxu0
    %v2273 = vadd.f32 %v2176, %v2272
    %v2274 = vpop.f32.mrf.mxu0
    %v2275 = vpop.f32.mrf.mxu0
    %v2276 = vadd.f32 %v2179, %v2275
    %v2277 = vpop.f32.mrf.mxu0
    %2278 = vdwg.mxu0
    %s2279 = scalar_lea.vmem %s11, 1
    %v2280 = vld [vmem:[%s2279] sm:$0x1]
    %v2282 = vlaneseq
    %v2283 = vshrl.u32 %v2282, 7
    %v2284 = vsub.s32 0, %v2283
    %v2285 = vrot.slane %v2280, %v2284
    %v2287 = vadd.f32 %v2217, %v2285
    %v2288 = vadd.f32 %v2220, %v2285
    %v2289 = vadd.f32 %v2225, %v2285
    %v2290 = vadd.f32 %v2228, %v2285
    %v2291 = vadd.f32 %v2233, %v2285
    %v2292 = vadd.f32 %v2236, %v2285
    %v2293 = vadd.f32 %v2241, %v2285
    %v2294 = vadd.f32 %v2244, %v2285
    %v2295 = vadd.f32 %v2249, %v2285
    %v2296 = vadd.f32 %v2252, %v2285
    %v2297 = vadd.f32 %v2257, %v2285
    %v2298 = vadd.f32 %v2260, %v2285
    %v2299 = vadd.f32 %v2265, %v2285
    %v2300 = vadd.f32 %v2268, %v2285
    %v2301 = vadd.f32 %v2273, %v2285
    %v2302 = vadd.f32 %v2276, %v2285
    %vm2303 = vcmp.gt.f32.partialorder %v2287, 0.0
    %vm2304 = vcmp.gt.f32.partialorder %v2288, 0.0
    %vm2305 = vcmp.gt.f32.partialorder %v2289, 0.0
    %vm2306 = vcmp.gt.f32.partialorder %v2290, 0.0
    %vm2307 = vcmp.gt.f32.partialorder %v2291, 0.0
    %vm2308 = vcmp.gt.f32.partialorder %v2292, 0.0
    %vm2309 = vcmp.gt.f32.partialorder %v2293, 0.0
    %vm2310 = vcmp.gt.f32.partialorder %v2294, 0.0
    %vm2311 = vcmp.gt.f32.partialorder %v2295, 0.0
    %vm2312 = vcmp.gt.f32.partialorder %v2296, 0.0
    %vm2313 = vcmp.gt.f32.partialorder %v2297, 0.0
    %vm2314 = vcmp.gt.f32.partialorder %v2298, 0.0
    %vm2315 = vcmp.gt.f32.partialorder %v2299, 0.0
    %vm2316 = vcmp.gt.f32.partialorder %v2300, 0.0
    %vm2317 = vcmp.gt.f32.partialorder %v2301, 0.0
    %vm2318 = vcmp.gt.f32.partialorder %v2302, 0.0
    %v2319 = vstv %s1501
    %v2320 = vmul.f32 %v2319, %v2287
    %v2321 = vmul.f32 %v2319, %v2288
    %v2322 = vmul.f32 %v2319, %v2289
    %v2323 = vmul.f32 %v2319, %v2290
    %v2324 = vmul.f32 %v2319, %v2291
    %v2325 = vmul.f32 %v2319, %v2292
    %v2326 = vmul.f32 %v2319, %v2293
    %v2327 = vmul.f32 %v2319, %v2294
    %v2328 = vmul.f32 %v2319, %v2295
    %v2329 = vmul.f32 %v2319, %v2296
    %v2330 = vmul.f32 %v2319, %v2297
    %v2331 = vmul.f32 %v2319, %v2298
    %v2332 = vmul.f32 %v2319, %v2299
    %v2333 = vmul.f32 %v2319, %v2300
    %v2334 = vmul.f32 %v2319, %v2301
    %v2335 = vmul.f32 %v2319, %v2302
    %v2336 = vsel %vm2303, %v2287, %v2320
    %v2337 = vsel %vm2304, %v2288, %v2321
    %v2338 = vsel %vm2305, %v2289, %v2322
    %v2339 = vsel %vm2306, %v2290, %v2323
    %v2340 = vsel %vm2307, %v2291, %v2324
    %v2341 = vsel %vm2308, %v2292, %v2325
    %v2342 = vsel %vm2309, %v2293, %v2326
    %v2343 = vsel %vm2310, %v2294, %v2327
    %v2344 = vsel %vm2311, %v2295, %v2328
    %v2345 = vsel %vm2312, %v2296, %v2329
    %v2346 = vsel %vm2313, %v2297, %v2330
    %v2347 = vsel %vm2314, %v2298, %v2331
    %v2348 = vsel %vm2315, %v2299, %v2332
    %v2349 = vsel %vm2316, %v2300, %v2333
    %v2350 = vsel %vm2317, %v2301, %v2334
    %v2351 = vsel %vm2318, %v2302, %v2335
    %v2352 = vpack.c.bf16 %v2337, %v2336
    %v2353 = vpack.c.bf16 %v2339, %v2338
    %v2354 = vpack.c.bf16 %v2341, %v2340
    %v2355 = vpack.c.bf16 %v2343, %v2342
    %v2356 = vpack.c.bf16 %v2345, %v2344
    %v2357 = vpack.c.bf16 %v2347, %v2346
    %v2358 = vpack.c.bf16 %v2349, %v2348
    %v2359 = vpack.c.bf16 %v2351, %v2350
    %2360 = vmatprep.subr.bf16.mxu0 0
    %2361 = vmatpush1.bf16.msra.mxu0 %v2359
    %2362 = vmatprep.subr.bf16.mxu0 0
    %2363 = vmatpush1.bf16.msra.mxu0 %v2358
    %2364 = vmatprep.subr.bf16.mxu0 0
    %2365 = vmatpush1.bf16.msra.mxu0 %v2357
    %2366 = vmatprep.subr.bf16.mxu0 0
    %2367 = vmatpush1.bf16.msra.mxu0 %v2356
    %2368 = vmatprep.subr.bf16.mxu0 0
    %2369 = vmatpush1.bf16.msra.mxu0 %v2355
    %2370 = vmatprep.subr.bf16.mxu0 0
    %2371 = vmatpush1.bf16.msra.mxu0 %v2354
    %2372 = vmatprep.subr.bf16.mxu0 0
    %2373 = vmatpush1.bf16.msra.mxu0 %v2353
    %2374 = vmatprep.subr.bf16.mxu0 0
    %2375 = vmatpush1.bf16.msra.mxu0 %v2352
    %2376 = vmatprep.subr.bf16.mxu0 0
    %2377 = vmatpush2.bf16.msra.mxu0 0
    %2378 = vmatprep.subr.bf16.mxu0 0
    %2379 = vmatpush2.bf16.msra.mxu0 0
    %2380 = vmatprep.subr.bf16.mxu0 0
    %2381 = vmatpush2.bf16.msra.mxu0 0
    %2382 = vmatprep.subr.bf16.mxu0 0
    %2383 = vmatpush2.bf16.msra.mxu0 0
    %2384 = vmatprep.subr.bf16.mxu0 0
    %2385 = vmatpush2.bf16.msra.mxu0 0
    %2386 = vmatprep.subr.bf16.mxu0 0
    %2387 = vmatpush2.bf16.msra.mxu0 0
    %2388 = vmatprep.subr.bf16.mxu0 0
    %2389 = vmatpush2.bf16.msra.mxu0 0
    %2390 = vmatprep.subr.bf16.mxu0 0
    %2391 = vmatpush2.bf16.msra.mxu0 0
    %2392 = vmatprep.mubr.bf16.mxu0 0
    %2393 = vmatmul.mubr.bf16.gmra.mxu0 %v1139
    %v2394 = vpop.f32.mrf.mxu0
    %v2395 = vadd.f32 0.0, %v2394
    %v2396 = vpop.f32.mrf.mxu0
    %v2397 = vpop.f32.mrf.mxu0
    %v2398 = vadd.f32 0.0, %v2397
    %v2399 = vpop.f32.mrf.mxu0
    %2400 = vmatprep.mubr.bf16.mxu0 0
    %2401 = vmatmul.mubr.bf16.gmra.mxu0 %v1140
    %v2402 = vpop.f32.mrf.mxu0
    %v2403 = vadd.f32 0.0, %v2402
    %v2404 = vpop.f32.mrf.mxu0
    %v2405 = vpop.f32.mrf.mxu0
    %v2406 = vadd.f32 0.0, %v2405
    %v2407 = vpop.f32.mrf.mxu0
    %2408 = vmatprep.mubr.bf16.mxu0 0
    %2409 = vmatmul.mubr.bf16.gmra.mxu0 %v1141
    %v2410 = vpop.f32.mrf.mxu0
    %v2411 = vadd.f32 0.0, %v2410
    %v2412 = vpop.f32.mrf.mxu0
    %v2413 = vpop.f32.mrf.mxu0
    %v2414 = vadd.f32 0.0, %v2413
    %v2415 = vpop.f32.mrf.mxu0
    %2416 = vmatprep.mubr.bf16.mxu0 0
    %2417 = vmatmul.mubr.bf16.gmra.mxu0 %v1142
    %v2418 = vpop.f32.mrf.mxu0
    %v2419 = vadd.f32 0.0, %v2418
    %v2420 = vpop.f32.mrf.mxu0
    %v2421 = vpop.f32.mrf.mxu0
    %v2422 = vadd.f32 0.0, %v2421
    %v2423 = vpop.f32.mrf.mxu0
    %2424 = vmatprep.mubr.bf16.mxu0 0
    %2425 = vmatmul.mubr.bf16.gmra.mxu0 %v1143
    %v2426 = vpop.f32.mrf.mxu0
    %v2427 = vadd.f32 0.0, %v2426
    %v2428 = vpop.f32.mrf.mxu0
    %v2429 = vpop.f32.mrf.mxu0
    %v2430 = vadd.f32 0.0, %v2429
    %v2431 = vpop.f32.mrf.mxu0
    %2432 = vmatprep.mubr.bf16.mxu0 0
    %2433 = vmatmul.mubr.bf16.gmra.mxu0 %v1144
    %v2434 = vpop.f32.mrf.mxu0
    %v2435 = vadd.f32 0.0, %v2434
    %v2436 = vpop.f32.mrf.mxu0
    %v2437 = vpop.f32.mrf.mxu0
    %v2438 = vadd.f32 0.0, %v2437
    %v2439 = vpop.f32.mrf.mxu0
    %2440 = vmatprep.mubr.bf16.mxu0 0
    %2441 = vmatmul.mubr.bf16.gmra.mxu0 %v1145
    %v2442 = vpop.f32.mrf.mxu0
    %v2443 = vadd.f32 0.0, %v2442
    %v2444 = vpop.f32.mrf.mxu0
    %v2445 = vpop.f32.mrf.mxu0
    %v2446 = vadd.f32 0.0, %v2445
    %v2447 = vpop.f32.mrf.mxu0
    %2448 = vmatprep.mubr.bf16.mxu0 0
    %2449 = vmatmul.mubr.bf16.gmra.mxu0 %v1146
    %v2450 = vpop.f32.mrf.mxu0
    %v2451 = vadd.f32 0.0, %v2450
    %v2452 = vpop.f32.mrf.mxu0
    %v2453 = vpop.f32.mrf.mxu0
    %v2454 = vadd.f32 0.0, %v2453
    %v2455 = vpop.f32.mrf.mxu0
    %2456 = vdwg.mxu0
    %v2457 = vpack.c.bf16 %v2398, %v2395
    %v2458 = vpack.c.bf16 %v2406, %v2403
    %v2459 = vpack.c.bf16 %v2414, %v2411
    %v2460 = vpack.c.bf16 %v2422, %v2419
    %v2461 = vpack.c.bf16 %v2430, %v2427
    %v2462 = vpack.c.bf16 %v2438, %v2435
    %v2463 = vpack.c.bf16 %v2446, %v2443
    %v2464 = vpack.c.bf16 %v2454, %v2451
    %s2465 = scalar_lea.vmem %s9, 64
    %v2466 = vld [vmem:[%s2465] sm:$0xf]
    %v2467 = vld [vmem:[%s2465 + $0x4] sm:$0xf]
    %v2468 = vld [vmem:[%s2465 + $0x8] sm:$0xf]
    %v2469 = vld [vmem:[%s2465 + $0xc] sm:$0xf]
    %v2470 = vld [vmem:[%s2465 + $0x10] sm:$0xf]
    %v2471 = vld [vmem:[%s2465 + $0x14] sm:$0xf]
    %v2472 = vld [vmem:[%s2465 + $0x18] sm:$0xf]
    %v2473 = vld [vmem:[%s2465 + $0x1c] sm:$0xf]
    %v2474 = vld [vmem:[%s2465 + $0x20] sm:$0xf]
    %v2475 = vld [vmem:[%s2465 + $0x24] sm:$0xf]
    %v2476 = vld [vmem:[%s2465 + $0x28] sm:$0xf]
    %v2477 = vld [vmem:[%s2465 + $0x2c] sm:$0xf]
    %v2478 = vld [vmem:[%s2465 + $0x30] sm:$0xf]
    %v2479 = vld [vmem:[%s2465 + $0x34] sm:$0xf]
    %v2480 = vld [vmem:[%s2465 + $0x38] sm:$0xf]
    %v2481 = vld [vmem:[%s2465 + $0x3c] sm:$0xf]
    %v2498 = vunpack.c.l.b16 %v2466
    %v2499 = vunpack.c.l.b16 %v2467
    %v2500 = vunpack.c.l.b16 %v2468
    %v2501 = vunpack.c.l.b16 %v2469
    %v2502 = vunpack.c.l.b16 %v2470
    %v2503 = vunpack.c.l.b16 %v2471
    %v2504 = vunpack.c.l.b16 %v2472
    %v2505 = vunpack.c.l.b16 %v2473
    %v2506 = vunpack.c.l.b16 %v2474
    %v2507 = vunpack.c.l.b16 %v2475
    %v2508 = vunpack.c.l.b16 %v2476
    %v2509 = vunpack.c.l.b16 %v2477
    %v2510 = vunpack.c.l.b16 %v2478
    %v2511 = vunpack.c.l.b16 %v2479
    %v2512 = vunpack.c.l.b16 %v2480
    %v2513 = vunpack.c.l.b16 %v2481
    %v2514 = vpack.c.b16 %v2499, %v2498
    %v2515 = vpack.c.b16 %v2501, %v2500
    %v2516 = vpack.c.b16 %v2503, %v2502
    %v2517 = vpack.c.b16 %v2505, %v2504
    %v2518 = vpack.c.b16 %v2507, %v2506
    %v2519 = vpack.c.b16 %v2509, %v2508
    %v2520 = vpack.c.b16 %v2511, %v2510
    %v2521 = vpack.c.b16 %v2513, %v2512
    %2530 = vmatprep.subr.bf16.mxu0 0
    %2531 = vmatpush1.bf16.msra.mxu0 %v2521
    %2532 = vmatprep.subr.bf16.mxu0 0
    %2533 = vmatpush1.bf16.msra.mxu0 %v2520
    %2534 = vmatprep.subr.bf16.mxu0 0
    %2535 = vmatpush1.bf16.msra.mxu0 %v2519
    %2536 = vmatprep.subr.bf16.mxu0 0
    %2537 = vmatpush1.bf16.msra.mxu0 %v2518
    %2538 = vmatprep.subr.bf16.mxu0 0
    %2539 = vmatpush1.bf16.msra.mxu0 %v2517
    %2540 = vmatprep.subr.bf16.mxu0 0
    %2541 = vmatpush1.bf16.msra.mxu0 %v2516
    %2542 = vmatprep.subr.bf16.mxu0 0
    %2543 = vmatpush1.bf16.msra.mxu0 %v2515
    %2544 = vmatprep.subr.bf16.mxu0 0
    %2545 = vmatpush1.bf16.msra.mxu0 %v2514
    %2546 = vmatprep.subr.bf16.mxu0 0
    %2547 = vmatpush2.bf16.msra.mxu0 0
    %2548 = vmatprep.subr.bf16.mxu0 0
    %2549 = vmatpush2.bf16.msra.mxu0 0
    %2550 = vmatprep.subr.bf16.mxu0 0
    %2551 = vmatpush2.bf16.msra.mxu0 0
    %2552 = vmatprep.subr.bf16.mxu0 0
    %2553 = vmatpush2.bf16.msra.mxu0 0
    %2554 = vmatprep.subr.bf16.mxu0 0
    %2555 = vmatpush2.bf16.msra.mxu0 0
    %2556 = vmatprep.subr.bf16.mxu0 0
    %2557 = vmatpush2.bf16.msra.mxu0 0
    %2558 = vmatprep.subr.bf16.mxu0 0
    %2559 = vmatpush2.bf16.msra.mxu0 0
    %2560 = vmatprep.subr.bf16.mxu0 0
    %2561 = vmatpush2.bf16.msra.mxu0 0
    %2562 = vmatprep.mubr.bf16.mxu0 0
    %2563 = vmatmul.mubr.bf16.gmra.mxu0 %v2457
    %v2564 = vpop.f32.mrf.mxu0
    %v2565 = vadd.f32 %v1969, %v2564
    %v2566 = vpop.f32.mrf.mxu0
    %v2567 = vpop.f32.mrf.mxu0
    %v2568 = vadd.f32 %v1973, %v2567
    %v2569 = vpop.f32.mrf.mxu0
    %2570 = vmatprep.mubr.bf16.mxu0 0
    %2571 = vmatmul.mubr.bf16.gmra.mxu0 %v2458
    %v2572 = vpop.f32.mrf.mxu0
    %v2573 = vadd.f32 %v1979, %v2572
    %v2574 = vpop.f32.mrf.mxu0
    %v2575 = vpop.f32.mrf.mxu0
    %v2576 = vadd.f32 %v1983, %v2575
    %v2577 = vpop.f32.mrf.mxu0
    %2578 = vmatprep.mubr.bf16.mxu0 0
    %2579 = vmatmul.mubr.bf16.gmra.mxu0 %v2459
    %v2580 = vpop.f32.mrf.mxu0
    %v2581 = vadd.f32 %v1989, %v2580
    %v2582 = vpop.f32.mrf.mxu0
    %v2583 = vpop.f32.mrf.mxu0
    %v2584 = vadd.f32 %v1993, %v2583
    %v2585 = vpop.f32.mrf.mxu0
    %2586 = vmatprep.mubr.bf16.mxu0 0
    %2587 = vmatmul.mubr.bf16.gmra.mxu0 %v2460
    %v2588 = vpop.f32.mrf.mxu0
    %v2589 = vadd.f32 %v1999, %v2588
    %v2590 = vpop.f32.mrf.mxu0
    %v2591 = vpop.f32.mrf.mxu0
    %v2592 = vadd.f32 %v2003, %v2591
    %v2593 = vpop.f32.mrf.mxu0
    %2594 = vmatprep.mubr.bf16.mxu0 0
    %2595 = vmatmul.mubr.bf16.gmra.mxu0 %v2461
    %v2596 = vpop.f32.mrf.mxu0
    %v2597 = vadd.f32 %v2009, %v2596
    %v2598 = vpop.f32.mrf.mxu0
    %v2599 = vpop.f32.mrf.mxu0
    %v2600 = vadd.f32 %v2013, %v2599
    %v2601 = vpop.f32.mrf.mxu0
    %2602 = vmatprep.mubr.bf16.mxu0 0
    %2603 = vmatmul.mubr.bf16.gmra.mxu0 %v2462
    %v2604 = vpop.f32.mrf.mxu0
    %v2605 = vadd.f32 %v2019, %v2604
    %v2606 = vpop.f32.mrf.mxu0
    %v2607 = vpop.f32.mrf.mxu0
    %v2608 = vadd.f32 %v2023, %v2607
    %v2609 = vpop.f32.mrf.mxu0
    %2610 = vmatprep.mubr.bf16.mxu0 0
    %2611 = vmatmul.mubr.bf16.gmra.mxu0 %v2463
    %v2612 = vpop.f32.mrf.mxu0
    %v2613 = vadd.f32 %v2029, %v2612
    %v2614 = vpop.f32.mrf.mxu0
    %v2615 = vpop.f32.mrf.mxu0
    %v2616 = vadd.f32 %v2033, %v2615
    %v2617 = vpop.f32.mrf.mxu0
    %2618 = vmatprep.mubr.bf16.mxu0 0
    %2619 = vmatmul.mubr.bf16.gmra.mxu0 %v2464
    %v2620 = vpop.f32.mrf.mxu0
    %v2621 = vadd.f32 %v2039, %v2620
    %v2622 = vpop.f32.mrf.mxu0
    %v2623 = vpop.f32.mrf.mxu0
    %v2624 = vadd.f32 %v2043, %v2623
    %v2625 = vpop.f32.mrf.mxu0
    %2626 = vdwg.mxu0
    %s2627 = scalar_lea.vmem %s12, 1
    %v2628 = vld [vmem:[%s2627] sm:$0x1]
    %v2630 = vlaneseq
    %v2631 = vshrl.u32 %v2630, 7
    %v2632 = vsub.s32 0, %v2631
    %v2633 = vrot.slane %v2628, %v2632
    %v2635 = vadd.f32 %v2565, %v2633
    %v2636 = vadd.f32 %v2568, %v2633
    %v2637 = vadd.f32 %v2573, %v2633
    %v2638 = vadd.f32 %v2576, %v2633
    %v2639 = vadd.f32 %v2581, %v2633
    %v2640 = vadd.f32 %v2584, %v2633
    %v2641 = vadd.f32 %v2589, %v2633
    %v2642 = vadd.f32 %v2592, %v2633
    %v2643 = vadd.f32 %v2597, %v2633
    %v2644 = vadd.f32 %v2600, %v2633
    %v2645 = vadd.f32 %v2605, %v2633
    %v2646 = vadd.f32 %v2608, %v2633
    %v2647 = vadd.f32 %v2613, %v2633
    %v2648 = vadd.f32 %v2616, %v2633
    %v2649 = vadd.f32 %v2621, %v2633
    %v2650 = vadd.f32 %v2624, %v2633
    %vm2651 = vcmp.gt.f32.partialorder %v2635, 0.0
    %vm2652 = vcmp.gt.f32.partialorder %v2636, 0.0
    %vm2653 = vcmp.gt.f32.partialorder %v2637, 0.0
    %vm2654 = vcmp.gt.f32.partialorder %v2638, 0.0
    %vm2655 = vcmp.gt.f32.partialorder %v2639, 0.0
    %vm2656 = vcmp.gt.f32.partialorder %v2640, 0.0
    %vm2657 = vcmp.gt.f32.partialorder %v2641, 0.0
    %vm2658 = vcmp.gt.f32.partialorder %v2642, 0.0
    %vm2659 = vcmp.gt.f32.partialorder %v2643, 0.0
    %vm2660 = vcmp.gt.f32.partialorder %v2644, 0.0
    %vm2661 = vcmp.gt.f32.partialorder %v2645, 0.0
    %vm2662 = vcmp.gt.f32.partialorder %v2646, 0.0
    %vm2663 = vcmp.gt.f32.partialorder %v2647, 0.0
    %vm2664 = vcmp.gt.f32.partialorder %v2648, 0.0
    %vm2665 = vcmp.gt.f32.partialorder %v2649, 0.0
    %vm2666 = vcmp.gt.f32.partialorder %v2650, 0.0
    %v2667 = vstv %s1502
    %v2668 = vmul.f32 %v2667, %v2635
    %v2669 = vmul.f32 %v2667, %v2636
    %v2670 = vmul.f32 %v2667, %v2637
    %v2671 = vmul.f32 %v2667, %v2638
    %v2672 = vmul.f32 %v2667, %v2639
    %v2673 = vmul.f32 %v2667, %v2640
    %v2674 = vmul.f32 %v2667, %v2641
    %v2675 = vmul.f32 %v2667, %v2642
    %v2676 = vmul.f32 %v2667, %v2643
    %v2677 = vmul.f32 %v2667, %v2644
    %v2678 = vmul.f32 %v2667, %v2645
    %v2679 = vmul.f32 %v2667, %v2646
    %v2680 = vmul.f32 %v2667, %v2647
    %v2681 = vmul.f32 %v2667, %v2648
    %v2682 = vmul.f32 %v2667, %v2649
    %v2683 = vmul.f32 %v2667, %v2650
    %v2684 = vsel %vm2651, %v2635, %v2668
    %v2685 = vsel %vm2652, %v2636, %v2669
    %v2686 = vsel %vm2653, %v2637, %v2670
    %v2687 = vsel %vm2654, %v2638, %v2671
    %v2688 = vsel %vm2655, %v2639, %v2672
    %v2689 = vsel %vm2656, %v2640, %v2673
    %v2690 = vsel %vm2657, %v2641, %v2674
    %v2691 = vsel %vm2658, %v2642, %v2675
    %v2692 = vsel %vm2659, %v2643, %v2676
    %v2693 = vsel %vm2660, %v2644, %v2677
    %v2694 = vsel %vm2661, %v2645, %v2678
    %v2695 = vsel %vm2662, %v2646, %v2679
    %v2696 = vsel %vm2663, %v2647, %v2680
    %v2697 = vsel %vm2664, %v2648, %v2681
    %v2698 = vsel %vm2665, %v2649, %v2682
    %v2699 = vsel %vm2666, %v2650, %v2683
    %2700 = vst [vmem:[%s13] sm:$0xff] %v2336
    %2701 = vst [vmem:[%s13 + $0x8] sm:$0xff] %v2337
    %2702 = vst [vmem:[%s13 + $0x10] sm:$0xff] %v2338
    %2703 = vst [vmem:[%s13 + $0x18] sm:$0xff] %v2339
    %2704 = vst [vmem:[%s13 + $0x20] sm:$0xff] %v2340
    %2705 = vst [vmem:[%s13 + $0x28] sm:$0xff] %v2341
    %2706 = vst [vmem:[%s13 + $0x30] sm:$0xff] %v2342
    %2707 = vst [vmem:[%s13 + $0x38] sm:$0xff] %v2343
    %2708 = vst [vmem:[%s13 + $0x40] sm:$0xff] %v2344
    %2709 = vst [vmem:[%s13 + $0x48] sm:$0xff] %v2345
    %2710 = vst [vmem:[%s13 + $0x50] sm:$0xff] %v2346
    %2711 = vst [vmem:[%s13 + $0x58] sm:$0xff] %v2347
    %2712 = vst [vmem:[%s13 + $0x60] sm:$0xff] %v2348
    %2713 = vst [vmem:[%s13 + $0x68] sm:$0xff] %v2349
    %2714 = vst [vmem:[%s13 + $0x70] sm:$0xff] %v2350
    %2715 = vst [vmem:[%s13 + $0x78] sm:$0xff] %v2351
    %v2716 = vpack.c.bf16 %v2685, %v2684
    %v2717 = vpack.c.bf16 %v2687, %v2686
    %v2718 = vpack.c.bf16 %v2689, %v2688
    %v2719 = vpack.c.bf16 %v2691, %v2690
    %v2720 = vpack.c.bf16 %v2693, %v2692
    %v2721 = vpack.c.bf16 %v2695, %v2694
    %v2722 = vpack.c.bf16 %v2697, %v2696
    %v2723 = vpack.c.bf16 %v2699, %v2698
    %s2724 = sld [smem:[#allocation2 + $0x100]]
    %s2725 = sld [smem:[#allocation2 + $0x101]]
    %s2726 = scalar_lea.vmem %s6, 128
    %v2727 = vld [vmem:[%s2726] sm:$0xf]
    %v2728 = vld [vmem:[%s2726 + $0x4] sm:$0xf]
    %v2729 = vld [vmem:[%s2726 + $0x8] sm:$0xf]
    %v2730 = vld [vmem:[%s2726 + $0xc] sm:$0xf]
    %v2731 = vld [vmem:[%s2726 + $0x10] sm:$0xf]
    %v2732 = vld [vmem:[%s2726 + $0x14] sm:$0xf]
    %v2733 = vld [vmem:[%s2726 + $0x18] sm:$0xf]
    %v2734 = vld [vmem:[%s2726 + $0x1c] sm:$0xf]
    %v2735 = vld [vmem:[%s2726 + $0x20] sm:$0xf]
    %v2736 = vld [vmem:[%s2726 + $0x24] sm:$0xf]
    %v2737 = vld [vmem:[%s2726 + $0x28] sm:$0xf]
    %v2738 = vld [vmem:[%s2726 + $0x2c] sm:$0xf]
    %v2739 = vld [vmem:[%s2726 + $0x30] sm:$0xf]
    %v2740 = vld [vmem:[%s2726 + $0x34] sm:$0xf]
    %v2741 = vld [vmem:[%s2726 + $0x38] sm:$0xf]
    %v2742 = vld [vmem:[%s2726 + $0x3c] sm:$0xf]
    %v2759 = vunpack.c.l.b16 %v2727
    %v2760 = vunpack.c.l.b16 %v2728
    %v2761 = vunpack.c.l.b16 %v2729
    %v2762 = vunpack.c.l.b16 %v2730
    %v2763 = vunpack.c.l.b16 %v2731
    %v2764 = vunpack.c.l.b16 %v2732
    %v2765 = vunpack.c.l.b16 %v2733
    %v2766 = vunpack.c.l.b16 %v2734
    %v2767 = vunpack.c.l.b16 %v2735
    %v2768 = vunpack.c.l.b16 %v2736
    %v2769 = vunpack.c.l.b16 %v2737
    %v2770 = vunpack.c.l.b16 %v2738
    %v2771 = vunpack.c.l.b16 %v2739
    %v2772 = vunpack.c.l.b16 %v2740
    %v2773 = vunpack.c.l.b16 %v2741
    %v2774 = vunpack.c.l.b16 %v2742
    %v2775 = vpack.c.b16 %v2760, %v2759
    %v2776 = vpack.c.b16 %v2762, %v2761
    %v2777 = vpack.c.b16 %v2764, %v2763
    %v2778 = vpack.c.b16 %v2766, %v2765
    %v2779 = vpack.c.b16 %v2768, %v2767
    %v2780 = vpack.c.b16 %v2770, %v2769
    %v2781 = vpack.c.b16 %v2772, %v2771
    %v2782 = vpack.c.b16 %v2774, %v2773
    %2791 = vmatprep.subr.bf16.mxu0 0
    %2792 = vmatpush1.bf16.msra.mxu0 %v2782
    %2793 = vmatprep.subr.bf16.mxu0 0
    %2794 = vmatpush1.bf16.msra.mxu0 %v2781
    %2795 = vmatprep.subr.bf16.mxu0 0
    %2796 = vmatpush1.bf16.msra.mxu0 %v2780
    %2797 = vmatprep.subr.bf16.mxu0 0
    %2798 = vmatpush1.bf16.msra.mxu0 %v2779
    %2799 = vmatprep.subr.bf16.mxu0 0
    %2800 = vmatpush1.bf16.msra.mxu0 %v2778
    %2801 = vmatprep.subr.bf16.mxu0 0
    %2802 = vmatpush1.bf16.msra.mxu0 %v2777
    %2803 = vmatprep.subr.bf16.mxu0 0
    %2804 = vmatpush1.bf16.msra.mxu0 %v2776
    %2805 = vmatprep.subr.bf16.mxu0 0
    %2806 = vmatpush1.bf16.msra.mxu0 %v2775
    %2807 = vmatprep.subr.bf16.mxu0 0
    %2808 = vmatpush2.bf16.msra.mxu0 0
    %2809 = vmatprep.subr.bf16.mxu0 0
    %2810 = vmatpush2.bf16.msra.mxu0 0
    %2811 = vmatprep.subr.bf16.mxu0 0
    %2812 = vmatpush2.bf16.msra.mxu0 0
    %2813 = vmatprep.subr.bf16.mxu0 0
    %2814 = vmatpush2.bf16.msra.mxu0 0
    %2815 = vmatprep.subr.bf16.mxu0 0
    %2816 = vmatpush2.bf16.msra.mxu0 0
    %2817 = vmatprep.subr.bf16.mxu0 0
    %2818 = vmatpush2.bf16.msra.mxu0 0
    %2819 = vmatprep.subr.bf16.mxu0 0
    %2820 = vmatpush2.bf16.msra.mxu0 0
    %2821 = vmatprep.subr.bf16.mxu0 0
    %2822 = vmatpush2.bf16.msra.mxu0 0
    %2823 = vmatprep.mubr.bf16.mxu0 0
    %2824 = vmatmul.mubr.bf16.gmra.mxu0 %v2352
    %v2825 = vpop.f32.mrf.mxu0
    %v2826 = vadd.f32 0.0, %v2825
    %v2827 = vpop.f32.mrf.mxu0
    %v2828 = vpop.f32.mrf.mxu0
    %v2829 = vadd.f32 0.0, %v2828
    %v2830 = vpop.f32.mrf.mxu0
    %2831 = vmatprep.mubr.bf16.mxu0 0
    %2832 = vmatmul.mubr.bf16.gmra.mxu0 %v2353
    %v2833 = vpop.f32.mrf.mxu0
    %v2834 = vadd.f32 0.0, %v2833
    %v2835 = vpop.f32.mrf.mxu0
    %v2836 = vpop.f32.mrf.mxu0
    %v2837 = vadd.f32 0.0, %v2836
    %v2838 = vpop.f32.mrf.mxu0
    %2839 = vmatprep.mubr.bf16.mxu0 0
    %2840 = vmatmul.mubr.bf16.gmra.mxu0 %v2354
    %v2841 = vpop.f32.mrf.mxu0
    %v2842 = vadd.f32 0.0, %v2841
    %v2843 = vpop.f32.mrf.mxu0
    %v2844 = vpop.f32.mrf.mxu0
    %v2845 = vadd.f32 0.0, %v2844
    %v2846 = vpop.f32.mrf.mxu0
    %2847 = vmatprep.mubr.bf16.mxu0 0
    %2848 = vmatmul.mubr.bf16.gmra.mxu0 %v2355
    %v2849 = vpop.f32.mrf.mxu0
    %v2850 = vadd.f32 0.0, %v2849
    %v2851 = vpop.f32.mrf.mxu0
    %v2852 = vpop.f32.mrf.mxu0
    %v2853 = vadd.f32 0.0, %v2852
    %v2854 = vpop.f32.mrf.mxu0
    %2855 = vmatprep.mubr.bf16.mxu0 0
    %2856 = vmatmul.mubr.bf16.gmra.mxu0 %v2356
    %v2857 = vpop.f32.mrf.mxu0
    %v2858 = vadd.f32 0.0, %v2857
    %v2859 = vpop.f32.mrf.mxu0
    %v2860 = vpop.f32.mrf.mxu0
    %v2861 = vadd.f32 0.0, %v2860
    %v2862 = vpop.f32.mrf.mxu0
    %2863 = vmatprep.mubr.bf16.mxu0 0
    %2864 = vmatmul.mubr.bf16.gmra.mxu0 %v2357
    %v2865 = vpop.f32.mrf.mxu0
    %v2866 = vadd.f32 0.0, %v2865
    %v2867 = vpop.f32.mrf.mxu0
    %v2868 = vpop.f32.mrf.mxu0
    %v2869 = vadd.f32 0.0, %v2868
    %v2870 = vpop.f32.mrf.mxu0
    %2871 = vmatprep.mubr.bf16.mxu0 0
    %2872 = vmatmul.mubr.bf16.gmra.mxu0 %v2358
    %v2873 = vpop.f32.mrf.mxu0
    %v2874 = vadd.f32 0.0, %v2873
    %v2875 = vpop.f32.mrf.mxu0
    %v2876 = vpop.f32.mrf.mxu0
    %v2877 = vadd.f32 0.0, %v2876
    %v2878 = vpop.f32.mrf.mxu0
    %2879 = vmatprep.mubr.bf16.mxu0 0
    %2880 = vmatmul.mubr.bf16.gmra.mxu0 %v2359
    %v2881 = vpop.f32.mrf.mxu0
    %v2882 = vadd.f32 0.0, %v2881
    %v2883 = vpop.f32.mrf.mxu0
    %v2884 = vpop.f32.mrf.mxu0
    %v2885 = vadd.f32 0.0, %v2884
    %v2886 = vpop.f32.mrf.mxu0
    %2887 = vdwg.mxu0
    %v2888 = vpack.c.bf16 %v2829, %v2826
    %v2889 = vpack.c.bf16 %v2837, %v2834
    %v2890 = vpack.c.bf16 %v2845, %v2842
    %v2891 = vpack.c.bf16 %v2853, %v2850
    %v2892 = vpack.c.bf16 %v2861, %v2858
    %v2893 = vpack.c.bf16 %v2869, %v2866
    %v2894 = vpack.c.bf16 %v2877, %v2874
    %v2895 = vpack.c.bf16 %v2885, %v2882
    %s2896 = scalar_lea.vmem %s7, 128
    %v2897 = vld [vmem:[%s2896] sm:$0xf]
    %v2898 = vld [vmem:[%s2896 + $0x4] sm:$0xf]
    %v2899 = vld [vmem:[%s2896 + $0x8] sm:$0xf]
    %v2900 = vld [vmem:[%s2896 + $0xc] sm:$0xf]
    %v2901 = vld [vmem:[%s2896 + $0x10] sm:$0xf]
    %v2902 = vld [vmem:[%s2896 + $0x14] sm:$0xf]
    %v2903 = vld [vmem:[%s2896 + $0x18] sm:$0xf]
    %v2904 = vld [vmem:[%s2896 + $0x1c] sm:$0xf]
    %v2905 = vld [vmem:[%s2896 + $0x20] sm:$0xf]
    %v2906 = vld [vmem:[%s2896 + $0x24] sm:$0xf]
    %v2907 = vld [vmem:[%s2896 + $0x28] sm:$0xf]
    %v2908 = vld [vmem:[%s2896 + $0x2c] sm:$0xf]
    %v2909 = vld [vmem:[%s2896 + $0x30] sm:$0xf]
    %v2910 = vld [vmem:[%s2896 + $0x34] sm:$0xf]
    %v2911 = vld [vmem:[%s2896 + $0x38] sm:$0xf]
    %v2912 = vld [vmem:[%s2896 + $0x3c] sm:$0xf]
    %v2929 = vunpack.c.l.b16 %v2897
    %v2930 = vunpack.c.l.b16 %v2898
    %v2931 = vunpack.c.l.b16 %v2899
    %v2932 = vunpack.c.l.b16 %v2900
    %v2933 = vunpack.c.l.b16 %v2901
    %v2934 = vunpack.c.l.b16 %v2902
    %v2935 = vunpack.c.l.b16 %v2903
    %v2936 = vunpack.c.l.b16 %v2904
    %v2937 = vunpack.c.l.b16 %v2905
    %v2938 = vunpack.c.l.b16 %v2906
    %v2939 = vunpack.c.l.b16 %v2907
    %v2940 = vunpack.c.l.b16 %v2908
    %v2941 = vunpack.c.l.b16 %v2909
    %v2942 = vunpack.c.l.b16 %v2910
    %v2943 = vunpack.c.l.b16 %v2911
    %v2944 = vunpack.c.l.b16 %v2912
    %v2945 = vpack.c.b16 %v2930, %v2929
    %v2946 = vpack.c.b16 %v2932, %v2931
    %v2947 = vpack.c.b16 %v2934, %v2933
    %v2948 = vpack.c.b16 %v2936, %v2935
    %v2949 = vpack.c.b16 %v2938, %v2937
    %v2950 = vpack.c.b16 %v2940, %v2939
    %v2951 = vpack.c.b16 %v2942, %v2941
    %v2952 = vpack.c.b16 %v2944, %v2943
    %2961 = vmatprep.subr.bf16.mxu0 0
    %2962 = vmatpush1.bf16.msra.mxu0 %v2952
    %2963 = vmatprep.subr.bf16.mxu0 0
    %2964 = vmatpush1.bf16.msra.mxu0 %v2951
    %2965 = vmatprep.subr.bf16.mxu0 0
    %2966 = vmatpush1.bf16.msra.mxu0 %v2950
    %2967 = vmatprep.subr.bf16.mxu0 0
    %2968 = vmatpush1.bf16.msra.mxu0 %v2949
    %2969 = vmatprep.subr.bf16.mxu0 0
    %2970 = vmatpush1.bf16.msra.mxu0 %v2948
    %2971 = vmatprep.subr.bf16.mxu0 0
    %2972 = vmatpush1.bf16.msra.mxu0 %v2947
    %2973 = vmatprep.subr.bf16.mxu0 0
    %2974 = vmatpush1.bf16.msra.mxu0 %v2946
    %2975 = vmatprep.subr.bf16.mxu0 0
    %2976 = vmatpush1.bf16.msra.mxu0 %v2945
    %2977 = vmatprep.subr.bf16.mxu0 0
    %2978 = vmatpush2.bf16.msra.mxu0 0
    %2979 = vmatprep.subr.bf16.mxu0 0
    %2980 = vmatpush2.bf16.msra.mxu0 0
    %2981 = vmatprep.subr.bf16.mxu0 0
    %2982 = vmatpush2.bf16.msra.mxu0 0
    %2983 = vmatprep.subr.bf16.mxu0 0
    %2984 = vmatpush2.bf16.msra.mxu0 0
    %2985 = vmatprep.subr.bf16.mxu0 0
    %2986 = vmatpush2.bf16.msra.mxu0 0
    %2987 = vmatprep.subr.bf16.mxu0 0
    %2988 = vmatpush2.bf16.msra.mxu0 0
    %2989 = vmatprep.subr.bf16.mxu0 0
    %2990 = vmatpush2.bf16.msra.mxu0 0
    %2991 = vmatprep.subr.bf16.mxu0 0
    %2992 = vmatpush2.bf16.msra.mxu0 0
    %2993 = vmatprep.mubr.bf16.mxu0 0
    %2994 = vmatmul.mubr.bf16.gmra.mxu0 %v2888
    %v2995 = vpop.f32.mrf.mxu0
    %v2996 = vadd.f32 0.0, %v2995
    %v2997 = vpop.f32.mrf.mxu0
    %v2998 = vpop.f32.mrf.mxu0
    %v2999 = vadd.f32 0.0, %v2998
    %v3000 = vpop.f32.mrf.mxu0
    %3001 = vmatprep.mubr.bf16.mxu0 0
    %3002 = vmatmul.mubr.bf16.gmra.mxu0 %v2889
    %v3003 = vpop.f32.mrf.mxu0
    %v3004 = vadd.f32 0.0, %v3003
    %v3005 = vpop.f32.mrf.mxu0
    %v3006 = vpop.f32.mrf.mxu0
    %v3007 = vadd.f32 0.0, %v3006
    %v3008 = vpop.f32.mrf.mxu0
    %3009 = vmatprep.mubr.bf16.mxu0 0
    %3010 = vmatmul.mubr.bf16.gmra.mxu0 %v2890
    %v3011 = vpop.f32.mrf.mxu0
    %v3012 = vadd.f32 0.0, %v3011
    %v3013 = vpop.f32.mrf.mxu0
    %v3014 = vpop.f32.mrf.mxu0
    %v3015 = vadd.f32 0.0, %v3014
    %v3016 = vpop.f32.mrf.mxu0
    %3017 = vmatprep.mubr.bf16.mxu0 0
    %3018 = vmatmul.mubr.bf16.gmra.mxu0 %v2891
    %v3019 = vpop.f32.mrf.mxu0
    %v3020 = vadd.f32 0.0, %v3019
    %v3021 = vpop.f32.mrf.mxu0
    %v3022 = vpop.f32.mrf.mxu0
    %v3023 = vadd.f32 0.0, %v3022
    %v3024 = vpop.f32.mrf.mxu0
    %3025 = vmatprep.mubr.bf16.mxu0 0
    %3026 = vmatmul.mubr.bf16.gmra.mxu0 %v2892
    %v3027 = vpop.f32.mrf.mxu0
    %v3028 = vadd.f32 0.0, %v3027
    %v3029 = vpop.f32.mrf.mxu0
    %v3030 = vpop.f32.mrf.mxu0
    %v3031 = vadd.f32 0.0, %v3030
    %v3032 = vpop.f32.mrf.mxu0
    %3033 = vmatprep.mubr.bf16.mxu0 0
    %3034 = vmatmul.mubr.bf16.gmra.mxu0 %v2893
    %v3035 = vpop.f32.mrf.mxu0
    %v3036 = vadd.f32 0.0, %v3035
    %v3037 = vpop.f32.mrf.mxu0
    %v3038 = vpop.f32.mrf.mxu0
    %v3039 = vadd.f32 0.0, %v3038
    %v3040 = vpop.f32.mrf.mxu0
    %3041 = vmatprep.mubr.bf16.mxu0 0
    %3042 = vmatmul.mubr.bf16.gmra.mxu0 %v2894
    %v3043 = vpop.f32.mrf.mxu0
    %v3044 = vadd.f32 0.0, %v3043
    %v3045 = vpop.f32.mrf.mxu0
    %v3046 = vpop.f32.mrf.mxu0
    %v3047 = vadd.f32 0.0, %v3046
    %v3048 = vpop.f32.mrf.mxu0
    %3049 = vmatprep.mubr.bf16.mxu0 0
    %3050 = vmatmul.mubr.bf16.gmra.mxu0 %v2895
    %v3051 = vpop.f32.mrf.mxu0
    %v3052 = vadd.f32 0.0, %v3051
    %v3053 = vpop.f32.mrf.mxu0
    %v3054 = vpop.f32.mrf.mxu0
    %v3055 = vadd.f32 0.0, %v3054
    %v3056 = vpop.f32.mrf.mxu0
    %3057 = vdwg.mxu0
    %s3058 = scalar_lea.vmem %s8, 256
    %v3059 = vld [vmem:[%s3058] sm:$0xff]
    %v3060 = vld [vmem:[%s3058 + $0x8] sm:$0xff]
    %v3061 = vld [vmem:[%s3058 + $0x10] sm:$0xff]
    %v3062 = vld [vmem:[%s3058 + $0x18] sm:$0xff]
    %v3063 = vld [vmem:[%s3058 + $0x20] sm:$0xff]
    %v3064 = vld [vmem:[%s3058 + $0x28] sm:$0xff]
    %v3065 = vld [vmem:[%s3058 + $0x30] sm:$0xff]
    %v3066 = vld [vmem:[%s3058 + $0x38] sm:$0xff]
    %v3067 = vld [vmem:[%s3058 + $0x40] sm:$0xff]
    %v3068 = vld [vmem:[%s3058 + $0x48] sm:$0xff]
    %v3069 = vld [vmem:[%s3058 + $0x50] sm:$0xff]
    %v3070 = vld [vmem:[%s3058 + $0x58] sm:$0xff]
    %v3071 = vld [vmem:[%s3058 + $0x60] sm:$0xff]
    %v3072 = vld [vmem:[%s3058 + $0x68] sm:$0xff]
    %v3073 = vld [vmem:[%s3058 + $0x70] sm:$0xff]
    %v3074 = vld [vmem:[%s3058 + $0x78] sm:$0xff]
    %v3091 = vunpack.c.l.b16 %v3059
    %v3092 = vunpack.c.h.b16 %v3059
    %v3093 = vunpack.c.l.b16 %v3060
    %v3094 = vunpack.c.h.b16 %v3060
    %v3095 = vunpack.c.l.b16 %v3061
    %v3096 = vunpack.c.h.b16 %v3061
    %v3097 = vunpack.c.l.b16 %v3062
    %v3098 = vunpack.c.h.b16 %v3062
    %v3099 = vunpack.c.l.b16 %v3063
    %v3100 = vunpack.c.h.b16 %v3063
    %v3101 = vunpack.c.l.b16 %v3064
    %v3102 = vunpack.c.h.b16 %v3064
    %v3103 = vunpack.c.l.b16 %v3065
    %v3104 = vunpack.c.h.b16 %v3065
    %v3105 = vunpack.c.l.b16 %v3066
    %v3106 = vunpack.c.h.b16 %v3066
    %v3107 = vunpack.c.l.b16 %v3067
    %v3108 = vunpack.c.h.b16 %v3067
    %v3109 = vunpack.c.l.b16 %v3068
    %v3110 = vunpack.c.h.b16 %v3068
    %v3111 = vunpack.c.l.b16 %v3069
    %v3112 = vunpack.c.h.b16 %v3069
    %v3113 = vunpack.c.l.b16 %v3070
    %v3114 = vunpack.c.h.b16 %v3070
    %v3115 = vunpack.c.l.b16 %v3071
    %v3116 = vunpack.c.h.b16 %v3071
    %v3117 = vunpack.c.l.b16 %v3072
    %v3118 = vunpack.c.h.b16 %v3072
    %v3119 = vunpack.c.l.b16 %v3073
    %v3120 = vunpack.c.h.b16 %v3073
    %v3121 = vunpack.c.l.b16 %v3074
    %v3122 = vunpack.c.h.b16 %v3074
    %v3123 = vpack.c.b16 %v3093, %v3091
    %v3124 = vpack.c.b16 %v3094, %v3092
    %v3125 = vpack.c.b16 %v3097, %v3095
    %v3126 = vpack.c.b16 %v3098, %v3096
    %v3127 = vpack.c.b16 %v3101, %v3099
    %v3128 = vpack.c.b16 %v3102, %v3100
    %v3129 = vpack.c.b16 %v3105, %v3103
    %v3130 = vpack.c.b16 %v3106, %v3104
    %v3131 = vpack.c.b16 %v3109, %v3107
    %v3132 = vpack.c.b16 %v3110, %v3108
    %v3133 = vpack.c.b16 %v3113, %v3111
    %v3134 = vpack.c.b16 %v3114, %v3112
    %v3135 = vpack.c.b16 %v3117, %v3115
    %v3136 = vpack.c.b16 %v3118, %v3116
    %v3137 = vpack.c.b16 %v3121, %v3119
    %v3138 = vpack.c.b16 %v3122, %v3120
    %3155 = vmatprep.subr.bf16.mxu0 %v3138
    %3156 = vmatpush1.bf16.msra.mxu0 %v3137
    %3157 = vmatprep.subr.bf16.mxu0 %v3136
    %3158 = vmatpush1.bf16.msra.mxu0 %v3135
    %3159 = vmatprep.subr.bf16.mxu0 %v3134
    %3160 = vmatpush1.bf16.msra.mxu0 %v3133
    %3161 = vmatprep.subr.bf16.mxu0 %v3132
    %3162 = vmatpush1.bf16.msra.mxu0 %v3131
    %3163 = vmatprep.subr.bf16.mxu0 %v3130
    %3164 = vmatpush1.bf16.msra.mxu0 %v3129
    %3165 = vmatprep.subr.bf16.mxu0 %v3128
    %3166 = vmatpush1.bf16.msra.mxu0 %v3127
    %3167 = vmatprep.subr.bf16.mxu0 %v3126
    %3168 = vmatpush1.bf16.msra.mxu0 %v3125
    %3169 = vmatprep.subr.bf16.mxu0 %v3124
    %3170 = vmatpush1.bf16.msra.mxu0 %v3123
    %3171 = vmatprep.subr.bf16.mxu0 0
    %3172 = vmatpush2.bf16.msra.mxu0 0
    %3173 = vmatprep.subr.bf16.mxu0 0
    %3174 = vmatpush2.bf16.msra.mxu0 0
    %3175 = vmatprep.subr.bf16.mxu0 0
    %3176 = vmatpush2.bf16.msra.mxu0 0
    %3177 = vmatprep.subr.bf16.mxu0 0
    %3178 = vmatpush2.bf16.msra.mxu0 0
    %3179 = vmatprep.subr.bf16.mxu0 0
    %3180 = vmatpush2.bf16.msra.mxu0 0
    %3181 = vmatprep.subr.bf16.mxu0 0
    %3182 = vmatpush2.bf16.msra.mxu0 0
    %3183 = vmatprep.subr.bf16.mxu0 0
    %3184 = vmatpush2.bf16.msra.mxu0 0
    %3185 = vmatprep.subr.bf16.mxu0 0
    %3186 = vmatpush2.bf16.msra.mxu0 0
    %3187 = vmatprep.mubr.bf16.mxu0 0
    %3188 = vmatmul.mubr.bf16.gmra.mxu0 %v2716
    %v3189 = vpop.f32.mrf.mxu0
    %v3190 = vadd.f32 0.0, %v3189
    %v3191 = vpop.f32.mrf.mxu0
    %v3192 = vadd.f32 0.0, %v3191
    %v3193 = vpop.f32.mrf.mxu0
    %v3194 = vadd.f32 0.0, %v3193
    %v3195 = vpop.f32.mrf.mxu0
    %v3196 = vadd.f32 0.0, %v3195
    %3197 = vmatprep.mubr.bf16.mxu0 0
    %3198 = vmatmul.mubr.bf16.gmra.mxu0 %v2717
    %v3199 = vpop.f32.mrf.mxu0
    %v3200 = vadd.f32 0.0, %v3199
    %v3201 = vpop.f32.mrf.mxu0
    %v3202 = vadd.f32 0.0, %v3201
    %v3203 = vpop.f32.mrf.mxu0
    %v3204 = vadd.f32 0.0, %v3203
    %v3205 = vpop.f32.mrf.mxu0
    %v3206 = vadd.f32 0.0, %v3205
    %3207 = vmatprep.mubr.bf16.mxu0 0
    %3208 = vmatmul.mubr.bf16.gmra.mxu0 %v2718
    %v3209 = vpop.f32.mrf.mxu0
    %v3210 = vadd.f32 0.0, %v3209
    %v3211 = vpop.f32.mrf.mxu0
    %v3212 = vadd.f32 0.0, %v3211
    %v3213 = vpop.f32.mrf.mxu0
    %v3214 = vadd.f32 0.0, %v3213
    %v3215 = vpop.f32.mrf.mxu0
    %v3216 = vadd.f32 0.0, %v3215
    %3217 = vmatprep.mubr.bf16.mxu0 0
    %3218 = vmatmul.mubr.bf16.gmra.mxu0 %v2719
    %v3219 = vpop.f32.mrf.mxu0
    %v3220 = vadd.f32 0.0, %v3219
    %v3221 = vpop.f32.mrf.mxu0
    %v3222 = vadd.f32 0.0, %v3221
    %v3223 = vpop.f32.mrf.mxu0
    %v3224 = vadd.f32 0.0, %v3223
    %v3225 = vpop.f32.mrf.mxu0
    %v3226 = vadd.f32 0.0, %v3225
    %3227 = vmatprep.mubr.bf16.mxu0 0
    %3228 = vmatmul.mubr.bf16.gmra.mxu0 %v2720
    %v3229 = vpop.f32.mrf.mxu0
    %v3230 = vadd.f32 0.0, %v3229
    %v3231 = vpop.f32.mrf.mxu0
    %v3232 = vadd.f32 0.0, %v3231
    %v3233 = vpop.f32.mrf.mxu0
    %v3234 = vadd.f32 0.0, %v3233
    %v3235 = vpop.f32.mrf.mxu0
    %v3236 = vadd.f32 0.0, %v3235
    %3237 = vmatprep.mubr.bf16.mxu0 0
    %3238 = vmatmul.mubr.bf16.gmra.mxu0 %v2721
    %v3239 = vpop.f32.mrf.mxu0
    %v3240 = vadd.f32 0.0, %v3239
    %v3241 = vpop.f32.mrf.mxu0
    %v3242 = vadd.f32 0.0, %v3241
    %v3243 = vpop.f32.mrf.mxu0
    %v3244 = vadd.f32 0.0, %v3243
    %v3245 = vpop.f32.mrf.mxu0
    %v3246 = vadd.f32 0.0, %v3245
    %3247 = vmatprep.mubr.bf16.mxu0 0
    %3248 = vmatmul.mubr.bf16.gmra.mxu0 %v2722
    %v3249 = vpop.f32.mrf.mxu0
    %v3250 = vadd.f32 0.0, %v3249
    %v3251 = vpop.f32.mrf.mxu0
    %v3252 = vadd.f32 0.0, %v3251
    %v3253 = vpop.f32.mrf.mxu0
    %v3254 = vadd.f32 0.0, %v3253
    %v3255 = vpop.f32.mrf.mxu0
    %v3256 = vadd.f32 0.0, %v3255
    %3257 = vmatprep.mubr.bf16.mxu0 0
    %3258 = vmatmul.mubr.bf16.gmra.mxu0 %v2723
    %v3259 = vpop.f32.mrf.mxu0
    %v3260 = vadd.f32 0.0, %v3259
    %v3261 = vpop.f32.mrf.mxu0
    %v3262 = vadd.f32 0.0, %v3261
    %v3263 = vpop.f32.mrf.mxu0
    %v3264 = vadd.f32 0.0, %v3263
    %v3265 = vpop.f32.mrf.mxu0
    %v3266 = vadd.f32 0.0, %v3265
    %3267 = vdwg.mxu0
    %s3268 = scalar_lea.vmem %s10, 2
    %v3269 = vld [vmem:[%s3268] sm:$0x1]
    %v3271 = vlaneseq
    %v3272 = vshrl.u32 %v3271, 7
    %v3273 = vsub.s32 0, %v3272
    %v3274 = vrot.slane %v3269, %v3273
    %v3276 = vadd.f32 %v3190, %v3274
    %v3277 = vadd.f32 %v3194, %v3274
    %v3278 = vadd.f32 %v3200, %v3274
    %v3279 = vadd.f32 %v3204, %v3274
    %v3280 = vadd.f32 %v3210, %v3274
    %v3281 = vadd.f32 %v3214, %v3274
    %v3282 = vadd.f32 %v3220, %v3274
    %v3283 = vadd.f32 %v3224, %v3274
    %v3284 = vadd.f32 %v3230, %v3274
    %v3285 = vadd.f32 %v3234, %v3274
    %v3286 = vadd.f32 %v3240, %v3274
    %v3287 = vadd.f32 %v3244, %v3274
    %v3288 = vadd.f32 %v3250, %v3274
    %v3289 = vadd.f32 %v3254, %v3274
    %v3290 = vadd.f32 %v3260, %v3274
    %v3291 = vadd.f32 %v3264, %v3274
    %v3292 = vpack.c.bf16 %v2999, %v2996
    %v3293 = vpack.c.bf16 %v3007, %v3004
    %v3294 = vpack.c.bf16 %v3015, %v3012
    %v3295 = vpack.c.bf16 %v3023, %v3020
    %v3296 = vpack.c.bf16 %v3031, %v3028
    %v3297 = vpack.c.bf16 %v3039, %v3036
    %v3298 = vpack.c.bf16 %v3047, %v3044
    %v3299 = vpack.c.bf16 %v3055, %v3052
    %v3300 = vpack.c.bf16 %v3277, %v3276
    %v3301 = vpack.c.bf16 %v3279, %v3278
    %v3302 = vpack.c.bf16 %v3281, %v3280
    %v3303 = vpack.c.bf16 %v3283, %v3282
    %v3304 = vpack.c.bf16 %v3285, %v3284
    %v3305 = vpack.c.bf16 %v3287, %v3286
    %v3306 = vpack.c.bf16 %v3289, %v3288
    %v3307 = vpack.c.bf16 %v3291, %v3290
    %3308 = vmatprep.subr.bf16.mxu0 0
    %3309 = vmatpush1.bf16.msra.mxu0 %v3307
    %3310 = vmatprep.subr.bf16.mxu0 0
    %3311 = vmatpush1.bf16.msra.mxu0 %v3306
    %3312 = vmatprep.subr.bf16.mxu0 0
    %3313 = vmatpush1.bf16.msra.mxu0 %v3305
    %3314 = vmatprep.subr.bf16.mxu0 0
    %3315 = vmatpush1.bf16.msra.mxu0 %v3304
    %3316 = vmatprep.subr.bf16.mxu0 0
    %3317 = vmatpush1.bf16.msra.mxu0 %v3303
    %3318 = vmatprep.subr.bf16.mxu0 0
    %3319 = vmatpush1.bf16.msra.mxu0 %v3302
    %3320 = vmatprep.subr.bf16.mxu0 0
    %3321 = vmatpush1.bf16.msra.mxu0 %v3301
    %3322 = vmatprep.subr.bf16.mxu0 0
    %3323 = vmatpush1.bf16.msra.mxu0 %v3300
    %3324 = vmatprep.subr.bf16.mxu0 0
    %3325 = vmatpush2.bf16.msra.mxu0 0
    %3326 = vmatprep.subr.bf16.mxu0 0
    %3327 = vmatpush2.bf16.msra.mxu0 0
    %3328 = vmatprep.subr.bf16.mxu0 0
    %3329 = vmatpush2.bf16.msra.mxu0 0
    %3330 = vmatprep.subr.bf16.mxu0 0
    %3331 = vmatpush2.bf16.msra.mxu0 0
    %3332 = vmatprep.subr.bf16.mxu0 0
    %3333 = vmatpush2.bf16.msra.mxu0 0
    %3334 = vmatprep.subr.bf16.mxu0 0
    %3335 = vmatpush2.bf16.msra.mxu0 0
    %3336 = vmatprep.subr.bf16.mxu0 0
    %3337 = vmatpush2.bf16.msra.mxu0 0
    %3338 = vmatprep.subr.bf16.mxu0 0
    %3339 = vmatpush2.bf16.msra.mxu0 0
    %3340 = vmatprep.mubr.bf16.mxu0 0
    %3341 = vmatmul.mubr.bf16.gmra.mxu0 %v769
    %v3342 = vpop.f32.mrf.mxu0
    %v3343 = vadd.f32 0.0, %v3342
    %v3344 = vpop.f32.mrf.mxu0
    %v3345 = vpop.f32.mrf.mxu0
    %v3346 = vadd.f32 0.0, %v3345
    %v3347 = vpop.f32.mrf.mxu0
    %3348 = vmatprep.mubr.bf16.mxu0 0
    %3349 = vmatmul.mubr.bf16.gmra.mxu0 %v770
    %v3350 = vpop.f32.mrf.mxu0
    %v3351 = vadd.f32 0.0, %v3350
    %v3352 = vpop.f32.mrf.mxu0
    %v3353 = vpop.f32.mrf.mxu0
    %v3354 = vadd.f32 0.0, %v3353
    %v3355 = vpop.f32.mrf.mxu0
    %3356 = vmatprep.mubr.bf16.mxu0 0
    %3357 = vmatmul.mubr.bf16.gmra.mxu0 %v771
    %v3358 = vpop.f32.mrf.mxu0
    %v3359 = vadd.f32 0.0, %v3358
    %v3360 = vpop.f32.mrf.mxu0
    %v3361 = vpop.f32.mrf.mxu0
    %v3362 = vadd.f32 0.0, %v3361
    %v3363 = vpop.f32.mrf.mxu0
    %3364 = vmatprep.mubr.bf16.mxu0 0
    %3365 = vmatmul.mubr.bf16.gmra.mxu0 %v772
    %v3366 = vpop.f32.mrf.mxu0
    %v3367 = vadd.f32 0.0, %v3366
    %v3368 = vpop.f32.mrf.mxu0
    %v3369 = vpop.f32.mrf.mxu0
    %v3370 = vadd.f32 0.0, %v3369
    %v3371 = vpop.f32.mrf.mxu0
    %3372 = vmatprep.mubr.bf16.mxu0 0
    %3373 = vmatmul.mubr.bf16.gmra.mxu0 %v773
    %v3374 = vpop.f32.mrf.mxu0
    %v3375 = vadd.f32 0.0, %v3374
    %v3376 = vpop.f32.mrf.mxu0
    %v3377 = vpop.f32.mrf.mxu0
    %v3378 = vadd.f32 0.0, %v3377
    %v3379 = vpop.f32.mrf.mxu0
    %3380 = vmatprep.mubr.bf16.mxu0 0
    %3381 = vmatmul.mubr.bf16.gmra.mxu0 %v774
    %v3382 = vpop.f32.mrf.mxu0
    %v3383 = vadd.f32 0.0, %v3382
    %v3384 = vpop.f32.mrf.mxu0
    %v3385 = vpop.f32.mrf.mxu0
    %v3386 = vadd.f32 0.0, %v3385
    %v3387 = vpop.f32.mrf.mxu0
    %3388 = vmatprep.mubr.bf16.mxu0 0
    %3389 = vmatmul.mubr.bf16.gmra.mxu0 %v775
    %v3390 = vpop.f32.mrf.mxu0
    %v3391 = vadd.f32 0.0, %v3390
    %v3392 = vpop.f32.mrf.mxu0
    %v3393 = vpop.f32.mrf.mxu0
    %v3394 = vadd.f32 0.0, %v3393
    %v3395 = vpop.f32.mrf.mxu0
    %3396 = vmatprep.mubr.bf16.mxu0 0
    %3397 = vmatmul.mubr.bf16.gmra.mxu0 %v776
    %v3398 = vpop.f32.mrf.mxu0
    %v3399 = vadd.f32 0.0, %v3398
    %v3400 = vpop.f32.mrf.mxu0
    %v3401 = vpop.f32.mrf.mxu0
    %v3402 = vadd.f32 0.0, %v3401
    %v3403 = vpop.f32.mrf.mxu0
    %3404 = vdwg.mxu0
    %3405 = vmatprep.subr.bf16.mxu0 0
    %3406 = vmatpush1.bf16.msra.mxu0 %v3299
    %3407 = vmatprep.subr.bf16.mxu0 0
    %3408 = vmatpush1.bf16.msra.mxu0 %v3298
    %3409 = vmatprep.subr.bf16.mxu0 0
    %3410 = vmatpush1.bf16.msra.mxu0 %v3297
    %3411 = vmatprep.subr.bf16.mxu0 0
    %3412 = vmatpush1.bf16.msra.mxu0 %v3296
    %3413 = vmatprep.subr.bf16.mxu0 0
    %3414 = vmatpush1.bf16.msra.mxu0 %v3295
    %3415 = vmatprep.subr.bf16.mxu0 0
    %3416 = vmatpush1.bf16.msra.mxu0 %v3294
    %3417 = vmatprep.subr.bf16.mxu0 0
    %3418 = vmatpush1.bf16.msra.mxu0 %v3293
    %3419 = vmatprep.subr.bf16.mxu0 0
    %3420 = vmatpush1.bf16.msra.mxu0 %v3292
    %3421 = vmatprep.subr.bf16.mxu0 0
    %3422 = vmatpush2.bf16.msra.mxu0 0
    %3423 = vmatprep.subr.bf16.mxu0 0
    %3424 = vmatpush2.bf16.msra.mxu0 0
    %3425 = vmatprep.subr.bf16.mxu0 0
    %3426 = vmatpush2.bf16.msra.mxu0 0
    %3427 = vmatprep.subr.bf16.mxu0 0
    %3428 = vmatpush2.bf16.msra.mxu0 0
    %3429 = vmatprep.subr.bf16.mxu0 0
    %3430 = vmatpush2.bf16.msra.mxu0 0
    %3431 = vmatprep.subr.bf16.mxu0 0
    %3432 = vmatpush2.bf16.msra.mxu0 0
    %3433 = vmatprep.subr.bf16.mxu0 0
    %3434 = vmatpush2.bf16.msra.mxu0 0
    %3435 = vmatprep.subr.bf16.mxu0 0
    %3436 = vmatpush2.bf16.msra.mxu0 0
    %3437 = vmatprep.mubr.bf16.mxu0 0
    %3438 = vmatmul.mubr.bf16.gmra.mxu0 %v914
    %v3439 = vpop.f32.mrf.mxu0
    %v3440 = vadd.f32 %v3343, %v3439
    %v3441 = vpop.f32.mrf.mxu0
    %v3442 = vpop.f32.mrf.mxu0
    %v3443 = vadd.f32 %v3346, %v3442
    %v3444 = vpop.f32.mrf.mxu0
    %3445 = vmatprep.mubr.bf16.mxu0 0
    %3446 = vmatmul.mubr.bf16.gmra.mxu0 %v915
    %v3447 = vpop.f32.mrf.mxu0
    %v3448 = vadd.f32 %v3351, %v3447
    %v3449 = vpop.f32.mrf.mxu0
    %v3450 = vpop.f32.mrf.mxu0
    %v3451 = vadd.f32 %v3354, %v3450
    %v3452 = vpop.f32.mrf.mxu0
    %3453 = vmatprep.mubr.bf16.mxu0 0
    %3454 = vmatmul.mubr.bf16.gmra.mxu0 %v916
    %v3455 = vpop.f32.mrf.mxu0
    %v3456 = vadd.f32 %v3359, %v3455
    %v3457 = vpop.f32.mrf.mxu0
    %v3458 = vpop.f32.mrf.mxu0
    %v3459 = vadd.f32 %v3362, %v3458
    %v3460 = vpop.f32.mrf.mxu0
    %3461 = vmatprep.mubr.bf16.mxu0 0
    %3462 = vmatmul.mubr.bf16.gmra.mxu0 %v917
    %v3463 = vpop.f32.mrf.mxu0
    %v3464 = vadd.f32 %v3367, %v3463
    %v3465 = vpop.f32.mrf.mxu0
    %v3466 = vpop.f32.mrf.mxu0
    %v3467 = vadd.f32 %v3370, %v3466
    %v3468 = vpop.f32.mrf.mxu0
    %3469 = vmatprep.mubr.bf16.mxu0 0
    %3470 = vmatmul.mubr.bf16.gmra.mxu0 %v918
    %v3471 = vpop.f32.mrf.mxu0
    %v3472 = vadd.f32 %v3375, %v3471
    %v3473 = vpop.f32.mrf.mxu0
    %v3474 = vpop.f32.mrf.mxu0
    %v3475 = vadd.f32 %v3378, %v3474
    %v3476 = vpop.f32.mrf.mxu0
    %3477 = vmatprep.mubr.bf16.mxu0 0
    %3478 = vmatmul.mubr.bf16.gmra.mxu0 %v919
    %v3479 = vpop.f32.mrf.mxu0
    %v3480 = vadd.f32 %v3383, %v3479
    %v3481 = vpop.f32.mrf.mxu0
    %v3482 = vpop.f32.mrf.mxu0
    %v3483 = vadd.f32 %v3386, %v3482
    %v3484 = vpop.f32.mrf.mxu0
    %3485 = vmatprep.mubr.bf16.mxu0 0
    %3486 = vmatmul.mubr.bf16.gmra.mxu0 %v920
    %v3487 = vpop.f32.mrf.mxu0
    %v3488 = vadd.f32 %v3391, %v3487
    %v3489 = vpop.f32.mrf.mxu0
    %v3490 = vpop.f32.mrf.mxu0
    %v3491 = vadd.f32 %v3394, %v3490
    %v3492 = vpop.f32.mrf.mxu0
    %3493 = vmatprep.mubr.bf16.mxu0 0
    %3494 = vmatmul.mubr.bf16.gmra.mxu0 %v921
    %v3495 = vpop.f32.mrf.mxu0
    %v3496 = vadd.f32 %v3399, %v3495
    %v3497 = vpop.f32.mrf.mxu0
    %v3498 = vpop.f32.mrf.mxu0
    %v3499 = vadd.f32 %v3402, %v3498
    %v3500 = vpop.f32.mrf.mxu0
    %3501 = vdwg.mxu0
    %s3502 = scalar_lea.vmem %s11, 2
    %v3503 = vld [vmem:[%s3502] sm:$0x1]
    %v3505 = vlaneseq
    %v3506 = vshrl.u32 %v3505, 7
    %v3507 = vsub.s32 0, %v3506
    %v3508 = vrot.slane %v3503, %v3507
    %v3510 = vadd.f32 %v3440, %v3508
    %v3511 = vadd.f32 %v3443, %v3508
    %v3512 = vadd.f32 %v3448, %v3508
    %v3513 = vadd.f32 %v3451, %v3508
    %v3514 = vadd.f32 %v3456, %v3508
    %v3515 = vadd.f32 %v3459, %v3508
    %v3516 = vadd.f32 %v3464, %v3508
    %v3517 = vadd.f32 %v3467, %v3508
    %v3518 = vadd.f32 %v3472, %v3508
    %v3519 = vadd.f32 %v3475, %v3508
    %v3520 = vadd.f32 %v3480, %v3508
    %v3521 = vadd.f32 %v3483, %v3508
    %v3522 = vadd.f32 %v3488, %v3508
    %v3523 = vadd.f32 %v3491, %v3508
    %v3524 = vadd.f32 %v3496, %v3508
    %v3525 = vadd.f32 %v3499, %v3508
    %vm3526 = vcmp.gt.f32.partialorder %v3510, 0.0
    %vm3527 = vcmp.gt.f32.partialorder %v3511, 0.0
    %vm3528 = vcmp.gt.f32.partialorder %v3512, 0.0
    %vm3529 = vcmp.gt.f32.partialorder %v3513, 0.0
    %vm3530 = vcmp.gt.f32.partialorder %v3514, 0.0
    %vm3531 = vcmp.gt.f32.partialorder %v3515, 0.0
    %vm3532 = vcmp.gt.f32.partialorder %v3516, 0.0
    %vm3533 = vcmp.gt.f32.partialorder %v3517, 0.0
    %vm3534 = vcmp.gt.f32.partialorder %v3518, 0.0
    %vm3535 = vcmp.gt.f32.partialorder %v3519, 0.0
    %vm3536 = vcmp.gt.f32.partialorder %v3520, 0.0
    %vm3537 = vcmp.gt.f32.partialorder %v3521, 0.0
    %vm3538 = vcmp.gt.f32.partialorder %v3522, 0.0
    %vm3539 = vcmp.gt.f32.partialorder %v3523, 0.0
    %vm3540 = vcmp.gt.f32.partialorder %v3524, 0.0
    %vm3541 = vcmp.gt.f32.partialorder %v3525, 0.0
    %v3542 = vstv %s2724
    %v3543 = vmul.f32 %v3542, %v3510
    %v3544 = vmul.f32 %v3542, %v3511
    %v3545 = vmul.f32 %v3542, %v3512
    %v3546 = vmul.f32 %v3542, %v3513
    %v3547 = vmul.f32 %v3542, %v3514
    %v3548 = vmul.f32 %v3542, %v3515
    %v3549 = vmul.f32 %v3542, %v3516
    %v3550 = vmul.f32 %v3542, %v3517
    %v3551 = vmul.f32 %v3542, %v3518
    %v3552 = vmul.f32 %v3542, %v3519
    %v3553 = vmul.f32 %v3542, %v3520
    %v3554 = vmul.f32 %v3542, %v3521
    %v3555 = vmul.f32 %v3542, %v3522
    %v3556 = vmul.f32 %v3542, %v3523
    %v3557 = vmul.f32 %v3542, %v3524
    %v3558 = vmul.f32 %v3542, %v3525
    %v3559 = vsel %vm3526, %v3510, %v3543
    %v3560 = vsel %vm3527, %v3511, %v3544
    %v3561 = vsel %vm3528, %v3512, %v3545
    %v3562 = vsel %vm3529, %v3513, %v3546
    %v3563 = vsel %vm3530, %v3514, %v3547
    %v3564 = vsel %vm3531, %v3515, %v3548
    %v3565 = vsel %vm3532, %v3516, %v3549
    %v3566 = vsel %vm3533, %v3517, %v3550
    %v3567 = vsel %vm3534, %v3518, %v3551
    %v3568 = vsel %vm3535, %v3519, %v3552
    %v3569 = vsel %vm3536, %v3520, %v3553
    %v3570 = vsel %vm3537, %v3521, %v3554
    %v3571 = vsel %vm3538, %v3522, %v3555
    %v3572 = vsel %vm3539, %v3523, %v3556
    %v3573 = vsel %vm3540, %v3524, %v3557
    %v3574 = vsel %vm3541, %v3525, %v3558
    %v3575 = vpack.c.bf16 %v3560, %v3559
    %v3576 = vpack.c.bf16 %v3562, %v3561
    %v3577 = vpack.c.bf16 %v3564, %v3563
    %v3578 = vpack.c.bf16 %v3566, %v3565
    %v3579 = vpack.c.bf16 %v3568, %v3567
    %v3580 = vpack.c.bf16 %v3570, %v3569
    %v3581 = vpack.c.bf16 %v3572, %v3571
    %v3582 = vpack.c.bf16 %v3574, %v3573
    %3583 = vmatprep.subr.bf16.mxu0 0
    %3584 = vmatpush1.bf16.msra.mxu0 %v3582
    %3585 = vmatprep.subr.bf16.mxu0 0
    %3586 = vmatpush1.bf16.msra.mxu0 %v3581
    %3587 = vmatprep.subr.bf16.mxu0 0
    %3588 = vmatpush1.bf16.msra.mxu0 %v3580
    %3589 = vmatprep.subr.bf16.mxu0 0
    %3590 = vmatpush1.bf16.msra.mxu0 %v3579
    %3591 = vmatprep.subr.bf16.mxu0 0
    %3592 = vmatpush1.bf16.msra.mxu0 %v3578
    %3593 = vmatprep.subr.bf16.mxu0 0
    %3594 = vmatpush1.bf16.msra.mxu0 %v3577
    %3595 = vmatprep.subr.bf16.mxu0 0
    %3596 = vmatpush1.bf16.msra.mxu0 %v3576
    %3597 = vmatprep.subr.bf16.mxu0 0
    %3598 = vmatpush1.bf16.msra.mxu0 %v3575
    %3599 = vmatprep.subr.bf16.mxu0 0
    %3600 = vmatpush2.bf16.msra.mxu0 0
    %3601 = vmatprep.subr.bf16.mxu0 0
    %3602 = vmatpush2.bf16.msra.mxu0 0
    %3603 = vmatprep.subr.bf16.mxu0 0
    %3604 = vmatpush2.bf16.msra.mxu0 0
    %3605 = vmatprep.subr.bf16.mxu0 0
    %3606 = vmatpush2.bf16.msra.mxu0 0
    %3607 = vmatprep.subr.bf16.mxu0 0
    %3608 = vmatpush2.bf16.msra.mxu0 0
    %3609 = vmatprep.subr.bf16.mxu0 0
    %3610 = vmatpush2.bf16.msra.mxu0 0
    %3611 = vmatprep.subr.bf16.mxu0 0
    %3612 = vmatpush2.bf16.msra.mxu0 0
    %3613 = vmatprep.subr.bf16.mxu0 0
    %3614 = vmatpush2.bf16.msra.mxu0 0
    %3615 = vmatprep.mubr.bf16.mxu0 0
    %3616 = vmatmul.mubr.bf16.gmra.mxu0 %v1139
    %v3617 = vpop.f32.mrf.mxu0
    %v3618 = vadd.f32 0.0, %v3617
    %v3619 = vpop.f32.mrf.mxu0
    %v3620 = vpop.f32.mrf.mxu0
    %v3621 = vadd.f32 0.0, %v3620
    %v3622 = vpop.f32.mrf.mxu0
    %3623 = vmatprep.mubr.bf16.mxu0 0
    %3624 = vmatmul.mubr.bf16.gmra.mxu0 %v1140
    %v3625 = vpop.f32.mrf.mxu0
    %v3626 = vadd.f32 0.0, %v3625
    %v3627 = vpop.f32.mrf.mxu0
    %v3628 = vpop.f32.mrf.mxu0
    %v3629 = vadd.f32 0.0, %v3628
    %v3630 = vpop.f32.mrf.mxu0
    %3631 = vmatprep.mubr.bf16.mxu0 0
    %3632 = vmatmul.mubr.bf16.gmra.mxu0 %v1141
    %v3633 = vpop.f32.mrf.mxu0
    %v3634 = vadd.f32 0.0, %v3633
    %v3635 = vpop.f32.mrf.mxu0
    %v3636 = vpop.f32.mrf.mxu0
    %v3637 = vadd.f32 0.0, %v3636
    %v3638 = vpop.f32.mrf.mxu0
    %3639 = vmatprep.mubr.bf16.mxu0 0
    %3640 = vmatmul.mubr.bf16.gmra.mxu0 %v1142
    %v3641 = vpop.f32.mrf.mxu0
    %v3642 = vadd.f32 0.0, %v3641
    %v3643 = vpop.f32.mrf.mxu0
    %v3644 = vpop.f32.mrf.mxu0
    %v3645 = vadd.f32 0.0, %v3644
    %v3646 = vpop.f32.mrf.mxu0
    %3647 = vmatprep.mubr.bf16.mxu0 0
    %3648 = vmatmul.mubr.bf16.gmra.mxu0 %v1143
    %v3649 = vpop.f32.mrf.mxu0
    %v3650 = vadd.f32 0.0, %v3649
    %v3651 = vpop.f32.mrf.mxu0
    %v3652 = vpop.f32.mrf.mxu0
    %v3653 = vadd.f32 0.0, %v3652
    %v3654 = vpop.f32.mrf.mxu0
    %3655 = vmatprep.mubr.bf16.mxu0 0
    %3656 = vmatmul.mubr.bf16.gmra.mxu0 %v1144
    %v3657 = vpop.f32.mrf.mxu0
    %v3658 = vadd.f32 0.0, %v3657
    %v3659 = vpop.f32.mrf.mxu0
    %v3660 = vpop.f32.mrf.mxu0
    %v3661 = vadd.f32 0.0, %v3660
    %v3662 = vpop.f32.mrf.mxu0
    %3663 = vmatprep.mubr.bf16.mxu0 0
    %3664 = vmatmul.mubr.bf16.gmra.mxu0 %v1145
    %v3665 = vpop.f32.mrf.mxu0
    %v3666 = vadd.f32 0.0, %v3665
    %v3667 = vpop.f32.mrf.mxu0
    %v3668 = vpop.f32.mrf.mxu0
    %v3669 = vadd.f32 0.0, %v3668
    %v3670 = vpop.f32.mrf.mxu0
    %3671 = vmatprep.mubr.bf16.mxu0 0
    %3672 = vmatmul.mubr.bf16.gmra.mxu0 %v1146
    %v3673 = vpop.f32.mrf.mxu0
    %v3674 = vadd.f32 0.0, %v3673
    %v3675 = vpop.f32.mrf.mxu0
    %v3676 = vpop.f32.mrf.mxu0
    %v3677 = vadd.f32 0.0, %v3676
    %v3678 = vpop.f32.mrf.mxu0
    %3679 = vdwg.mxu0
    %v3680 = vpack.c.bf16 %v3621, %v3618
    %v3681 = vpack.c.bf16 %v3629, %v3626
    %v3682 = vpack.c.bf16 %v3637, %v3634
    %v3683 = vpack.c.bf16 %v3645, %v3642
    %v3684 = vpack.c.bf16 %v3653, %v3650
    %v3685 = vpack.c.bf16 %v3661, %v3658
    %v3686 = vpack.c.bf16 %v3669, %v3666
    %v3687 = vpack.c.bf16 %v3677, %v3674
    %s3688 = scalar_lea.vmem %s9, 128
    %v3689 = vld [vmem:[%s3688] sm:$0xf]
    %v3690 = vld [vmem:[%s3688 + $0x4] sm:$0xf]
    %v3691 = vld [vmem:[%s3688 + $0x8] sm:$0xf]
    %v3692 = vld [vmem:[%s3688 + $0xc] sm:$0xf]
    %v3693 = vld [vmem:[%s3688 + $0x10] sm:$0xf]
    %v3694 = vld [vmem:[%s3688 + $0x14] sm:$0xf]
    %v3695 = vld [vmem:[%s3688 + $0x18] sm:$0xf]
    %v3696 = vld [vmem:[%s3688 + $0x1c] sm:$0xf]
    %v3697 = vld [vmem:[%s3688 + $0x20] sm:$0xf]
    %v3698 = vld [vmem:[%s3688 + $0x24] sm:$0xf]
    %v3699 = vld [vmem:[%s3688 + $0x28] sm:$0xf]
    %v3700 = vld [vmem:[%s3688 + $0x2c] sm:$0xf]
    %v3701 = vld [vmem:[%s3688 + $0x30] sm:$0xf]
    %v3702 = vld [vmem:[%s3688 + $0x34] sm:$0xf]
    %v3703 = vld [vmem:[%s3688 + $0x38] sm:$0xf]
    %v3704 = vld [vmem:[%s3688 + $0x3c] sm:$0xf]
    %v3721 = vunpack.c.l.b16 %v3689
    %v3722 = vunpack.c.l.b16 %v3690
    %v3723 = vunpack.c.l.b16 %v3691
    %v3724 = vunpack.c.l.b16 %v3692
    %v3725 = vunpack.c.l.b16 %v3693
    %v3726 = vunpack.c.l.b16 %v3694
    %v3727 = vunpack.c.l.b16 %v3695
    %v3728 = vunpack.c.l.b16 %v3696
    %v3729 = vunpack.c.l.b16 %v3697
    %v3730 = vunpack.c.l.b16 %v3698
    %v3731 = vunpack.c.l.b16 %v3699
    %v3732 = vunpack.c.l.b16 %v3700
    %v3733 = vunpack.c.l.b16 %v3701
    %v3734 = vunpack.c.l.b16 %v3702
    %v3735 = vunpack.c.l.b16 %v3703
    %v3736 = vunpack.c.l.b16 %v3704
    %v3737 = vpack.c.b16 %v3722, %v3721
    %v3738 = vpack.c.b16 %v3724, %v3723
    %v3739 = vpack.c.b16 %v3726, %v3725
    %v3740 = vpack.c.b16 %v3728, %v3727
    %v3741 = vpack.c.b16 %v3730, %v3729
    %v3742 = vpack.c.b16 %v3732, %v3731
    %v3743 = vpack.c.b16 %v3734, %v3733
    %v3744 = vpack.c.b16 %v3736, %v3735
    %3753 = vmatprep.subr.bf16.mxu0 0
    %3754 = vmatpush1.bf16.msra.mxu0 %v3744
    %3755 = vmatprep.subr.bf16.mxu0 0
    %3756 = vmatpush1.bf16.msra.mxu0 %v3743
    %3757 = vmatprep.subr.bf16.mxu0 0
    %3758 = vmatpush1.bf16.msra.mxu0 %v3742
    %3759 = vmatprep.subr.bf16.mxu0 0
    %3760 = vmatpush1.bf16.msra.mxu0 %v3741
    %3761 = vmatprep.subr.bf16.mxu0 0
    %3762 = vmatpush1.bf16.msra.mxu0 %v3740
    %3763 = vmatprep.subr.bf16.mxu0 0
    %3764 = vmatpush1.bf16.msra.mxu0 %v3739
    %3765 = vmatprep.subr.bf16.mxu0 0
    %3766 = vmatpush1.bf16.msra.mxu0 %v3738
    %3767 = vmatprep.subr.bf16.mxu0 0
    %3768 = vmatpush1.bf16.msra.mxu0 %v3737
    %3769 = vmatprep.subr.bf16.mxu0 0
    %3770 = vmatpush2.bf16.msra.mxu0 0
    %3771 = vmatprep.subr.bf16.mxu0 0
    %3772 = vmatpush2.bf16.msra.mxu0 0
    %3773 = vmatprep.subr.bf16.mxu0 0
    %3774 = vmatpush2.bf16.msra.mxu0 0
    %3775 = vmatprep.subr.bf16.mxu0 0
    %3776 = vmatpush2.bf16.msra.mxu0 0
    %3777 = vmatprep.subr.bf16.mxu0 0
    %3778 = vmatpush2.bf16.msra.mxu0 0
    %3779 = vmatprep.subr.bf16.mxu0 0
    %3780 = vmatpush2.bf16.msra.mxu0 0
    %3781 = vmatprep.subr.bf16.mxu0 0
    %3782 = vmatpush2.bf16.msra.mxu0 0
    %3783 = vmatprep.subr.bf16.mxu0 0
    %3784 = vmatpush2.bf16.msra.mxu0 0
    %3785 = vmatprep.mubr.bf16.mxu0 0
    %3786 = vmatmul.mubr.bf16.gmra.mxu0 %v3680
    %v3787 = vpop.f32.mrf.mxu0
    %v3788 = vadd.f32 %v3192, %v3787
    %v3789 = vpop.f32.mrf.mxu0
    %v3790 = vpop.f32.mrf.mxu0
    %v3791 = vadd.f32 %v3196, %v3790
    %v3792 = vpop.f32.mrf.mxu0
    %3793 = vmatprep.mubr.bf16.mxu0 0
    %3794 = vmatmul.mubr.bf16.gmra.mxu0 %v3681
    %v3795 = vpop.f32.mrf.mxu0
    %v3796 = vadd.f32 %v3202, %v3795
    %v3797 = vpop.f32.mrf.mxu0
    %v3798 = vpop.f32.mrf.mxu0
    %v3799 = vadd.f32 %v3206, %v3798
    %v3800 = vpop.f32.mrf.mxu0
    %3801 = vmatprep.mubr.bf16.mxu0 0
    %3802 = vmatmul.mubr.bf16.gmra.mxu0 %v3682
    %v3803 = vpop.f32.mrf.mxu0
    %v3804 = vadd.f32 %v3212, %v3803
    %v3805 = vpop.f32.mrf.mxu0
    %v3806 = vpop.f32.mrf.mxu0
    %v3807 = vadd.f32 %v3216, %v3806
    %v3808 = vpop.f32.mrf.mxu0
    %3809 = vmatprep.mubr.bf16.mxu0 0
    %3810 = vmatmul.mubr.bf16.gmra.mxu0 %v3683
    %v3811 = vpop.f32.mrf.mxu0
    %v3812 = vadd.f32 %v3222, %v3811
    %v3813 = vpop.f32.mrf.mxu0
    %v3814 = vpop.f32.mrf.mxu0
    %v3815 = vadd.f32 %v3226, %v3814
    %v3816 = vpop.f32.mrf.mxu0
    %3817 = vmatprep.mubr.bf16.mxu0 0
    %3818 = vmatmul.mubr.bf16.gmra.mxu0 %v3684
    %v3819 = vpop.f32.mrf.mxu0
    %v3820 = vadd.f32 %v3232, %v3819
    %v3821 = vpop.f32.mrf.mxu0
    %v3822 = vpop.f32.mrf.mxu0
    %v3823 = vadd.f32 %v3236, %v3822
    %v3824 = vpop.f32.mrf.mxu0
    %3825 = vmatprep.mubr.bf16.mxu0 0
    %3826 = vmatmul.mubr.bf16.gmra.mxu0 %v3685
    %v3827 = vpop.f32.mrf.mxu0
    %v3828 = vadd.f32 %v3242, %v3827
    %v3829 = vpop.f32.mrf.mxu0
    %v3830 = vpop.f32.mrf.mxu0
    %v3831 = vadd.f32 %v3246, %v3830
    %v3832 = vpop.f32.mrf.mxu0
    %3833 = vmatprep.mubr.bf16.mxu0 0
    %3834 = vmatmul.mubr.bf16.gmra.mxu0 %v3686
    %v3835 = vpop.f32.mrf.mxu0
    %v3836 = vadd.f32 %v3252, %v3835
    %v3837 = vpop.f32.mrf.mxu0
    %v3838 = vpop.f32.mrf.mxu0
    %v3839 = vadd.f32 %v3256, %v3838
    %v3840 = vpop.f32.mrf.mxu0
    %3841 = vmatprep.mubr.bf16.mxu0 0
    %3842 = vmatmul.mubr.bf16.gmra.mxu0 %v3687
    %v3843 = vpop.f32.mrf.mxu0
    %v3844 = vadd.f32 %v3262, %v3843
    %v3845 = vpop.f32.mrf.mxu0
    %v3846 = vpop.f32.mrf.mxu0
    %v3847 = vadd.f32 %v3266, %v3846
    %v3848 = vpop.f32.mrf.mxu0
    %3849 = vdwg.mxu0
    %s3850 = scalar_lea.vmem %s12, 2
    %v3851 = vld [vmem:[%s3850] sm:$0x1]
    %v3853 = vlaneseq
    %v3854 = vshrl.u32 %v3853, 7
    %v3855 = vsub.s32 0, %v3854
    %v3856 = vrot.slane %v3851, %v3855
    %v3858 = vadd.f32 %v3788, %v3856
    %v3859 = vadd.f32 %v3791, %v3856
    %v3860 = vadd.f32 %v3796, %v3856
    %v3861 = vadd.f32 %v3799, %v3856
    %v3862 = vadd.f32 %v3804, %v3856
    %v3863 = vadd.f32 %v3807, %v3856
    %v3864 = vadd.f32 %v3812, %v3856
    %v3865 = vadd.f32 %v3815, %v3856
    %v3866 = vadd.f32 %v3820, %v3856
    %v3867 = vadd.f32 %v3823, %v3856
    %v3868 = vadd.f32 %v3828, %v3856
    %v3869 = vadd.f32 %v3831, %v3856
    %v3870 = vadd.f32 %v3836, %v3856
    %v3871 = vadd.f32 %v3839, %v3856
    %v3872 = vadd.f32 %v3844, %v3856
    %v3873 = vadd.f32 %v3847, %v3856
    %vm3874 = vcmp.gt.f32.partialorder %v3858, 0.0
    %vm3875 = vcmp.gt.f32.partialorder %v3859, 0.0
    %vm3876 = vcmp.gt.f32.partialorder %v3860, 0.0
    %vm3877 = vcmp.gt.f32.partialorder %v3861, 0.0
    %vm3878 = vcmp.gt.f32.partialorder %v3862, 0.0
    %vm3879 = vcmp.gt.f32.partialorder %v3863, 0.0
    %vm3880 = vcmp.gt.f32.partialorder %v3864, 0.0
    %vm3881 = vcmp.gt.f32.partialorder %v3865, 0.0
    %vm3882 = vcmp.gt.f32.partialorder %v3866, 0.0
    %vm3883 = vcmp.gt.f32.partialorder %v3867, 0.0
    %vm3884 = vcmp.gt.f32.partialorder %v3868, 0.0
    %vm3885 = vcmp.gt.f32.partialorder %v3869, 0.0
    %vm3886 = vcmp.gt.f32.partialorder %v3870, 0.0
    %vm3887 = vcmp.gt.f32.partialorder %v3871, 0.0
    %vm3888 = vcmp.gt.f32.partialorder %v3872, 0.0
    %vm3889 = vcmp.gt.f32.partialorder %v3873, 0.0
    %v3890 = vstv %s2725
    %v3891 = vmul.f32 %v3890, %v3858
    %v3892 = vmul.f32 %v3890, %v3859
    %v3893 = vmul.f32 %v3890, %v3860
    %v3894 = vmul.f32 %v3890, %v3861
    %v3895 = vmul.f32 %v3890, %v3862
    %v3896 = vmul.f32 %v3890, %v3863
    %v3897 = vmul.f32 %v3890, %v3864
    %v3898 = vmul.f32 %v3890, %v3865
    %v3899 = vmul.f32 %v3890, %v3866
    %v3900 = vmul.f32 %v3890, %v3867
    %v3901 = vmul.f32 %v3890, %v3868
    %v3902 = vmul.f32 %v3890, %v3869
    %v3903 = vmul.f32 %v3890, %v3870
    %v3904 = vmul.f32 %v3890, %v3871
    %v3905 = vmul.f32 %v3890, %v3872
    %v3906 = vmul.f32 %v3890, %v3873
    %v3907 = vsel %vm3874, %v3858, %v3891
    %v3908 = vsel %vm3875, %v3859, %v3892
    %v3909 = vsel %vm3876, %v3860, %v3893
    %v3910 = vsel %vm3877, %v3861, %v3894
    %v3911 = vsel %vm3878, %v3862, %v3895
    %v3912 = vsel %vm3879, %v3863, %v3896
    %v3913 = vsel %vm3880, %v3864, %v3897
    %v3914 = vsel %vm3881, %v3865, %v3898
    %v3915 = vsel %vm3882, %v3866, %v3899
    %v3916 = vsel %vm3883, %v3867, %v3900
    %v3917 = vsel %vm3884, %v3868, %v3901
    %v3918 = vsel %vm3885, %v3869, %v3902
    %v3919 = vsel %vm3886, %v3870, %v3903
    %v3920 = vsel %vm3887, %v3871, %v3904
    %v3921 = vsel %vm3888, %v3872, %v3905
    %v3922 = vsel %vm3889, %v3873, %v3906
    %v3923 = vpack.c.bf16 %v3908, %v3907
    %v3924 = vpack.c.bf16 %v3910, %v3909
    %v3925 = vpack.c.bf16 %v3912, %v3911
    %v3926 = vpack.c.bf16 %v3914, %v3913
    %v3927 = vpack.c.bf16 %v3916, %v3915
    %v3928 = vpack.c.bf16 %v3918, %v3917
    %v3929 = vpack.c.bf16 %v3920, %v3919
    %v3930 = vpack.c.bf16 %v3922, %v3921
    %s3931 = sld [smem:[#allocation2 + $0x180]]
    %s3932 = sld [smem:[#allocation2 + $0x181]]
    %s3933 = scalar_lea.vmem %s6, 192
    %v3934 = vld [vmem:[%s3933] sm:$0xf]
    %v3935 = vld [vmem:[%s3933 + $0x4] sm:$0xf]
    %v3936 = vld [vmem:[%s3933 + $0x8] sm:$0xf]
    %v3937 = vld [vmem:[%s3933 + $0xc] sm:$0xf]
    %v3938 = vld [vmem:[%s3933 + $0x10] sm:$0xf]
    %v3939 = vld [vmem:[%s3933 + $0x14] sm:$0xf]
    %v3940 = vld [vmem:[%s3933 + $0x18] sm:$0xf]
    %v3941 = vld [vmem:[%s3933 + $0x1c] sm:$0xf]
    %v3942 = vld [vmem:[%s3933 + $0x20] sm:$0xf]
    %v3943 = vld [vmem:[%s3933 + $0x24] sm:$0xf]
    %v3944 = vld [vmem:[%s3933 + $0x28] sm:$0xf]
    %v3945 = vld [vmem:[%s3933 + $0x2c] sm:$0xf]
    %v3946 = vld [vmem:[%s3933 + $0x30] sm:$0xf]
    %v3947 = vld [vmem:[%s3933 + $0x34] sm:$0xf]
    %v3948 = vld [vmem:[%s3933 + $0x38] sm:$0xf]
    %v3949 = vld [vmem:[%s3933 + $0x3c] sm:$0xf]
    %v3966 = vunpack.c.l.b16 %v3934
    %v3967 = vunpack.c.l.b16 %v3935
    %v3968 = vunpack.c.l.b16 %v3936
    %v3969 = vunpack.c.l.b16 %v3937
    %v3970 = vunpack.c.l.b16 %v3938
    %v3971 = vunpack.c.l.b16 %v3939
    %v3972 = vunpack.c.l.b16 %v3940
    %v3973 = vunpack.c.l.b16 %v3941
    %v3974 = vunpack.c.l.b16 %v3942
    %v3975 = vunpack.c.l.b16 %v3943
    %v3976 = vunpack.c.l.b16 %v3944
    %v3977 = vunpack.c.l.b16 %v3945
    %v3978 = vunpack.c.l.b16 %v3946
    %v3979 = vunpack.c.l.b16 %v3947
    %v3980 = vunpack.c.l.b16 %v3948
    %v3981 = vunpack.c.l.b16 %v3949
    %v3982 = vpack.c.b16 %v3967, %v3966
    %v3983 = vpack.c.b16 %v3969, %v3968
    %v3984 = vpack.c.b16 %v3971, %v3970
    %v3985 = vpack.c.b16 %v3973, %v3972
    %v3986 = vpack.c.b16 %v3975, %v3974
    %v3987 = vpack.c.b16 %v3977, %v3976
    %v3988 = vpack.c.b16 %v3979, %v3978
    %v3989 = vpack.c.b16 %v3981, %v3980
    %3998 = vmatprep.subr.bf16.mxu0 0
    %3999 = vmatpush1.bf16.msra.mxu0 %v3989
    %4000 = vmatprep.subr.bf16.mxu0 0
    %4001 = vmatpush1.bf16.msra.mxu0 %v3988
    %4002 = vmatprep.subr.bf16.mxu0 0
    %4003 = vmatpush1.bf16.msra.mxu0 %v3987
    %4004 = vmatprep.subr.bf16.mxu0 0
    %4005 = vmatpush1.bf16.msra.mxu0 %v3986
    %4006 = vmatprep.subr.bf16.mxu0 0
    %4007 = vmatpush1.bf16.msra.mxu0 %v3985
    %4008 = vmatprep.subr.bf16.mxu0 0
    %4009 = vmatpush1.bf16.msra.mxu0 %v3984
    %4010 = vmatprep.subr.bf16.mxu0 0
    %4011 = vmatpush1.bf16.msra.mxu0 %v3983
    %4012 = vmatprep.subr.bf16.mxu0 0
    %4013 = vmatpush1.bf16.msra.mxu0 %v3982
    %4014 = vmatprep.subr.bf16.mxu0 0
    %4015 = vmatpush2.bf16.msra.mxu0 0
    %4016 = vmatprep.subr.bf16.mxu0 0
    %4017 = vmatpush2.bf16.msra.mxu0 0
    %4018 = vmatprep.subr.bf16.mxu0 0
    %4019 = vmatpush2.bf16.msra.mxu0 0
    %4020 = vmatprep.subr.bf16.mxu0 0
    %4021 = vmatpush2.bf16.msra.mxu0 0
    %4022 = vmatprep.subr.bf16.mxu0 0
    %4023 = vmatpush2.bf16.msra.mxu0 0
    %4024 = vmatprep.subr.bf16.mxu0 0
    %4025 = vmatpush2.bf16.msra.mxu0 0
    %4026 = vmatprep.subr.bf16.mxu0 0
    %4027 = vmatpush2.bf16.msra.mxu0 0
    %4028 = vmatprep.subr.bf16.mxu0 0
    %4029 = vmatpush2.bf16.msra.mxu0 0
    %4030 = vmatprep.mubr.bf16.mxu0 0
    %4031 = vmatmul.mubr.bf16.gmra.mxu0 %v3575
    %v4032 = vpop.f32.mrf.mxu0
    %v4033 = vadd.f32 0.0, %v4032
    %v4034 = vpop.f32.mrf.mxu0
    %v4035 = vpop.f32.mrf.mxu0
    %v4036 = vadd.f32 0.0, %v4035
    %v4037 = vpop.f32.mrf.mxu0
    %4038 = vmatprep.mubr.bf16.mxu0 0
    %4039 = vmatmul.mubr.bf16.gmra.mxu0 %v3576
    %v4040 = vpop.f32.mrf.mxu0
    %v4041 = vadd.f32 0.0, %v4040
    %v4042 = vpop.f32.mrf.mxu0
    %v4043 = vpop.f32.mrf.mxu0
    %v4044 = vadd.f32 0.0, %v4043
    %v4045 = vpop.f32.mrf.mxu0
    %4046 = vmatprep.mubr.bf16.mxu0 0
    %4047 = vmatmul.mubr.bf16.gmra.mxu0 %v3577
    %v4048 = vpop.f32.mrf.mxu0
    %v4049 = vadd.f32 0.0, %v4048
    %v4050 = vpop.f32.mrf.mxu0
    %v4051 = vpop.f32.mrf.mxu0
    %v4052 = vadd.f32 0.0, %v4051
    %v4053 = vpop.f32.mrf.mxu0
    %4054 = vmatprep.mubr.bf16.mxu0 0
    %4055 = vmatmul.mubr.bf16.gmra.mxu0 %v3578
    %v4056 = vpop.f32.mrf.mxu0
    %v4057 = vadd.f32 0.0, %v4056
    %v4058 = vpop.f32.mrf.mxu0
    %v4059 = vpop.f32.mrf.mxu0
    %v4060 = vadd.f32 0.0, %v4059
    %v4061 = vpop.f32.mrf.mxu0
    %4062 = vmatprep.mubr.bf16.mxu0 0
    %4063 = vmatmul.mubr.bf16.gmra.mxu0 %v3579
    %v4064 = vpop.f32.mrf.mxu0
    %v4065 = vadd.f32 0.0, %v4064
    %v4066 = vpop.f32.mrf.mxu0
    %v4067 = vpop.f32.mrf.mxu0
    %v4068 = vadd.f32 0.0, %v4067
    %v4069 = vpop.f32.mrf.mxu0
    %4070 = vmatprep.mubr.bf16.mxu0 0
    %4071 = vmatmul.mubr.bf16.gmra.mxu0 %v3580
    %v4072 = vpop.f32.mrf.mxu0
    %v4073 = vadd.f32 0.0, %v4072
    %v4074 = vpop.f32.mrf.mxu0
    %v4075 = vpop.f32.mrf.mxu0
    %v4076 = vadd.f32 0.0, %v4075
    %v4077 = vpop.f32.mrf.mxu0
    %4078 = vmatprep.mubr.bf16.mxu0 0
    %4079 = vmatmul.mubr.bf16.gmra.mxu0 %v3581
    %v4080 = vpop.f32.mrf.mxu0
    %v4081 = vadd.f32 0.0, %v4080
    %v4082 = vpop.f32.mrf.mxu0
    %v4083 = vpop.f32.mrf.mxu0
    %v4084 = vadd.f32 0.0, %v4083
    %v4085 = vpop.f32.mrf.mxu0
    %4086 = vmatprep.mubr.bf16.mxu0 0
    %4087 = vmatmul.mubr.bf16.gmra.mxu0 %v3582
    %v4088 = vpop.f32.mrf.mxu0
    %v4089 = vadd.f32 0.0, %v4088
    %v4090 = vpop.f32.mrf.mxu0
    %v4091 = vpop.f32.mrf.mxu0
    %v4092 = vadd.f32 0.0, %v4091
    %v4093 = vpop.f32.mrf.mxu0
    %4094 = vdwg.mxu0
    %v4095 = vpack.c.bf16 %v4036, %v4033
    %v4096 = vpack.c.bf16 %v4044, %v4041
    %v4097 = vpack.c.bf16 %v4052, %v4049
    %v4098 = vpack.c.bf16 %v4060, %v4057
    %v4099 = vpack.c.bf16 %v4068, %v4065
    %v4100 = vpack.c.bf16 %v4076, %v4073
    %v4101 = vpack.c.bf16 %v4084, %v4081
    %v4102 = vpack.c.bf16 %v4092, %v4089
    %s4103 = scalar_lea.vmem %s7, 192
    %v4104 = vld [vmem:[%s4103] sm:$0xf]
    %v4105 = vld [vmem:[%s4103 + $0x4] sm:$0xf]
    %v4106 = vld [vmem:[%s4103 + $0x8] sm:$0xf]
    %v4107 = vld [vmem:[%s4103 + $0xc] sm:$0xf]
    %v4108 = vld [vmem:[%s4103 + $0x10] sm:$0xf]
    %v4109 = vld [vmem:[%s4103 + $0x14] sm:$0xf]
    %v4110 = vld [vmem:[%s4103 + $0x18] sm:$0xf]
    %v4111 = vld [vmem:[%s4103 + $0x1c] sm:$0xf]
    %v4112 = vld [vmem:[%s4103 + $0x20] sm:$0xf]
    %v4113 = vld [vmem:[%s4103 + $0x24] sm:$0xf]
    %v4114 = vld [vmem:[%s4103 + $0x28] sm:$0xf]
    %v4115 = vld [vmem:[%s4103 + $0x2c] sm:$0xf]
    %v4116 = vld [vmem:[%s4103 + $0x30] sm:$0xf]
    %v4117 = vld [vmem:[%s4103 + $0x34] sm:$0xf]
    %v4118 = vld [vmem:[%s4103 + $0x38] sm:$0xf]
    %v4119 = vld [vmem:[%s4103 + $0x3c] sm:$0xf]
    %v4136 = vunpack.c.l.b16 %v4104
    %v4137 = vunpack.c.l.b16 %v4105
    %v4138 = vunpack.c.l.b16 %v4106
    %v4139 = vunpack.c.l.b16 %v4107
    %v4140 = vunpack.c.l.b16 %v4108
    %v4141 = vunpack.c.l.b16 %v4109
    %v4142 = vunpack.c.l.b16 %v4110
    %v4143 = vunpack.c.l.b16 %v4111
    %v4144 = vunpack.c.l.b16 %v4112
    %v4145 = vunpack.c.l.b16 %v4113
    %v4146 = vunpack.c.l.b16 %v4114
    %v4147 = vunpack.c.l.b16 %v4115
    %v4148 = vunpack.c.l.b16 %v4116
    %v4149 = vunpack.c.l.b16 %v4117
    %v4150 = vunpack.c.l.b16 %v4118
    %v4151 = vunpack.c.l.b16 %v4119
    %v4152 = vpack.c.b16 %v4137, %v4136
    %v4153 = vpack.c.b16 %v4139, %v4138
    %v4154 = vpack.c.b16 %v4141, %v4140
    %v4155 = vpack.c.b16 %v4143, %v4142
    %v4156 = vpack.c.b16 %v4145, %v4144
    %v4157 = vpack.c.b16 %v4147, %v4146
    %v4158 = vpack.c.b16 %v4149, %v4148
    %v4159 = vpack.c.b16 %v4151, %v4150
    %4168 = vmatprep.subr.bf16.mxu0 0
    %4169 = vmatpush1.bf16.msra.mxu0 %v4159
    %4170 = vmatprep.subr.bf16.mxu0 0
    %4171 = vmatpush1.bf16.msra.mxu0 %v4158
    %4172 = vmatprep.subr.bf16.mxu0 0
    %4173 = vmatpush1.bf16.msra.mxu0 %v4157
    %4174 = vmatprep.subr.bf16.mxu0 0
    %4175 = vmatpush1.bf16.msra.mxu0 %v4156
    %4176 = vmatprep.subr.bf16.mxu0 0
    %4177 = vmatpush1.bf16.msra.mxu0 %v4155
    %4178 = vmatprep.subr.bf16.mxu0 0
    %4179 = vmatpush1.bf16.msra.mxu0 %v4154
    %4180 = vmatprep.subr.bf16.mxu0 0
    %4181 = vmatpush1.bf16.msra.mxu0 %v4153
    %4182 = vmatprep.subr.bf16.mxu0 0
    %4183 = vmatpush1.bf16.msra.mxu0 %v4152
    %4184 = vmatprep.subr.bf16.mxu0 0
    %4185 = vmatpush2.bf16.msra.mxu0 0
    %4186 = vmatprep.subr.bf16.mxu0 0
    %4187 = vmatpush2.bf16.msra.mxu0 0
    %4188 = vmatprep.subr.bf16.mxu0 0
    %4189 = vmatpush2.bf16.msra.mxu0 0
    %4190 = vmatprep.subr.bf16.mxu0 0
    %4191 = vmatpush2.bf16.msra.mxu0 0
    %4192 = vmatprep.subr.bf16.mxu0 0
    %4193 = vmatpush2.bf16.msra.mxu0 0
    %4194 = vmatprep.subr.bf16.mxu0 0
    %4195 = vmatpush2.bf16.msra.mxu0 0
    %4196 = vmatprep.subr.bf16.mxu0 0
    %4197 = vmatpush2.bf16.msra.mxu0 0
    %4198 = vmatprep.subr.bf16.mxu0 0
    %4199 = vmatpush2.bf16.msra.mxu0 0
    %4200 = vmatprep.mubr.bf16.mxu0 0
    %4201 = vmatmul.mubr.bf16.gmra.mxu0 %v4095
    %v4202 = vpop.f32.mrf.mxu0
    %v4203 = vadd.f32 0.0, %v4202
    %v4204 = vpop.f32.mrf.mxu0
    %v4205 = vpop.f32.mrf.mxu0
    %v4206 = vadd.f32 0.0, %v4205
    %v4207 = vpop.f32.mrf.mxu0
    %4208 = vmatprep.mubr.bf16.mxu0 0
    %4209 = vmatmul.mubr.bf16.gmra.mxu0 %v4096
    %v4210 = vpop.f32.mrf.mxu0
    %v4211 = vadd.f32 0.0, %v4210
    %v4212 = vpop.f32.mrf.mxu0
    %v4213 = vpop.f32.mrf.mxu0
    %v4214 = vadd.f32 0.0, %v4213
    %v4215 = vpop.f32.mrf.mxu0
    %4216 = vmatprep.mubr.bf16.mxu0 0
    %4217 = vmatmul.mubr.bf16.gmra.mxu0 %v4097
    %v4218 = vpop.f32.mrf.mxu0
    %v4219 = vadd.f32 0.0, %v4218
    %v4220 = vpop.f32.mrf.mxu0
    %v4221 = vpop.f32.mrf.mxu0
    %v4222 = vadd.f32 0.0, %v4221
    %v4223 = vpop.f32.mrf.mxu0
    %4224 = vmatprep.mubr.bf16.mxu0 0
    %4225 = vmatmul.mubr.bf16.gmra.mxu0 %v4098
    %v4226 = vpop.f32.mrf.mxu0
    %v4227 = vadd.f32 0.0, %v4226
    %v4228 = vpop.f32.mrf.mxu0
    %v4229 = vpop.f32.mrf.mxu0
    %v4230 = vadd.f32 0.0, %v4229
    %v4231 = vpop.f32.mrf.mxu0
    %4232 = vmatprep.mubr.bf16.mxu0 0
    %4233 = vmatmul.mubr.bf16.gmra.mxu0 %v4099
    %v4234 = vpop.f32.mrf.mxu0
    %v4235 = vadd.f32 0.0, %v4234
    %v4236 = vpop.f32.mrf.mxu0
    %v4237 = vpop.f32.mrf.mxu0
    %v4238 = vadd.f32 0.0, %v4237
    %v4239 = vpop.f32.mrf.mxu0
    %4240 = vmatprep.mubr.bf16.mxu0 0
    %4241 = vmatmul.mubr.bf16.gmra.mxu0 %v4100
    %v4242 = vpop.f32.mrf.mxu0
    %v4243 = vadd.f32 0.0, %v4242
    %v4244 = vpop.f32.mrf.mxu0
    %v4245 = vpop.f32.mrf.mxu0
    %v4246 = vadd.f32 0.0, %v4245
    %v4247 = vpop.f32.mrf.mxu0
    %4248 = vmatprep.mubr.bf16.mxu0 0
    %4249 = vmatmul.mubr.bf16.gmra.mxu0 %v4101
    %v4250 = vpop.f32.mrf.mxu0
    %v4251 = vadd.f32 0.0, %v4250
    %v4252 = vpop.f32.mrf.mxu0
    %v4253 = vpop.f32.mrf.mxu0
    %v4254 = vadd.f32 0.0, %v4253
    %v4255 = vpop.f32.mrf.mxu0
    %4256 = vmatprep.mubr.bf16.mxu0 0
    %4257 = vmatmul.mubr.bf16.gmra.mxu0 %v4102
    %v4258 = vpop.f32.mrf.mxu0
    %v4259 = vadd.f32 0.0, %v4258
    %v4260 = vpop.f32.mrf.mxu0
    %v4261 = vpop.f32.mrf.mxu0
    %v4262 = vadd.f32 0.0, %v4261
    %v4263 = vpop.f32.mrf.mxu0
    %4264 = vdwg.mxu0
    %s4265 = scalar_lea.vmem %s8, 384
    %v4266 = vld [vmem:[%s4265] sm:$0xff]
    %v4267 = vld [vmem:[%s4265 + $0x8] sm:$0xff]
    %v4268 = vld [vmem:[%s4265 + $0x10] sm:$0xff]
    %v4269 = vld [vmem:[%s4265 + $0x18] sm:$0xff]
    %v4270 = vld [vmem:[%s4265 + $0x20] sm:$0xff]
    %v4271 = vld [vmem:[%s4265 + $0x28] sm:$0xff]
    %v4272 = vld [vmem:[%s4265 + $0x30] sm:$0xff]
    %v4273 = vld [vmem:[%s4265 + $0x38] sm:$0xff]
    %v4274 = vld [vmem:[%s4265 + $0x40] sm:$0xff]
    %v4275 = vld [vmem:[%s4265 + $0x48] sm:$0xff]
    %v4276 = vld [vmem:[%s4265 + $0x50] sm:$0xff]
    %v4277 = vld [vmem:[%s4265 + $0x58] sm:$0xff]
    %v4278 = vld [vmem:[%s4265 + $0x60] sm:$0xff]
    %v4279 = vld [vmem:[%s4265 + $0x68] sm:$0xff]
    %v4280 = vld [vmem:[%s4265 + $0x70] sm:$0xff]
    %v4281 = vld [vmem:[%s4265 + $0x78] sm:$0xff]
    %v4298 = vunpack.c.l.b16 %v4266
    %v4299 = vunpack.c.h.b16 %v4266
    %v4300 = vunpack.c.l.b16 %v4267
    %v4301 = vunpack.c.h.b16 %v4267
    %v4302 = vunpack.c.l.b16 %v4268
    %v4303 = vunpack.c.h.b16 %v4268
    %v4304 = vunpack.c.l.b16 %v4269
    %v4305 = vunpack.c.h.b16 %v4269
    %v4306 = vunpack.c.l.b16 %v4270
    %v4307 = vunpack.c.h.b16 %v4270
    %v4308 = vunpack.c.l.b16 %v4271
    %v4309 = vunpack.c.h.b16 %v4271
    %v4310 = vunpack.c.l.b16 %v4272
    %v4311 = vunpack.c.h.b16 %v4272
    %v4312 = vunpack.c.l.b16 %v4273
    %v4313 = vunpack.c.h.b16 %v4273
    %v4314 = vunpack.c.l.b16 %v4274
    %v4315 = vunpack.c.h.b16 %v4274
    %v4316 = vunpack.c.l.b16 %v4275
    %v4317 = vunpack.c.h.b16 %v4275
    %v4318 = vunpack.c.l.b16 %v4276
    %v4319 = vunpack.c.h.b16 %v4276
    %v4320 = vunpack.c.l.b16 %v4277
    %v4321 = vunpack.c.h.b16 %v4277
    %v4322 = vunpack.c.l.b16 %v4278
    %v4323 = vunpack.c.h.b16 %v4278
    %v4324 = vunpack.c.l.b16 %v4279
    %v4325 = vunpack.c.h.b16 %v4279
    %v4326 = vunpack.c.l.b16 %v4280
    %v4327 = vunpack.c.h.b16 %v4280
    %v4328 = vunpack.c.l.b16 %v4281
    %v4329 = vunpack.c.h.b16 %v4281
    %v4330 = vpack.c.b16 %v4300, %v4298
    %v4331 = vpack.c.b16 %v4301, %v4299
    %v4332 = vpack.c.b16 %v4304, %v4302
    %v4333 = vpack.c.b16 %v4305, %v4303
    %v4334 = vpack.c.b16 %v4308, %v4306
    %v4335 = vpack.c.b16 %v4309, %v4307
    %v4336 = vpack.c.b16 %v4312, %v4310
    %v4337 = vpack.c.b16 %v4313, %v4311
    %v4338 = vpack.c.b16 %v4316, %v4314
    %v4339 = vpack.c.b16 %v4317, %v4315
    %v4340 = vpack.c.b16 %v4320, %v4318
    %v4341 = vpack.c.b16 %v4321, %v4319
    %v4342 = vpack.c.b16 %v4324, %v4322
    %v4343 = vpack.c.b16 %v4325, %v4323
    %v4344 = vpack.c.b16 %v4328, %v4326
    %v4345 = vpack.c.b16 %v4329, %v4327
    %4362 = vmatprep.subr.bf16.mxu0 %v4345
    %4363 = vmatpush1.bf16.msra.mxu0 %v4344
    %4364 = vmatprep.subr.bf16.mxu0 %v4343
    %4365 = vmatpush1.bf16.msra.mxu0 %v4342
    %4366 = vmatprep.subr.bf16.mxu0 %v4341
    %4367 = vmatpush1.bf16.msra.mxu0 %v4340
    %4368 = vmatprep.subr.bf16.mxu0 %v4339
    %4369 = vmatpush1.bf16.msra.mxu0 %v4338
    %4370 = vmatprep.subr.bf16.mxu0 %v4337
    %4371 = vmatpush1.bf16.msra.mxu0 %v4336
    %4372 = vmatprep.subr.bf16.mxu0 %v4335
    %4373 = vmatpush1.bf16.msra.mxu0 %v4334
    %4374 = vmatprep.subr.bf16.mxu0 %v4333
    %4375 = vmatpush1.bf16.msra.mxu0 %v4332
    %4376 = vmatprep.subr.bf16.mxu0 %v4331
    %4377 = vmatpush1.bf16.msra.mxu0 %v4330
    %4378 = vmatprep.subr.bf16.mxu0 0
    %4379 = vmatpush2.bf16.msra.mxu0 0
    %4380 = vmatprep.subr.bf16.mxu0 0
    %4381 = vmatpush2.bf16.msra.mxu0 0
    %4382 = vmatprep.subr.bf16.mxu0 0
    %4383 = vmatpush2.bf16.msra.mxu0 0
    %4384 = vmatprep.subr.bf16.mxu0 0
    %4385 = vmatpush2.bf16.msra.mxu0 0
    %4386 = vmatprep.subr.bf16.mxu0 0
    %4387 = vmatpush2.bf16.msra.mxu0 0
    %4388 = vmatprep.subr.bf16.mxu0 0
    %4389 = vmatpush2.bf16.msra.mxu0 0
    %4390 = vmatprep.subr.bf16.mxu0 0
    %4391 = vmatpush2.bf16.msra.mxu0 0
    %4392 = vmatprep.subr.bf16.mxu0 0
    %4393 = vmatpush2.bf16.msra.mxu0 0
    %4394 = vmatprep.mubr.bf16.mxu0 0
    %4395 = vmatmul.mubr.bf16.gmra.mxu0 %v3923
    %v4396 = vpop.f32.mrf.mxu0
    %v4397 = vadd.f32 0.0, %v4396
    %v4398 = vpop.f32.mrf.mxu0
    %v4399 = vadd.f32 0.0, %v4398
    %v4400 = vpop.f32.mrf.mxu0
    %v4401 = vadd.f32 0.0, %v4400
    %v4402 = vpop.f32.mrf.mxu0
    %v4403 = vadd.f32 0.0, %v4402
    %4404 = vmatprep.mubr.bf16.mxu0 0
    %4405 = vmatmul.mubr.bf16.gmra.mxu0 %v3924
    %v4406 = vpop.f32.mrf.mxu0
    %v4407 = vadd.f32 0.0, %v4406
    %v4408 = vpop.f32.mrf.mxu0
    %v4409 = vadd.f32 0.0, %v4408
    %v4410 = vpop.f32.mrf.mxu0
    %v4411 = vadd.f32 0.0, %v4410
    %v4412 = vpop.f32.mrf.mxu0
    %v4413 = vadd.f32 0.0, %v4412
    %4414 = vmatprep.mubr.bf16.mxu0 0
    %4415 = vmatmul.mubr.bf16.gmra.mxu0 %v3925
    %v4416 = vpop.f32.mrf.mxu0
    %v4417 = vadd.f32 0.0, %v4416
    %v4418 = vpop.f32.mrf.mxu0
    %v4419 = vadd.f32 0.0, %v4418
    %v4420 = vpop.f32.mrf.mxu0
    %v4421 = vadd.f32 0.0, %v4420
    %v4422 = vpop.f32.mrf.mxu0
    %v4423 = vadd.f32 0.0, %v4422
    %4424 = vmatprep.mubr.bf16.mxu0 0
    %4425 = vmatmul.mubr.bf16.gmra.mxu0 %v3926
    %v4426 = vpop.f32.mrf.mxu0
    %v4427 = vadd.f32 0.0, %v4426
    %v4428 = vpop.f32.mrf.mxu0
    %v4429 = vadd.f32 0.0, %v4428
    %v4430 = vpop.f32.mrf.mxu0
    %v4431 = vadd.f32 0.0, %v4430
    %v4432 = vpop.f32.mrf.mxu0
    %v4433 = vadd.f32 0.0, %v4432
    %4434 = vmatprep.mubr.bf16.mxu0 0
    %4435 = vmatmul.mubr.bf16.gmra.mxu0 %v3927
    %v4436 = vpop.f32.mrf.mxu0
    %v4437 = vadd.f32 0.0, %v4436
    %v4438 = vpop.f32.mrf.mxu0
    %v4439 = vadd.f32 0.0, %v4438
    %v4440 = vpop.f32.mrf.mxu0
    %v4441 = vadd.f32 0.0, %v4440
    %v4442 = vpop.f32.mrf.mxu0
    %v4443 = vadd.f32 0.0, %v4442
    %4444 = vmatprep.mubr.bf16.mxu0 0
    %4445 = vmatmul.mubr.bf16.gmra.mxu0 %v3928
    %v4446 = vpop.f32.mrf.mxu0
    %v4447 = vadd.f32 0.0, %v4446
    %v4448 = vpop.f32.mrf.mxu0
    %v4449 = vadd.f32 0.0, %v4448
    %v4450 = vpop.f32.mrf.mxu0
    %v4451 = vadd.f32 0.0, %v4450
    %v4452 = vpop.f32.mrf.mxu0
    %v4453 = vadd.f32 0.0, %v4452
    %4454 = vmatprep.mubr.bf16.mxu0 0
    %4455 = vmatmul.mubr.bf16.gmra.mxu0 %v3929
    %v4456 = vpop.f32.mrf.mxu0
    %v4457 = vadd.f32 0.0, %v4456
    %v4458 = vpop.f32.mrf.mxu0
    %v4459 = vadd.f32 0.0, %v4458
    %v4460 = vpop.f32.mrf.mxu0
    %v4461 = vadd.f32 0.0, %v4460
    %v4462 = vpop.f32.mrf.mxu0
    %v4463 = vadd.f32 0.0, %v4462
    %4464 = vmatprep.mubr.bf16.mxu0 0
    %4465 = vmatmul.mubr.bf16.gmra.mxu0 %v3930
    %v4466 = vpop.f32.mrf.mxu0
    %v4467 = vadd.f32 0.0, %v4466
    %v4468 = vpop.f32.mrf.mxu0
    %v4469 = vadd.f32 0.0, %v4468
    %v4470 = vpop.f32.mrf.mxu0
    %v4471 = vadd.f32 0.0, %v4470
    %v4472 = vpop.f32.mrf.mxu0
    %v4473 = vadd.f32 0.0, %v4472
    %4474 = vdwg.mxu0
    %s4475 = scalar_lea.vmem %s10, 3
    %v4476 = vld [vmem:[%s4475] sm:$0x1]
    %v4478 = vlaneseq
    %v4479 = vshrl.u32 %v4478, 7
    %v4480 = vsub.s32 0, %v4479
    %v4481 = vrot.slane %v4476, %v4480
    %v4483 = vadd.f32 %v4397, %v4481
    %v4484 = vadd.f32 %v4401, %v4481
    %v4485 = vadd.f32 %v4407, %v4481
    %v4486 = vadd.f32 %v4411, %v4481
    %v4487 = vadd.f32 %v4417, %v4481
    %v4488 = vadd.f32 %v4421, %v4481
    %v4489 = vadd.f32 %v4427, %v4481
    %v4490 = vadd.f32 %v4431, %v4481
    %v4491 = vadd.f32 %v4437, %v4481
    %v4492 = vadd.f32 %v4441, %v4481
    %v4493 = vadd.f32 %v4447, %v4481
    %v4494 = vadd.f32 %v4451, %v4481
    %v4495 = vadd.f32 %v4457, %v4481
    %v4496 = vadd.f32 %v4461, %v4481
    %v4497 = vadd.f32 %v4467, %v4481
    %v4498 = vadd.f32 %v4471, %v4481
    %v4499 = vpack.c.bf16 %v4206, %v4203
    %v4500 = vpack.c.bf16 %v4214, %v4211
    %v4501 = vpack.c.bf16 %v4222, %v4219
    %v4502 = vpack.c.bf16 %v4230, %v4227
    %v4503 = vpack.c.bf16 %v4238, %v4235
    %v4504 = vpack.c.bf16 %v4246, %v4243
    %v4505 = vpack.c.bf16 %v4254, %v4251
    %v4506 = vpack.c.bf16 %v4262, %v4259
    %v4507 = vpack.c.bf16 %v4484, %v4483
    %v4508 = vpack.c.bf16 %v4486, %v4485
    %v4509 = vpack.c.bf16 %v4488, %v4487
    %v4510 = vpack.c.bf16 %v4490, %v4489
    %v4511 = vpack.c.bf16 %v4492, %v4491
    %v4512 = vpack.c.bf16 %v4494, %v4493
    %v4513 = vpack.c.bf16 %v4496, %v4495
    %v4514 = vpack.c.bf16 %v4498, %v4497
    %4515 = vmatprep.subr.bf16.mxu0 0
    %4516 = vmatpush1.bf16.msra.mxu0 %v4514
    %4517 = vmatprep.subr.bf16.mxu0 0
    %4518 = vmatpush1.bf16.msra.mxu0 %v4513
    %4519 = vmatprep.subr.bf16.mxu0 0
    %4520 = vmatpush1.bf16.msra.mxu0 %v4512
    %4521 = vmatprep.subr.bf16.mxu0 0
    %4522 = vmatpush1.bf16.msra.mxu0 %v4511
    %4523 = vmatprep.subr.bf16.mxu0 0
    %4524 = vmatpush1.bf16.msra.mxu0 %v4510
    %4525 = vmatprep.subr.bf16.mxu0 0
    %4526 = vmatpush1.bf16.msra.mxu0 %v4509
    %4527 = vmatprep.subr.bf16.mxu0 0
    %4528 = vmatpush1.bf16.msra.mxu0 %v4508
    %4529 = vmatprep.subr.bf16.mxu0 0
    %4530 = vmatpush1.bf16.msra.mxu0 %v4507
    %4531 = vmatprep.subr.bf16.mxu0 0
    %4532 = vmatpush2.bf16.msra.mxu0 0
    %4533 = vmatprep.subr.bf16.mxu0 0
    %4534 = vmatpush2.bf16.msra.mxu0 0
    %4535 = vmatprep.subr.bf16.mxu0 0
    %4536 = vmatpush2.bf16.msra.mxu0 0
    %4537 = vmatprep.subr.bf16.mxu0 0
    %4538 = vmatpush2.bf16.msra.mxu0 0
    %4539 = vmatprep.subr.bf16.mxu0 0
    %4540 = vmatpush2.bf16.msra.mxu0 0
    %4541 = vmatprep.subr.bf16.mxu0 0
    %4542 = vmatpush2.bf16.msra.mxu0 0
    %4543 = vmatprep.subr.bf16.mxu0 0
    %4544 = vmatpush2.bf16.msra.mxu0 0
    %4545 = vmatprep.subr.bf16.mxu0 0
    %4546 = vmatpush2.bf16.msra.mxu0 0
    %4547 = vmatprep.mubr.bf16.mxu0 0
    %4548 = vmatmul.mubr.bf16.gmra.mxu0 %v769
    %v4549 = vpop.f32.mrf.mxu0
    %v4550 = vadd.f32 0.0, %v4549
    %v4551 = vpop.f32.mrf.mxu0
    %v4552 = vpop.f32.mrf.mxu0
    %v4553 = vadd.f32 0.0, %v4552
    %v4554 = vpop.f32.mrf.mxu0
    %4555 = vmatprep.mubr.bf16.mxu0 0
    %4556 = vmatmul.mubr.bf16.gmra.mxu0 %v770
    %v4557 = vpop.f32.mrf.mxu0
    %v4558 = vadd.f32 0.0, %v4557
    %v4559 = vpop.f32.mrf.mxu0
    %v4560 = vpop.f32.mrf.mxu0
    %v4561 = vadd.f32 0.0, %v4560
    %v4562 = vpop.f32.mrf.mxu0
    %4563 = vmatprep.mubr.bf16.mxu0 0
    %4564 = vmatmul.mubr.bf16.gmra.mxu0 %v771
    %v4565 = vpop.f32.mrf.mxu0
    %v4566 = vadd.f32 0.0, %v4565
    %v4567 = vpop.f32.mrf.mxu0
    %v4568 = vpop.f32.mrf.mxu0
    %v4569 = vadd.f32 0.0, %v4568
    %v4570 = vpop.f32.mrf.mxu0
    %4571 = vmatprep.mubr.bf16.mxu0 0
    %4572 = vmatmul.mubr.bf16.gmra.mxu0 %v772
    %v4573 = vpop.f32.mrf.mxu0
    %v4574 = vadd.f32 0.0, %v4573
    %v4575 = vpop.f32.mrf.mxu0
    %v4576 = vpop.f32.mrf.mxu0
    %v4577 = vadd.f32 0.0, %v4576
    %v4578 = vpop.f32.mrf.mxu0
    %4579 = vmatprep.mubr.bf16.mxu0 0
    %4580 = vmatmul.mubr.bf16.gmra.mxu0 %v773
    %v4581 = vpop.f32.mrf.mxu0
    %v4582 = vadd.f32 0.0, %v4581
    %v4583 = vpop.f32.mrf.mxu0
    %v4584 = vpop.f32.mrf.mxu0
    %v4585 = vadd.f32 0.0, %v4584
    %v4586 = vpop.f32.mrf.mxu0
    %4587 = vmatprep.mubr.bf16.mxu0 0
    %4588 = vmatmul.mubr.bf16.gmra.mxu0 %v774
    %v4589 = vpop.f32.mrf.mxu0
    %v4590 = vadd.f32 0.0, %v4589
    %v4591 = vpop.f32.mrf.mxu0
    %v4592 = vpop.f32.mrf.mxu0
    %v4593 = vadd.f32 0.0, %v4592
    %v4594 = vpop.f32.mrf.mxu0
    %4595 = vmatprep.mubr.bf16.mxu0 0
    %4596 = vmatmul.mubr.bf16.gmra.mxu0 %v775
    %v4597 = vpop.f32.mrf.mxu0
    %v4598 = vadd.f32 0.0, %v4597
    %v4599 = vpop.f32.mrf.mxu0
    %v4600 = vpop.f32.mrf.mxu0
    %v4601 = vadd.f32 0.0, %v4600
    %v4602 = vpop.f32.mrf.mxu0
    %4603 = vmatprep.mubr.bf16.mxu0 0
    %4604 = vmatmul.mubr.bf16.gmra.mxu0 %v776
    %v4605 = vpop.f32.mrf.mxu0
    %v4606 = vadd.f32 0.0, %v4605
    %v4607 = vpop.f32.mrf.mxu0
    %v4608 = vpop.f32.mrf.mxu0
    %v4609 = vadd.f32 0.0, %v4608
    %v4610 = vpop.f32.mrf.mxu0
    %4611 = vdwg.mxu0
    %4612 = vmatprep.subr.bf16.mxu0 0
    %4613 = vmatpush1.bf16.msra.mxu0 %v4506
    %4614 = vmatprep.subr.bf16.mxu0 0
    %4615 = vmatpush1.bf16.msra.mxu0 %v4505
    %4616 = vmatprep.subr.bf16.mxu0 0
    %4617 = vmatpush1.bf16.msra.mxu0 %v4504
    %4618 = vmatprep.subr.bf16.mxu0 0
    %4619 = vmatpush1.bf16.msra.mxu0 %v4503
    %4620 = vmatprep.subr.bf16.mxu0 0
    %4621 = vmatpush1.bf16.msra.mxu0 %v4502
    %4622 = vmatprep.subr.bf16.mxu0 0
    %4623 = vmatpush1.bf16.msra.mxu0 %v4501
    %4624 = vmatprep.subr.bf16.mxu0 0
    %4625 = vmatpush1.bf16.msra.mxu0 %v4500
    %4626 = vmatprep.subr.bf16.mxu0 0
    %4627 = vmatpush1.bf16.msra.mxu0 %v4499
    %4628 = vmatprep.subr.bf16.mxu0 0
    %4629 = vmatpush2.bf16.msra.mxu0 0
    %4630 = vmatprep.subr.bf16.mxu0 0
    %4631 = vmatpush2.bf16.msra.mxu0 0
    %4632 = vmatprep.subr.bf16.mxu0 0
    %4633 = vmatpush2.bf16.msra.mxu0 0
    %4634 = vmatprep.subr.bf16.mxu0 0
    %4635 = vmatpush2.bf16.msra.mxu0 0
    %4636 = vmatprep.subr.bf16.mxu0 0
    %4637 = vmatpush2.bf16.msra.mxu0 0
    %4638 = vmatprep.subr.bf16.mxu0 0
    %4639 = vmatpush2.bf16.msra.mxu0 0
    %4640 = vmatprep.subr.bf16.mxu0 0
    %4641 = vmatpush2.bf16.msra.mxu0 0
    %4642 = vmatprep.subr.bf16.mxu0 0
    %4643 = vmatpush2.bf16.msra.mxu0 0
    %4644 = vmatprep.mubr.bf16.mxu0 0
    %4645 = vmatmul.mubr.bf16.gmra.mxu0 %v914
    %v4646 = vpop.f32.mrf.mxu0
    %v4647 = vadd.f32 %v4550, %v4646
    %v4648 = vpop.f32.mrf.mxu0
    %v4649 = vpop.f32.mrf.mxu0
    %v4650 = vadd.f32 %v4553, %v4649
    %v4651 = vpop.f32.mrf.mxu0
    %4652 = vmatprep.mubr.bf16.mxu0 0
    %4653 = vmatmul.mubr.bf16.gmra.mxu0 %v915
    %v4654 = vpop.f32.mrf.mxu0
    %v4655 = vadd.f32 %v4558, %v4654
    %v4656 = vpop.f32.mrf.mxu0
    %v4657 = vpop.f32.mrf.mxu0
    %v4658 = vadd.f32 %v4561, %v4657
    %v4659 = vpop.f32.mrf.mxu0
    %4660 = vmatprep.mubr.bf16.mxu0 0
    %4661 = vmatmul.mubr.bf16.gmra.mxu0 %v916
    %v4662 = vpop.f32.mrf.mxu0
    %v4663 = vadd.f32 %v4566, %v4662
    %v4664 = vpop.f32.mrf.mxu0
    %v4665 = vpop.f32.mrf.mxu0
    %v4666 = vadd.f32 %v4569, %v4665
    %v4667 = vpop.f32.mrf.mxu0
    %4668 = vmatprep.mubr.bf16.mxu0 0
    %4669 = vmatmul.mubr.bf16.gmra.mxu0 %v917
    %v4670 = vpop.f32.mrf.mxu0
    %v4671 = vadd.f32 %v4574, %v4670
    %v4672 = vpop.f32.mrf.mxu0
    %v4673 = vpop.f32.mrf.mxu0
    %v4674 = vadd.f32 %v4577, %v4673
    %v4675 = vpop.f32.mrf.mxu0
    %4676 = vmatprep.mubr.bf16.mxu0 0
    %4677 = vmatmul.mubr.bf16.gmra.mxu0 %v918
    %v4678 = vpop.f32.mrf.mxu0
    %v4679 = vadd.f32 %v4582, %v4678
    %v4680 = vpop.f32.mrf.mxu0
    %v4681 = vpop.f32.mrf.mxu0
    %v4682 = vadd.f32 %v4585, %v4681
    %v4683 = vpop.f32.mrf.mxu0
    %4684 = vmatprep.mubr.bf16.mxu0 0
    %4685 = vmatmul.mubr.bf16.gmra.mxu0 %v919
    %v4686 = vpop.f32.mrf.mxu0
    %v4687 = vadd.f32 %v4590, %v4686
    %v4688 = vpop.f32.mrf.mxu0
    %v4689 = vpop.f32.mrf.mxu0
    %v4690 = vadd.f32 %v4593, %v4689
    %v4691 = vpop.f32.mrf.mxu0
    %4692 = vmatprep.mubr.bf16.mxu0 0
    %4693 = vmatmul.mubr.bf16.gmra.mxu0 %v920
    %v4694 = vpop.f32.mrf.mxu0
    %v4695 = vadd.f32 %v4598, %v4694
    %v4696 = vpop.f32.mrf.mxu0
    %v4697 = vpop.f32.mrf.mxu0
    %v4698 = vadd.f32 %v4601, %v4697
    %v4699 = vpop.f32.mrf.mxu0
    %4700 = vmatprep.mubr.bf16.mxu0 0
    %4701 = vmatmul.mubr.bf16.gmra.mxu0 %v921
    %v4702 = vpop.f32.mrf.mxu0
    %v4703 = vadd.f32 %v4606, %v4702
    %v4704 = vpop.f32.mrf.mxu0
    %v4705 = vpop.f32.mrf.mxu0
    %v4706 = vadd.f32 %v4609, %v4705
    %v4707 = vpop.f32.mrf.mxu0
    %4708 = vdwg.mxu0
    %s4709 = scalar_lea.vmem %s11, 3
    %v4710 = vld [vmem:[%s4709] sm:$0x1]
    %v4712 = vlaneseq
    %v4713 = vshrl.u32 %v4712, 7
    %v4714 = vsub.s32 0, %v4713
    %v4715 = vrot.slane %v4710, %v4714
    %v4717 = vadd.f32 %v4647, %v4715
    %v4718 = vadd.f32 %v4650, %v4715
    %v4719 = vadd.f32 %v4655, %v4715
    %v4720 = vadd.f32 %v4658, %v4715
    %v4721 = vadd.f32 %v4663, %v4715
    %v4722 = vadd.f32 %v4666, %v4715
    %v4723 = vadd.f32 %v4671, %v4715
    %v4724 = vadd.f32 %v4674, %v4715
    %v4725 = vadd.f32 %v4679, %v4715
    %v4726 = vadd.f32 %v4682, %v4715
    %v4727 = vadd.f32 %v4687, %v4715
    %v4728 = vadd.f32 %v4690, %v4715
    %v4729 = vadd.f32 %v4695, %v4715
    %v4730 = vadd.f32 %v4698, %v4715
    %v4731 = vadd.f32 %v4703, %v4715
    %v4732 = vadd.f32 %v4706, %v4715
    %vm4733 = vcmp.gt.f32.partialorder %v4717, 0.0
    %vm4734 = vcmp.gt.f32.partialorder %v4718, 0.0
    %vm4735 = vcmp.gt.f32.partialorder %v4719, 0.0
    %vm4736 = vcmp.gt.f32.partialorder %v4720, 0.0
    %vm4737 = vcmp.gt.f32.partialorder %v4721, 0.0
    %vm4738 = vcmp.gt.f32.partialorder %v4722, 0.0
    %vm4739 = vcmp.gt.f32.partialorder %v4723, 0.0
    %vm4740 = vcmp.gt.f32.partialorder %v4724, 0.0
    %vm4741 = vcmp.gt.f32.partialorder %v4725, 0.0
    %vm4742 = vcmp.gt.f32.partialorder %v4726, 0.0
    %vm4743 = vcmp.gt.f32.partialorder %v4727, 0.0
    %vm4744 = vcmp.gt.f32.partialorder %v4728, 0.0
    %vm4745 = vcmp.gt.f32.partialorder %v4729, 0.0
    %vm4746 = vcmp.gt.f32.partialorder %v4730, 0.0
    %vm4747 = vcmp.gt.f32.partialorder %v4731, 0.0
    %vm4748 = vcmp.gt.f32.partialorder %v4732, 0.0
    %v4749 = vstv %s3931
    %v4750 = vmul.f32 %v4749, %v4717
    %v4751 = vmul.f32 %v4749, %v4718
    %v4752 = vmul.f32 %v4749, %v4719
    %v4753 = vmul.f32 %v4749, %v4720
    %v4754 = vmul.f32 %v4749, %v4721
    %v4755 = vmul.f32 %v4749, %v4722
    %v4756 = vmul.f32 %v4749, %v4723
    %v4757 = vmul.f32 %v4749, %v4724
    %v4758 = vmul.f32 %v4749, %v4725
    %v4759 = vmul.f32 %v4749, %v4726
    %v4760 = vmul.f32 %v4749, %v4727
    %v4761 = vmul.f32 %v4749, %v4728
    %v4762 = vmul.f32 %v4749, %v4729
    %v4763 = vmul.f32 %v4749, %v4730
    %v4764 = vmul.f32 %v4749, %v4731
    %v4765 = vmul.f32 %v4749, %v4732
    %v4766 = vsel %vm4733, %v4717, %v4750
    %v4767 = vsel %vm4734, %v4718, %v4751
    %v4768 = vsel %vm4735, %v4719, %v4752
    %v4769 = vsel %vm4736, %v4720, %v4753
    %v4770 = vsel %vm4737, %v4721, %v4754
    %v4771 = vsel %vm4738, %v4722, %v4755
    %v4772 = vsel %vm4739, %v4723, %v4756
    %v4773 = vsel %vm4740, %v4724, %v4757
    %v4774 = vsel %vm4741, %v4725, %v4758
    %v4775 = vsel %vm4742, %v4726, %v4759
    %v4776 = vsel %vm4743, %v4727, %v4760
    %v4777 = vsel %vm4744, %v4728, %v4761
    %v4778 = vsel %vm4745, %v4729, %v4762
    %v4779 = vsel %vm4746, %v4730, %v4763
    %v4780 = vsel %vm4747, %v4731, %v4764
    %v4781 = vsel %vm4748, %v4732, %v4765
    %v4782 = vpack.c.bf16 %v4767, %v4766
    %v4783 = vpack.c.bf16 %v4769, %v4768
    %v4784 = vpack.c.bf16 %v4771, %v4770
    %v4785 = vpack.c.bf16 %v4773, %v4772
    %v4786 = vpack.c.bf16 %v4775, %v4774
    %v4787 = vpack.c.bf16 %v4777, %v4776
    %v4788 = vpack.c.bf16 %v4779, %v4778
    %v4789 = vpack.c.bf16 %v4781, %v4780
    %4790 = vmatprep.subr.bf16.mxu0 0
    %4791 = vmatpush1.bf16.msra.mxu0 %v4789
    %4792 = vmatprep.subr.bf16.mxu0 0
    %4793 = vmatpush1.bf16.msra.mxu0 %v4788
    %4794 = vmatprep.subr.bf16.mxu0 0
    %4795 = vmatpush1.bf16.msra.mxu0 %v4787
    %4796 = vmatprep.subr.bf16.mxu0 0
    %4797 = vmatpush1.bf16.msra.mxu0 %v4786
    %4798 = vmatprep.subr.bf16.mxu0 0
    %4799 = vmatpush1.bf16.msra.mxu0 %v4785
    %4800 = vmatprep.subr.bf16.mxu0 0
    %4801 = vmatpush1.bf16.msra.mxu0 %v4784
    %4802 = vmatprep.subr.bf16.mxu0 0
    %4803 = vmatpush1.bf16.msra.mxu0 %v4783
    %4804 = vmatprep.subr.bf16.mxu0 0
    %4805 = vmatpush1.bf16.msra.mxu0 %v4782
    %4806 = vmatprep.subr.bf16.mxu0 0
    %4807 = vmatpush2.bf16.msra.mxu0 0
    %4808 = vmatprep.subr.bf16.mxu0 0
    %4809 = vmatpush2.bf16.msra.mxu0 0
    %4810 = vmatprep.subr.bf16.mxu0 0
    %4811 = vmatpush2.bf16.msra.mxu0 0
    %4812 = vmatprep.subr.bf16.mxu0 0
    %4813 = vmatpush2.bf16.msra.mxu0 0
    %4814 = vmatprep.subr.bf16.mxu0 0
    %4815 = vmatpush2.bf16.msra.mxu0 0
    %4816 = vmatprep.subr.bf16.mxu0 0
    %4817 = vmatpush2.bf16.msra.mxu0 0
    %4818 = vmatprep.subr.bf16.mxu0 0
    %4819 = vmatpush2.bf16.msra.mxu0 0
    %4820 = vmatprep.subr.bf16.mxu0 0
    %4821 = vmatpush2.bf16.msra.mxu0 0
    %4822 = vmatprep.mubr.bf16.mxu0 0
    %4823 = vmatmul.mubr.bf16.gmra.mxu0 %v1139
    %v4824 = vpop.f32.mrf.mxu0
    %v4825 = vadd.f32 0.0, %v4824
    %v4826 = vpop.f32.mrf.mxu0
    %v4827 = vpop.f32.mrf.mxu0
    %v4828 = vadd.f32 0.0, %v4827
    %v4829 = vpop.f32.mrf.mxu0
    %4830 = vmatprep.mubr.bf16.mxu0 0
    %4831 = vmatmul.mubr.bf16.gmra.mxu0 %v1140
    %v4832 = vpop.f32.mrf.mxu0
    %v4833 = vadd.f32 0.0, %v4832
    %v4834 = vpop.f32.mrf.mxu0
    %v4835 = vpop.f32.mrf.mxu0
    %v4836 = vadd.f32 0.0, %v4835
    %v4837 = vpop.f32.mrf.mxu0
    %4838 = vmatprep.mubr.bf16.mxu0 0
    %4839 = vmatmul.mubr.bf16.gmra.mxu0 %v1141
    %v4840 = vpop.f32.mrf.mxu0
    %v4841 = vadd.f32 0.0, %v4840
    %v4842 = vpop.f32.mrf.mxu0
    %v4843 = vpop.f32.mrf.mxu0
    %v4844 = vadd.f32 0.0, %v4843
    %v4845 = vpop.f32.mrf.mxu0
    %4846 = vmatprep.mubr.bf16.mxu0 0
    %4847 = vmatmul.mubr.bf16.gmra.mxu0 %v1142
    %v4848 = vpop.f32.mrf.mxu0
    %v4849 = vadd.f32 0.0, %v4848
    %v4850 = vpop.f32.mrf.mxu0
    %v4851 = vpop.f32.mrf.mxu0
    %v4852 = vadd.f32 0.0, %v4851
    %v4853 = vpop.f32.mrf.mxu0
    %4854 = vmatprep.mubr.bf16.mxu0 0
    %4855 = vmatmul.mubr.bf16.gmra.mxu0 %v1143
    %v4856 = vpop.f32.mrf.mxu0
    %v4857 = vadd.f32 0.0, %v4856
    %v4858 = vpop.f32.mrf.mxu0
    %v4859 = vpop.f32.mrf.mxu0
    %v4860 = vadd.f32 0.0, %v4859
    %v4861 = vpop.f32.mrf.mxu0
    %4862 = vmatprep.mubr.bf16.mxu0 0
    %4863 = vmatmul.mubr.bf16.gmra.mxu0 %v1144
    %v4864 = vpop.f32.mrf.mxu0
    %v4865 = vadd.f32 0.0, %v4864
    %v4866 = vpop.f32.mrf.mxu0
    %v4867 = vpop.f32.mrf.mxu0
    %v4868 = vadd.f32 0.0, %v4867
    %v4869 = vpop.f32.mrf.mxu0
    %4870 = vmatprep.mubr.bf16.mxu0 0
    %4871 = vmatmul.mubr.bf16.gmra.mxu0 %v1145
    %v4872 = vpop.f32.mrf.mxu0
    %v4873 = vadd.f32 0.0, %v4872
    %v4874 = vpop.f32.mrf.mxu0
    %v4875 = vpop.f32.mrf.mxu0
    %v4876 = vadd.f32 0.0, %v4875
    %v4877 = vpop.f32.mrf.mxu0
    %4878 = vmatprep.mubr.bf16.mxu0 0
    %4879 = vmatmul.mubr.bf16.gmra.mxu0 %v1146
    %v4880 = vpop.f32.mrf.mxu0
    %v4881 = vadd.f32 0.0, %v4880
    %v4882 = vpop.f32.mrf.mxu0
    %v4883 = vpop.f32.mrf.mxu0
    %v4884 = vadd.f32 0.0, %v4883
    %v4885 = vpop.f32.mrf.mxu0
    %4886 = vdwg.mxu0
    %v4887 = vpack.c.bf16 %v4828, %v4825
    %v4888 = vpack.c.bf16 %v4836, %v4833
    %v4889 = vpack.c.bf16 %v4844, %v4841
    %v4890 = vpack.c.bf16 %v4852, %v4849
    %v4891 = vpack.c.bf16 %v4860, %v4857
    %v4892 = vpack.c.bf16 %v4868, %v4865
    %v4893 = vpack.c.bf16 %v4876, %v4873
    %v4894 = vpack.c.bf16 %v4884, %v4881
    %s4895 = scalar_lea.vmem %s9, 192
    %v4896 = vld [vmem:[%s4895] sm:$0xf]
    %v4897 = vld [vmem:[%s4895 + $0x4] sm:$0xf]
    %v4898 = vld [vmem:[%s4895 + $0x8] sm:$0xf]
    %v4899 = vld [vmem:[%s4895 + $0xc] sm:$0xf]
    %v4900 = vld [vmem:[%s4895 + $0x10] sm:$0xf]
    %v4901 = vld [vmem:[%s4895 + $0x14] sm:$0xf]
    %v4902 = vld [vmem:[%s4895 + $0x18] sm:$0xf]
    %v4903 = vld [vmem:[%s4895 + $0x1c] sm:$0xf]
    %v4904 = vld [vmem:[%s4895 + $0x20] sm:$0xf]
    %v4905 = vld [vmem:[%s4895 + $0x24] sm:$0xf]
    %v4906 = vld [vmem:[%s4895 + $0x28] sm:$0xf]
    %v4907 = vld [vmem:[%s4895 + $0x2c] sm:$0xf]
    %v4908 = vld [vmem:[%s4895 + $0x30] sm:$0xf]
    %v4909 = vld [vmem:[%s4895 + $0x34] sm:$0xf]
    %v4910 = vld [vmem:[%s4895 + $0x38] sm:$0xf]
    %v4911 = vld [vmem:[%s4895 + $0x3c] sm:$0xf]
    %v4928 = vunpack.c.l.b16 %v4896
    %v4929 = vunpack.c.l.b16 %v4897
    %v4930 = vunpack.c.l.b16 %v4898
    %v4931 = vunpack.c.l.b16 %v4899
    %v4932 = vunpack.c.l.b16 %v4900
    %v4933 = vunpack.c.l.b16 %v4901
    %v4934 = vunpack.c.l.b16 %v4902
    %v4935 = vunpack.c.l.b16 %v4903
    %v4936 = vunpack.c.l.b16 %v4904
    %v4937 = vunpack.c.l.b16 %v4905
    %v4938 = vunpack.c.l.b16 %v4906
    %v4939 = vunpack.c.l.b16 %v4907
    %v4940 = vunpack.c.l.b16 %v4908
    %v4941 = vunpack.c.l.b16 %v4909
    %v4942 = vunpack.c.l.b16 %v4910
    %v4943 = vunpack.c.l.b16 %v4911
    %v4944 = vpack.c.b16 %v4929, %v4928
    %v4945 = vpack.c.b16 %v4931, %v4930
    %v4946 = vpack.c.b16 %v4933, %v4932
    %v4947 = vpack.c.b16 %v4935, %v4934
    %v4948 = vpack.c.b16 %v4937, %v4936
    %v4949 = vpack.c.b16 %v4939, %v4938
    %v4950 = vpack.c.b16 %v4941, %v4940
    %v4951 = vpack.c.b16 %v4943, %v4942
    %4960 = vmatprep.subr.bf16.mxu0 0
    %4961 = vmatpush1.bf16.msra.mxu0 %v4951
    %4962 = vmatprep.subr.bf16.mxu0 0
    %4963 = vmatpush1.bf16.msra.mxu0 %v4950
    %4964 = vmatprep.subr.bf16.mxu0 0
    %4965 = vmatpush1.bf16.msra.mxu0 %v4949
    %4966 = vmatprep.subr.bf16.mxu0 0
    %4967 = vmatpush1.bf16.msra.mxu0 %v4948
    %4968 = vmatprep.subr.bf16.mxu0 0
    %4969 = vmatpush1.bf16.msra.mxu0 %v4947
    %4970 = vmatprep.subr.bf16.mxu0 0
    %4971 = vmatpush1.bf16.msra.mxu0 %v4946
    %4972 = vmatprep.subr.bf16.mxu0 0
    %4973 = vmatpush1.bf16.msra.mxu0 %v4945
    %4974 = vmatprep.subr.bf16.mxu0 0
    %4975 = vmatpush1.bf16.msra.mxu0 %v4944
    %4976 = vmatprep.subr.bf16.mxu0 0
    %4977 = vmatpush2.bf16.msra.mxu0 0
    %4978 = vmatprep.subr.bf16.mxu0 0
    %4979 = vmatpush2.bf16.msra.mxu0 0
    %4980 = vmatprep.subr.bf16.mxu0 0
    %4981 = vmatpush2.bf16.msra.mxu0 0
    %4982 = vmatprep.subr.bf16.mxu0 0
    %4983 = vmatpush2.bf16.msra.mxu0 0
    %4984 = vmatprep.subr.bf16.mxu0 0
    %4985 = vmatpush2.bf16.msra.mxu0 0
    %4986 = vmatprep.subr.bf16.mxu0 0
    %4987 = vmatpush2.bf16.msra.mxu0 0
    %4988 = vmatprep.subr.bf16.mxu0 0
    %4989 = vmatpush2.bf16.msra.mxu0 0
    %4990 = vmatprep.subr.bf16.mxu0 0
    %4991 = vmatpush2.bf16.msra.mxu0 0
    %4992 = vmatprep.mubr.bf16.mxu0 0
    %4993 = vmatmul.mubr.bf16.gmra.mxu0 %v4887
    %v4994 = vpop.f32.mrf.mxu0
    %v4995 = vadd.f32 %v4399, %v4994
    %v4996 = vpop.f32.mrf.mxu0
    %v4997 = vpop.f32.mrf.mxu0
    %v4998 = vadd.f32 %v4403, %v4997
    %v4999 = vpop.f32.mrf.mxu0
    %5000 = vmatprep.mubr.bf16.mxu0 0
    %5001 = vmatmul.mubr.bf16.gmra.mxu0 %v4888
    %v5002 = vpop.f32.mrf.mxu0
    %v5003 = vadd.f32 %v4409, %v5002
    %v5004 = vpop.f32.mrf.mxu0
    %v5005 = vpop.f32.mrf.mxu0
    %v5006 = vadd.f32 %v4413, %v5005
    %v5007 = vpop.f32.mrf.mxu0
    %5008 = vmatprep.mubr.bf16.mxu0 0
    %5009 = vmatmul.mubr.bf16.gmra.mxu0 %v4889
    %v5010 = vpop.f32.mrf.mxu0
    %v5011 = vadd.f32 %v4419, %v5010
    %v5012 = vpop.f32.mrf.mxu0
    %v5013 = vpop.f32.mrf.mxu0
    %v5014 = vadd.f32 %v4423, %v5013
    %v5015 = vpop.f32.mrf.mxu0
    %5016 = vmatprep.mubr.bf16.mxu0 0
    %5017 = vmatmul.mubr.bf16.gmra.mxu0 %v4890
    %v5018 = vpop.f32.mrf.mxu0
    %v5019 = vadd.f32 %v4429, %v5018
    %v5020 = vpop.f32.mrf.mxu0
    %v5021 = vpop.f32.mrf.mxu0
    %v5022 = vadd.f32 %v4433, %v5021
    %v5023 = vpop.f32.mrf.mxu0
    %5024 = vmatprep.mubr.bf16.mxu0 0
    %5025 = vmatmul.mubr.bf16.gmra.mxu0 %v4891
    %v5026 = vpop.f32.mrf.mxu0
    %v5027 = vadd.f32 %v4439, %v5026
    %v5028 = vpop.f32.mrf.mxu0
    %v5029 = vpop.f32.mrf.mxu0
    %v5030 = vadd.f32 %v4443, %v5029
    %v5031 = vpop.f32.mrf.mxu0
    %5032 = vmatprep.mubr.bf16.mxu0 0
    %5033 = vmatmul.mubr.bf16.gmra.mxu0 %v4892
    %v5034 = vpop.f32.mrf.mxu0
    %v5035 = vadd.f32 %v4449, %v5034
    %v5036 = vpop.f32.mrf.mxu0
    %v5037 = vpop.f32.mrf.mxu0
    %v5038 = vadd.f32 %v4453, %v5037
    %v5039 = vpop.f32.mrf.mxu0
    %5040 = vmatprep.mubr.bf16.mxu0 0
    %5041 = vmatmul.mubr.bf16.gmra.mxu0 %v4893
    %v5042 = vpop.f32.mrf.mxu0
    %v5043 = vadd.f32 %v4459, %v5042
    %v5044 = vpop.f32.mrf.mxu0
    %v5045 = vpop.f32.mrf.mxu0
    %v5046 = vadd.f32 %v4463, %v5045
    %v5047 = vpop.f32.mrf.mxu0
    %5048 = vmatprep.mubr.bf16.mxu0 0
    %5049 = vmatmul.mubr.bf16.gmra.mxu0 %v4894
    %v5050 = vpop.f32.mrf.mxu0
    %v5051 = vadd.f32 %v4469, %v5050
    %v5052 = vpop.f32.mrf.mxu0
    %v5053 = vpop.f32.mrf.mxu0
    %v5054 = vadd.f32 %v4473, %v5053
    %v5055 = vpop.f32.mrf.mxu0
    %5056 = vdwg.mxu0
    %s5057 = scalar_lea.vmem %s12, 3
    %v5058 = vld [vmem:[%s5057] sm:$0x1]
    %v5060 = vlaneseq
    %v5061 = vshrl.u32 %v5060, 7
    %v5062 = vsub.s32 0, %v5061
    %v5063 = vrot.slane %v5058, %v5062
    %v5065 = vadd.f32 %v4995, %v5063
    %v5066 = vadd.f32 %v4998, %v5063
    %v5067 = vadd.f32 %v5003, %v5063
    %v5068 = vadd.f32 %v5006, %v5063
    %v5069 = vadd.f32 %v5011, %v5063
    %v5070 = vadd.f32 %v5014, %v5063
    %v5071 = vadd.f32 %v5019, %v5063
    %v5072 = vadd.f32 %v5022, %v5063
    %v5073 = vadd.f32 %v5027, %v5063
    %v5074 = vadd.f32 %v5030, %v5063
    %v5075 = vadd.f32 %v5035, %v5063
    %v5076 = vadd.f32 %v5038, %v5063
    %v5077 = vadd.f32 %v5043, %v5063
    %v5078 = vadd.f32 %v5046, %v5063
    %v5079 = vadd.f32 %v5051, %v5063
    %v5080 = vadd.f32 %v5054, %v5063
    %vm5081 = vcmp.gt.f32.partialorder %v5065, 0.0
    %vm5082 = vcmp.gt.f32.partialorder %v5066, 0.0
    %vm5083 = vcmp.gt.f32.partialorder %v5067, 0.0
    %vm5084 = vcmp.gt.f32.partialorder %v5068, 0.0
    %vm5085 = vcmp.gt.f32.partialorder %v5069, 0.0
    %vm5086 = vcmp.gt.f32.partialorder %v5070, 0.0
    %vm5087 = vcmp.gt.f32.partialorder %v5071, 0.0
    %vm5088 = vcmp.gt.f32.partialorder %v5072, 0.0
    %vm5089 = vcmp.gt.f32.partialorder %v5073, 0.0
    %vm5090 = vcmp.gt.f32.partialorder %v5074, 0.0
    %vm5091 = vcmp.gt.f32.partialorder %v5075, 0.0
    %vm5092 = vcmp.gt.f32.partialorder %v5076, 0.0
    %vm5093 = vcmp.gt.f32.partialorder %v5077, 0.0
    %vm5094 = vcmp.gt.f32.partialorder %v5078, 0.0
    %vm5095 = vcmp.gt.f32.partialorder %v5079, 0.0
    %vm5096 = vcmp.gt.f32.partialorder %v5080, 0.0
    %v5097 = vstv %s3932
    %v5098 = vmul.f32 %v5097, %v5065
    %v5099 = vmul.f32 %v5097, %v5066
    %v5100 = vmul.f32 %v5097, %v5067
    %v5101 = vmul.f32 %v5097, %v5068
    %v5102 = vmul.f32 %v5097, %v5069
    %v5103 = vmul.f32 %v5097, %v5070
    %v5104 = vmul.f32 %v5097, %v5071
    %v5105 = vmul.f32 %v5097, %v5072
    %v5106 = vmul.f32 %v5097, %v5073
    %v5107 = vmul.f32 %v5097, %v5074
    %v5108 = vmul.f32 %v5097, %v5075
    %v5109 = vmul.f32 %v5097, %v5076
    %v5110 = vmul.f32 %v5097, %v5077
    %v5111 = vmul.f32 %v5097, %v5078
    %v5112 = vmul.f32 %v5097, %v5079
    %v5113 = vmul.f32 %v5097, %v5080
    %v5114 = vsel %vm5081, %v5065, %v5098
    %v5115 = vsel %vm5082, %v5066, %v5099
    %v5116 = vsel %vm5083, %v5067, %v5100
    %v5117 = vsel %vm5084, %v5068, %v5101
    %v5118 = vsel %vm5085, %v5069, %v5102
    %v5119 = vsel %vm5086, %v5070, %v5103
    %v5120 = vsel %vm5087, %v5071, %v5104
    %v5121 = vsel %vm5088, %v5072, %v5105
    %v5122 = vsel %vm5089, %v5073, %v5106
    %v5123 = vsel %vm5090, %v5074, %v5107
    %v5124 = vsel %vm5091, %v5075, %v5108
    %v5125 = vsel %vm5092, %v5076, %v5109
    %v5126 = vsel %vm5093, %v5077, %v5110
    %v5127 = vsel %vm5094, %v5078, %v5111
    %v5128 = vsel %vm5095, %v5079, %v5112
    %v5129 = vsel %vm5096, %v5080, %v5113
    %5130 = vst [vmem:[%s14] sm:$0xff] %v4766
    %5131 = vst [vmem:[%s14 + $0x8] sm:$0xff] %v4767
    %5132 = vst [vmem:[%s14 + $0x10] sm:$0xff] %v4768
    %5133 = vst [vmem:[%s14 + $0x18] sm:$0xff] %v4769
    %5134 = vst [vmem:[%s14 + $0x20] sm:$0xff] %v4770
    %5135 = vst [vmem:[%s14 + $0x28] sm:$0xff] %v4771
    %5136 = vst [vmem:[%s14 + $0x30] sm:$0xff] %v4772
    %5137 = vst [vmem:[%s14 + $0x38] sm:$0xff] %v4773
    %5138 = vst [vmem:[%s14 + $0x40] sm:$0xff] %v4774
    %5139 = vst [vmem:[%s14 + $0x48] sm:$0xff] %v4775
    %5140 = vst [vmem:[%s14 + $0x50] sm:$0xff] %v4776
    %5141 = vst [vmem:[%s14 + $0x58] sm:$0xff] %v4777
    %5142 = vst [vmem:[%s14 + $0x60] sm:$0xff] %v4778
    %5143 = vst [vmem:[%s14 + $0x68] sm:$0xff] %v4779
    %5144 = vst [vmem:[%s14 + $0x70] sm:$0xff] %v4780
    %5145 = vst [vmem:[%s14 + $0x78] sm:$0xff] %v4781
    %5146 = vst [vmem:[%s15] sm:$0xff] %v5114
    %5147 = vst [vmem:[%s15 + $0x8] sm:$0xff] %v5115
    %5148 = vst [vmem:[%s15 + $0x10] sm:$0xff] %v5116
    %5149 = vst [vmem:[%s15 + $0x18] sm:$0xff] %v5117
    %5150 = vst [vmem:[%s15 + $0x20] sm:$0xff] %v5118
    %5151 = vst [vmem:[%s15 + $0x28] sm:$0xff] %v5119
    %5152 = vst [vmem:[%s15 + $0x30] sm:$0xff] %v5120
    %5153 = vst [vmem:[%s15 + $0x38] sm:$0xff] %v5121
    %5154 = vst [vmem:[%s15 + $0x40] sm:$0xff] %v5122
    %5155 = vst [vmem:[%s15 + $0x48] sm:$0xff] %v5123
    %5156 = vst [vmem:[%s15 + $0x50] sm:$0xff] %v5124
    %5157 = vst [vmem:[%s15 + $0x58] sm:$0xff] %v5125
    %5158 = vst [vmem:[%s15 + $0x60] sm:$0xff] %v5126
    %5159 = vst [vmem:[%s15 + $0x68] sm:$0xff] %v5127
    %5160 = vst [vmem:[%s15 + $0x70] sm:$0xff] %v5128
    %5161 = vst [vmem:[%s15 + $0x78] sm:$0xff] %v5129
    // Predicated region
    $region58: #{ae_egcn_forward.1} parent=1 // pred_check
      _
    $region59: #{ae_egcn_forward.1} parent=1 // pred_check_branch
      %5163 = sbr.rel (0) target = $region61
    $region60: #{ae_egcn_forward.1} parent=1 // pred_region
      _
    $region61: #{ae_egcn_forward.1} parent=1 // pred_fallthru
      _
    // Predicated region
    $region62: #{ae_egcn_forward.1} parent=1 // pred_check
      _
    $region63: #{ae_egcn_forward.1} parent=1 // pred_check_branch
      %5165 = sbr.rel (0) target = $region65
    $region64: #{ae_egcn_forward.1} parent=1 // pred_region
      _
    $region65: #{ae_egcn_forward.1} parent=1 // pred_fallthru
      _
    // Predicated region
    $region66: #{ae_egcn_forward.1} parent=1 // pred_check
      _
    $region67: #{ae_egcn_forward.1} parent=1 // pred_check_branch
      %5167 = sbr.rel (0) target = $region69
    $region68: #{ae_egcn_forward.1} parent=1 // pred_region
      _
    $region69: #{ae_egcn_forward.1} parent=1 // pred_fallthru
      _
    // Predicated region
    $region70: #{ae_egcn_forward.1} parent=1 // pred_check
      _
    $region71: #{ae_egcn_forward.1} parent=1 // pred_check_branch
      %5169 = sbr.rel (0) target = $region73
    $region72: #{ae_egcn_forward.1} parent=1 // pred_region
      _
    $region73: #{ae_egcn_forward.1} parent=1 // pred_fallthru
      _
    // Predicated region
    $region74: #{ae_egcn_forward.1} parent=1 // pred_check
      _
    $region75: #{ae_egcn_forward.1} parent=1 // pred_check_branch
      %5171 = sbr.rel (0) target = $region77
    $region76: #{ae_egcn_forward.1} parent=1 // pred_region
      _
    $region77: #{ae_egcn_forward.1} parent=1 // pred_fallthru
      _
    // Predicated region
    $region78: #{ae_egcn_forward.1} parent=1 // pred_check
      _
    $region79: #{ae_egcn_forward.1} parent=1 // pred_check_branch
      %5173 = sbr.rel (0) target = $region81
    $region80: #{ae_egcn_forward.1} parent=1 // pred_region
      _
    $region81: #{ae_egcn_forward.1} parent=1 // pred_fallthru
      _
    %5174 = vsyncpa [#allocation3], 1

</llo_original>
